<compile_context>
chip_gen: v7x
topology: tpu7x:2x2x1
jax: 0.10.0
libtpu: 0.0.40
codegen_flags: <defaults>
</compile_context>

<pallas_src>
import functools

import jax
import jax.numpy as jnp
import numpy as np
from jax import lax
from jax.experimental import pallas as pl
from jax.experimental.pallas import tpu as pltpu

_EPS = 1e-5
_VMEM_LIMIT = 32 * 1024 * 1024      # explicit scoped-VMEM limit (fits v5e/v6e/v7x)
_STREAM_BUDGET = 12 * 1024 * 1024   # byte budget for double-buffered row streams


def _round_up(x, m):
    return (x + m - 1) // m * m


def _pad_rows(x, mp):
    m = x.shape[0]
    return x if m == mp else jnp.pad(x, ((0, mp - m), (0, 0)))


def _choose_tm(m, bytes_per_row):
    """Row-tile size from a VMEM byte budget; >=2 grid blocks when possible
    so both v7x TensorCores get work (harmless on v5e/v6e)."""
    tm = _STREAM_BUDGET // max(1, bytes_per_row)
    tm = max(8, min(1024, tm - tm % 8))
    two_blocks = max(8, _round_up(-(-m // 2), 8))
    tm = min(tm, two_blocks)
    tm = min(tm, _round_up(m, 8))
    return tm


def _mosaic(dims):
    return pltpu.CompilerParams(dimension_semantics=dims,
                                vmem_limit_bytes=_VMEM_LIMIT)


# ----------------------------------------------------------------------------
# Kernel bodies
# ----------------------------------------------------------------------------
def _mm_stats_kernel(x_ref, w_ref, y_ref, s_ref):
    # y = x @ w (bf16 MXU inputs, f32 accumulate) + per-tile column (sum, sumsq)
    # so BatchNorm batch statistics never need a second HBM pass over y.
    x = x_ref[...].astype(jnp.bfloat16)
    y = jnp.dot(x, w_ref[...], preferred_element_type=jnp.float32)
    y_ref[...] = y.astype(y_ref.dtype)
    s_ref[0] = jnp.concatenate(
        [jnp.sum(y, axis=0, keepdims=True),
         jnp.sum(y * y, axis=0, keepdims=True)], axis=0)


def _bnrelu_mm_stats_kernel(x_ref, a_ref, b_ref, w_ref, y_ref, s_ref, *,
                            last_valid):
    # h = relu(x*a + b)  (previous conv's BN+ReLU epilogue, fused here)
    # y = h @ w          (this conv), plus fused BN stats of y.
    h = jnp.maximum(x_ref[...].astype(jnp.float32) * a_ref[...] + b_ref[...],
                    0.0)
    if last_valid is not None:
        # Only emitted when M-padding exists; only the final tile can contain
        # padded rows (relu(b) != 0 there), so gate the row limit by tile id.
        tm = h.shape[0]
        nvalid = jnp.where(pl.program_id(0) == pl.num_programs(0) - 1,
                           last_valid, tm)
        rows = lax.broadcasted_iota(jnp.int32, (tm, 1), 0)
        h = jnp.where(rows < nvalid, h, 0.0)
    y = jnp.dot(h.astype(jnp.bfloat16), w_ref[...],
                preferred_element_type=jnp.float32)
    y_ref[...] = y.astype(y_ref.dtype)
    s_ref[0] = jnp.concatenate(
        [jnp.sum(y, axis=0, keepdims=True),
         jnp.sum(y * y, axis=0, keepdims=True)], axis=0)


def _conv3x3_kernel(x_ref, a_ref, b_ref, w_ref, y_ref, s_ref, *,
                    stride, h_out, w_out):
    # Direct 3x3 pad-1 conv, one image per grid step.
    #   x_ref : (1, H, W, C)   conv1 output, pre-BN, bf16
    #   a/b   : (1, C)         folded mask+bn1 scale/shift
    #   w_ref : (3, 3, C, Cout) bf16
    #   y_ref : (1, h_out, W, Cout) bf16 (stride-1 width; caller decimates cols)
    #   s_ref : (1, 2, Cout)   (sum, sumsq) over the VALID (strided) positions
    H, W, C = x_ref.shape[1], x_ref.shape[2], x_ref.shape[3]
    Cout = w_ref.shape[3]
    a = a_ref[...].reshape(1, 1, C)
    b = b_ref[...].reshape(1, 1, C)

    # Fused mask/bn1/relu on the fetched tile, then in-VMEM zero halo.
    h = jnp.maximum(x_ref[0].astype(jnp.float32) * a + b, 0.0)
    h = h.astype(jnp.bfloat16)
    zc = jnp.zeros((H, 1, C), jnp.bfloat16)
    h = jnp.concatenate([zc, h, zc], axis=1)                    # (H, W+2, C)
    zr = jnp.zeros((1, W + 2, C), jnp.bfloat16)
    hp = jnp.concatenate([zr, h] + [zr] * stride, axis=0)       # (H+1+s, W+2, C)

    # 9 unrolled taps, each a large (h_out*W, C) @ (C, Cout) MXU matmul.
    acc = jnp.zeros((h_out * W, Cout), jnp.float32)
    for dh in range(3):
        for dw in range(3):
            xs = hp[dh:dh + stride * h_out, dw:dw + W, :]
            if stride > 1:
                # Row decimation via a layout-preserving reshape (no strided
                # slice): pick every `stride`-th input row for this tap.
                xs = xs.reshape(h_out, stride, W, C)[:, 0]
            acc = acc + jnp.dot(xs.reshape(h_out * W, C), w_ref[dh, dw],
                                preferred_element_type=jnp.float32)

    y_ref[0] = acc.reshape(h_out, W, Cout).astype(y_ref.dtype)

    if stride == 1:
        am = acc
    else:
        # Mask non-strided columns so the fused BN2 stats stay valid.
        cols = lax.broadcasted_iota(jnp.int32, (h_out * W, 1), 0) % W
        valid = (cols % stride == 0) & (cols < w_out * stride)
        am = jnp.where(valid, acc, 0.0)
    s_ref[0] = jnp.concatenate(
        [jnp.sum(am, axis=0, keepdims=True),
         jnp.sum(am * am, axis=0, keepdims=True)], axis=0)


def _scale_shift_add_relu_kernel(x_ref, a_ref, b_ref, r_ref, c_ref, d_ref,
                                 o_ref):
    # out = relu(x*a + b + r*c + d)   (BN3 + shortcut-BN + residual + ReLU)
    o_ref[...] = jnp.maximum(
        x_ref[...].astype(jnp.float32) * a_ref[...] + b_ref[...]
        + r_ref[...].astype(jnp.float32) * c_ref[...] + d_ref[...], 0.0)


# ----------------------------------------------------------------------------
# Pallas wrappers
# ----------------------------------------------------------------------------
def matmul_stats(x, w):
    """y = x @ w (bf16 MXU, f32 acc) + per-channel mean / mean-of-squares."""
    M, K = x.shape
    N = w.shape[1]
    bpr = 2 * (K * x.dtype.itemsize + N * 2)     # double-buffered in+out rows
    tm = _choose_tm(M, bpr)
    Mp = _round_up(M, tm)
    nb = Mp // tm
    y, s = pl.pallas_call(
        _mm_stats_kernel,
        out_shape=(jax.ShapeDtypeStruct((Mp, N), jnp.bfloat16),
                   jax.ShapeDtypeStruct((nb, 2, N), jnp.float32)),
        grid=(nb,),
        in_specs=[pl.BlockSpec((tm, K), lambda i: (i, 0)),
                  pl.BlockSpec((K, N), lambda i: (0, 0))],
        out_specs=(pl.BlockSpec((tm, N), lambda i: (i, 0)),
                   pl.BlockSpec((1, 2, N), lambda i: (i, 0, 0))),
        compiler_params=_mosaic(("parallel",)),
    )(_pad_rows(x, Mp), w)
    s = jnp.sum(s, axis=0)
    return y[:M], s[0] / M, s[1] / M


def bnrelu_matmul_stats(x, a, b, w):
    """y = relu(x*a + b) @ w, plus column mean / mean-of-squares of y."""
    M, K = x.shape
    N = w.shape[1]
    bpr = 2 * (K * x.dtype.itemsize + N * 2)
    tm = _choose_tm(M, bpr)
    Mp = _round_up(M, tm)
    nb = Mp // tm
    last_valid = None if Mp == M else M - (nb - 1) * tm
    kern = functools.partial(_bnrelu_mm_stats_kernel, last_valid=last_valid)
    y, s = pl.pallas_call(
        kern,
        out_shape=(jax.ShapeDtypeStruct((Mp, N), jnp.bfloat16),
                   jax.ShapeDtypeStruct((nb, 2, N), jnp.float32)),
        grid=(nb,),
        in_specs=[pl.BlockSpec((tm, K), lambda i: (i, 0)),
                  pl.BlockSpec((1, K), lambda i: (0, 0)),
                  pl.BlockSpec((1, K), lambda i: (0, 0)),
                  pl.BlockSpec((K, N), lambda i: (0, 0))],
        out_specs=(pl.BlockSpec((tm, N), lambda i: (i, 0)),
                   pl.BlockSpec((1, 2, N), lambda i: (i, 0, 0))),
        compiler_params=_mosaic(("parallel",)),
    )(_pad_rows(x, Mp), a.reshape(1, K).astype(jnp.float32),
      b.reshape(1, K).astype(jnp.float32), w)
    s = jnp.sum(s, axis=0)
    return y[:M], s[0] / M, s[1] / M


def conv3x3_stats(y1, a1, b1, w2, stride):
    """Direct 3x3 pad-1 conv with mask/bn1/relu fused on its input.

    y1 : (N, H, W, C) conv1 output (pre-BN, bf16);  w2 : (3, 3, C, Cout).
    Returns y2 at full stride-1 width (N, Ho, W, Cout) plus per-image
    (sum, sumsq) over the valid (strided) positions."""
    N, H, W, C = y1.shape
    Cout = w2.shape[-1]
    Ho = (H - 1) // stride + 1
    Wo = (W - 1) // stride + 1
    kern = functools.partial(_conv3x3_kernel, stride=stride, h_out=Ho, w_out=Wo)
    # TODO(synk): for very large H*W this kernel should block output rows
    #             (input block index kept constant per image so it still DMAs
    #             the image only once); whole-image blocks are fine for
    #             ResNet-sized feature maps.
    y2, s = pl.pallas_call(
        kern,
        out_shape=(jax.ShapeDtypeStruct((N, Ho, W, Cout), jnp.bfloat16),
                   jax.ShapeDtypeStruct((N, 2, Cout), jnp.float32)),
        grid=(N,),
        in_specs=[pl.BlockSpec((1, H, W, C), lambda n: (n, 0, 0, 0)),
                  pl.BlockSpec((1, C), lambda n: (0, 0)),
                  pl.BlockSpec((1, C), lambda n: (0, 0)),
                  pl.BlockSpec((3, 3, C, Cout), lambda n: (0, 0, 0, 0))],
        out_specs=(pl.BlockSpec((1, Ho, W, Cout), lambda n: (n, 0, 0, 0)),
                   pl.BlockSpec((1, 2, Cout), lambda n: (n, 0, 0))),
        compiler_params=_mosaic(("parallel",)),
    )(y1, a1.reshape(1, C).astype(jnp.float32),
      b1.reshape(1, C).astype(jnp.float32), w2)
    return y2, s


def scale_shift_add_relu(x, a, b, r, c, d):
    M, C = x.shape
    bpr = 2 * (C * x.dtype.itemsize + C * r.dtype.itemsize + C * 4)
    tm = _choose_tm(M, bpr)
    Mp = _round_up(M, tm)
    out = pl.pallas_call(
        _scale_shift_add_relu_kernel,
        out_shape=jax.ShapeDtypeStruct((Mp, C), jnp.float32),
        grid=(Mp // tm,),
        in_specs=[pl.BlockSpec((tm, C), lambda i: (i, 0)),
                  pl.BlockSpec((1, C), lambda i: (0, 0)),
                  pl.BlockSpec((1, C), lambda i: (0, 0)),
                  pl.BlockSpec((tm, C), lambda i: (i, 0)),
                  pl.BlockSpec((1, C), lambda i: (0, 0)),
                  pl.BlockSpec((1, C), lambda i: (0, 0))],
        out_specs=pl.BlockSpec((tm, C), lambda i: (i, 0)),
        compiler_params=_mosaic(("parallel",)),
    )(_pad_rows(x, Mp), a.reshape(1, C), b.reshape(1, C),
      _pad_rows(r, Mp), c.reshape(1, C), d.reshape(1, C))
    return out[:M]


# ----------------------------------------------------------------------------
# Forward pass
# ----------------------------------------------------------------------------
def _bn_scale_shift(mean, meansq, gamma, beta, eps=_EPS):
    """Training-mode BatchNorm (biased batch var) as per-channel (a, b).
    Note: var = E[y^2] - E[y]^2 in f32 (clamped); fine for conv outputs whose
    per-channel mean is O(std)."""
    var = jnp.maximum(meansq - mean * mean, 0.0)
    inv = gamma * lax.rsqrt(var + eps)
    return inv, beta - mean * inv


def bottleneck_forward(x_nchw, params, stride):
    x = jnp.transpose(x_nchw, (0, 2, 3, 1)).astype(jnp.float32)   # NHWC
    N, H, W, Cin = x.shape
    planes = params["conv1_w"].shape[0]
    exp_planes = params["conv3_w"].shape[0]

    # ---- conv1 (1x1) as bf16 matmul with fused BN batch-stat reduction ------
    x_flat = x.reshape(N * H * W, Cin)
    w1 = params["conv1_w"].reshape(planes, Cin).T.astype(jnp.bfloat16)
    y1, mu1, msq1 = matmul_stats(x_flat, w1)                 # y1 stored bf16

    # Mask folded into bn1: bn over (m * y1)  =>  scale stats by m / m^2.
    m = params["mask_w"]
    var1 = jnp.maximum(msq1 - mu1 * mu1, 0.0)
    inv1 = params["bn1_gamma"] * lax.rsqrt(var1 * m * m + _EPS)
    a1 = m * inv1
    b1 = params["bn1_beta"] - (mu1 * m) * inv1

    # ---- conv2 (3x3, stride, pad=1): direct conv, mask/bn1/relu fused in ----
    w2 = jnp.transpose(params["conv2_w"], (2, 3, 1, 0)).astype(jnp.bfloat16)
    y2f, s2 = conv3x3_stats(y1.reshape(N, H, W, planes), a1, b1, w2, stride)
    Ho = y2f.shape[1]
    Wo = (W - 1) // stride + 1
    M1 = N * Ho * Wo
    s2 = jnp.sum(s2, axis=0)
    mu2, msq2 = s2[0] / M1, s2[1] / M1
    if stride == 1:
        y2 = y2f.reshape(M1, planes)
    else:
        # TODO(synk): column decimation stays as one XLA slice over the bf16
        #             tensor; an in-kernel decimated (lane-dense) store would
        #             remove this pass as well.
        y2 = y2f[:, :, ::stride, :].reshape(M1, planes)
    a2, b2 = _bn_scale_shift(mu2, msq2, params["bn2_gamma"],
                             params["bn2_beta"])

    # ---- conv3 (1x1) with bn2+relu fused on its input, + fused stats --------
    w3 = params["conv3_w"].reshape(exp_planes, planes).T.astype(jnp.bfloat16)
    y3, mu3, msq3 = bnrelu_matmul_stats(y2, a2, b2, w3)      # y3 stored bf16
    a3, b3 = _bn_scale_shift(mu3, msq3, params["bn3_gamma"],
                             params["bn3_beta"])

    # ---- shortcut ------------------------------------------------------------
    if stride != 1 or Cin != exp_planes:
        xs = (x[:, ::stride, ::stride, :] if stride != 1 else x)
        xs = xs.reshape(M1, Cin)
        wsc = params["sc_conv_w"].reshape(exp_planes, Cin).T.astype(jnp.bfloat16)
        res, musc, msqsc = matmul_stats(xs, wsc)
        asc, bsc = _bn_scale_shift(musc, msqsc, params["bn_sc_gamma"],
                                   params["bn_sc_beta"])
    else:
        res = x.reshape(M1, exp_planes)
        asc = jnp.ones((exp_planes,), jnp.float32)
        bsc = jnp.zeros((exp_planes,), jnp.float32)

    # ---- bn3(out) + shortcut-BN + residual + relu, fused ---------------------
    out = scale_shift_add_relu(y3, a3, b3, res, asc, bsc)
    out = out.reshape(N, Ho, Wo, exp_planes)
    # TODO(synk): in an end-to-end NHWC pipeline this transpose (and the entry
    #             one) disappears; kept here to preserve the NCHW interface.
    return jnp.transpose(out, (0, 3, 1, 2))


# ----------------------------------------------------------------------------
# Pure-JAX reference (correctness check only)
# ----------------------------------------------------------------------------
def bottleneck_reference(x, params, stride):
    conv = functools.partial(
        lax.conv_general_dilated,
        dimension_numbers=("NCHW", "OIHW", "NCHW"),
        precision=lax.Precision.HIGHEST)

    def bn(z, g, b):
        mu = jnp.mean(z, axis=(0, 2, 3), keepdims=True)
        var = jnp.mean(jnp.square(z - mu), axis=(0, 2, 3), keepdims=True)
        return ((z - mu) * lax.rsqrt(var + _EPS) * g[None, :, None, None]
                + b[None, :, None, None])

    out = conv(x, params["conv1_w"], (1, 1), [(0, 0), (0, 0)])
    out = out * params["mask_w"][None, :, None, None]
    out = jax.nn.relu(bn(out, params["bn1_gamma"], params["bn1_beta"]))
    out = conv(out, params["conv2_w"], (stride, stride), [(1, 1), (1, 1)])
    out = jax.nn.relu(bn(out, params["bn2_gamma"], params["bn2_beta"]))
    out = conv(out, params["conv3_w"], (1, 1), [(0, 0), (0, 0)])
    out = bn(out, params["bn3_gamma"], params["bn3_beta"])
    if stride != 1 or x.shape[1] != params["conv3_w"].shape[0]:
        sc = conv(x, params["sc_conv_w"], (stride, stride), [(0, 0), (0, 0)])
        sc = bn(sc, params["bn_sc_gamma"], params["bn_sc_beta"])
    else:
        sc = x
    return jax.nn.relu(out + sc)


# ----------------------------------------------------------------------------
if __name__ == "__main__":
    key = jax.random.PRNGKey(0)
    in_planes, planes, stride = 16, 8, 1
    exp_planes = 4 * planes
    N, H, W = 2, 8, 8

    ks = jax.random.split(key, 6)
    params = {
        "conv1_w": 0.1 * jax.random.normal(ks[0], (planes, in_planes, 1, 1), jnp.float32),
        "conv2_w": 0.1 * jax.random.normal(ks[1], (planes, planes, 3, 3), jnp.float32),
        "conv3_w": 0.1 * jax.random.normal(ks[2], (exp_planes, planes, 1, 1), jnp.float32),
        "sc_conv_w": 0.1 * jax.random.normal(ks[3], (exp_planes, in_planes, 1, 1), jnp.float32),
        "mask_w": jax.random.normal(ks[4], (planes,), jnp.float32),  # torch.randn(planes)
        "bn1_gamma": jnp.ones((planes,), jnp.float32),
        "bn1_beta": jnp.zeros((planes,), jnp.float32),
        "bn2_gamma": jnp.ones((planes,), jnp.float32),
        "bn2_beta": jnp.zeros((planes,), jnp.float32),
        "bn3_gamma": jnp.ones((exp_planes,), jnp.float32),
        "bn3_beta": jnp.zeros((exp_planes,), jnp.float32),
        "bn_sc_gamma": jnp.ones((exp_planes,), jnp.float32),
        "bn_sc_beta": jnp.zeros((exp_planes,), jnp.float32),
    }
    x = jax.random.normal(ks[5], (N, in_planes, H, W), jnp.float32)

    fwd = jax.jit(functools.partial(bottleneck_forward, stride=stride))
    out = jax.block_until_ready(fwd(x, params))
    assert out.shape == (N, exp_planes, H // stride, W // stride), out.shape

    ref = jax.block_until_ready(bottleneck_reference(x, params, stride))
    # Intermediates are intentionally stored/fed to the MXU in bf16 (per the
    # perf review) with f32 accumulation, so the accuracy contract vs. the
    # HIGHEST-precision f32 reference is bf16-class.
    np.testing.assert_allclose(np.asarray(out), np.asarray(ref),
                               rtol=3e-2, atol=3e-2)
    print("KERNEL_OK")
</pallas_src>

<mosaic_0001>
module attributes {stable_mosaic.version = 11 : i64} {
  func.func @_mm_stats_kernel(%arg0: i32, %arg1: memref<64x16xf32, #tpu.memory_space<vmem>>, %arg2: memref<16x8xbf16, #tpu.memory_space<vmem>>, %arg3: memref<64x8xbf16, #tpu.memory_space<vmem>>, %arg4: memref<1x2x8xf32, #tpu.memory_space<vmem>>) attributes {dimension_semantics = [#tpu.dimension_semantics<parallel>], iteration_bounds = array<i64: 2>, scalar_prefetch = 0 : i64, scratch_operands = 0 : i64, tpu.core_type = #tpu.core_type<tc>, window_params = [{transform_indices = @transform_0, window_bounds = array<i64: 64, 16>}, {pipeline_mode = #tpu.pipeline_mode<synchronous>, transform_indices = @transform_1, window_bounds = array<i64: 16, 8>}, {transform_indices = @transform_2, window_bounds = array<i64: 64, 8>}, {transform_indices = @transform_3, window_bounds = array<i64: 1, 2, 8>}]} {
    %c0 = arith.constant 0 : index
    %c0_0 = arith.constant 0 : index
    %0 = vector.load %arg1[%c0, %c0_0] : memref<64x16xf32, #tpu.memory_space<vmem>>, vector<64x16xf32>
    %1 = arith.truncf %0 : vector<64x16xf32> to vector<64x16xbf16>
    %c0_1 = arith.constant 0 : index
    %c0_2 = arith.constant 0 : index
    %2 = vector.load %arg2[%c0_1, %c0_2] : memref<16x8xbf16, #tpu.memory_space<vmem>>, vector<16x8xbf16>
    %cst = arith.constant dense<0.000000e+00> : vector<64x8xf32>
    %3 = tpu.matmul %1, %2, %cst {dimension_numbers = #tpu.dot_dimension_numbers<[1], [0], [0], [1], [0, 0, 1, 1], [], []>} : vector<64x16xbf16>, vector<16x8xbf16>, vector<64x8xf32> -> vector<64x8xf32>
    %4 = arith.truncf %3 : vector<64x8xf32> to vector<64x8xbf16>
    %c0_3 = arith.constant 0 : index
    %c0_4 = arith.constant 0 : index
    %5 = vector.load %arg3[%c0_3, %c0_4] : memref<64x8xbf16, #tpu.memory_space<vmem>>, vector<64x8xbf16>
    tpu.vector_store %arg3[%c0_3, %c0_4], %4 {strides = array<i32>} : memref<64x8xbf16, #tpu.memory_space<vmem>>, vector<64x8xbf16>,
    %cst_5 = arith.constant dense<0.000000e+00> : vector<8xf32>
    %6 = vector.multi_reduction <add>, %3, %cst_5 [0] : vector<64x8xf32> to vector<8xf32>
    %7 = vector.shape_cast %6 : vector<8xf32> to vector<1x8xf32>
    %8 = arith.mulf %3, %3 : vector<64x8xf32>
    %cst_6 = arith.constant dense<0.000000e+00> : vector<8xf32>
    %9 = vector.multi_reduction <add>, %8, %cst_6 [0] : vector<64x8xf32> to vector<8xf32>
    %10 = vector.shape_cast %9 : vector<8xf32> to vector<1x8xf32>
    %11 = tpu.concatenate %7, %10 in 0 : vector<1x8xf32>, vector<1x8xf32> -> vector<2x8xf32>
    %c0_7 = arith.constant 0 : index
    %c0_8 = arith.constant 0 : index
    %c0_9 = arith.constant 0 : index
    %12 = vector.load %arg4[%c0_7, %c0_8, %c0_9] : memref<1x2x8xf32, #tpu.memory_space<vmem>>, vector<1x2x8xf32>
    %13 = vector.shape_cast %12 : vector<1x2x8xf32> to vector<2x8xf32>
    %14 = vector.shape_cast %11 : vector<2x8xf32> to vector<1x2x8xf32>
    tpu.vector_store %arg4[%c0_7, %c0_8, %c0_9], %14 {strides = array<i32>} : memref<1x2x8xf32, #tpu.memory_space<vmem>>, vector<1x2x8xf32>,
    return
  }
  func.func @transform_0(%arg0: i32) -> (i32, i32) {
    %c0_i32 = arith.constant 0 : i32
    %c0_i32_0 = arith.constant 0 : i32
    return %arg0, %c0_i32 : i32, i32
  }
  func.func @transform_1(%arg0: i32) -> (i32, i32) {
    %c0_i32 = arith.constant 0 : i32
    %c0_i32_0 = arith.constant 0 : i32
    %c0_i32_1 = arith.constant 0 : i32
    return %c0_i32, %c0_i32_0 : i32, i32
  }
  func.func @transform_2(%arg0: i32) -> (i32, i32) {
    %c0_i32 = arith.constant 0 : i32
    %c0_i32_0 = arith.constant 0 : i32
    return %arg0, %c0_i32 : i32, i32
  }
  func.func @transform_3(%arg0: i32) -> (i32, i32, i32) {
    %c0_i32 = arith.constant 0 : i32
    %c0_i32_0 = arith.constant 0 : i32
    %c0_i32_1 = arith.constant 0 : i32
    return %arg0, %c0_i32, %c0_i32_0 : i32, i32, i32
  }
}

module attributes {stable_mosaic.version = 11 : i64} {
  func.func @_conv3x3_kernel(%arg0: i32, %arg1: memref<1x8x8x8xbf16, #tpu.memory_space<vmem>>, %arg2: memref<1x8xf32, #tpu.memory_space<vmem>>, %arg3: memref<1x8xf32, #tpu.memory_space<vmem>>, %arg4: memref<3x3x8x8xbf16, #tpu.memory_space<vmem>>, %arg5: memref<1x8x8x8xbf16, #tpu.memory_space<vmem>>, %arg6: memref<1x2x8xf32, #tpu.memory_space<vmem>>) attributes {dimension_semantics = [#tpu.dimension_semantics<parallel>], iteration_bounds = array<i64: 2>, scalar_prefetch = 0 : i64, scratch_operands = 0 : i64, tpu.core_type = #tpu.core_type<tc>, window_params = [{transform_indices = @transform_0, window_bounds = array<i64: 1, 8, 8, 8>}, {pipeline_mode = #tpu.pipeline_mode<synchronous>, transform_indices = @transform_1, window_bounds = array<i64: 1, 8>}, {pipeline_mode = #tpu.pipeline_mode<synchronous>, transform_indices = @transform_2, window_bounds = array<i64: 1, 8>}, {pipeline_mode = #tpu.pipeline_mode<synchronous>, transform_indices = @transform_3, window_bounds = array<i64: 3, 3, 8, 8>}, {transform_indices = @transform_4, window_bounds = array<i64: 1, 8, 8, 8>}, {transform_indices = @transform_5, window_bounds = array<i64: 1, 2, 8>}]} {
    %c0 = arith.constant 0 : index
    %c0_0 = arith.constant 0 : index
    %0 = vector.load %arg2[%c0, %c0_0] : memref<1x8xf32, #tpu.memory_space<vmem>>, vector<1x8xf32>
    %1 = vector.shape_cast %0 : vector<1x8xf32> to vector<1x1x8xf32>
    %c0_1 = arith.constant 0 : index
    %c0_2 = arith.constant 0 : index
    %2 = vector.load %arg3[%c0_1, %c0_2] : memref<1x8xf32, #tpu.memory_space<vmem>>, vector<1x8xf32>
    %3 = vector.shape_cast %2 : vector<1x8xf32> to vector<1x1x8xf32>
    %c0_3 = arith.constant 0 : index
    %c0_4 = arith.constant 0 : index
    %c0_5 = arith.constant 0 : index
    %c0_6 = arith.constant 0 : index
    %4 = vector.load %arg1[%c0_3, %c0_4, %c0_5, %c0_6] : memref<1x8x8x8xbf16, #tpu.memory_space<vmem>>, vector<1x8x8x8xbf16>
    %5 = vector.shape_cast %4 : vector<1x8x8x8xbf16> to vector<8x8x8xbf16>
    %6 = arith.extf %5 : vector<8x8x8xbf16> to vector<8x8x8xf32>
    %7 = vector.broadcast %1 : vector<1x1x8xf32> to vector<8x8x8xf32>
    %8 = arith.mulf %6, %7 : vector<8x8x8xf32>
    %9 = vector.broadcast %3 : vector<1x1x8xf32> to vector<8x8x8xf32>
    %10 = arith.addf %8, %9 : vector<8x8x8xf32>
    %cst = arith.constant 0.000000e+00 : f32
    %11 = vector.broadcast %cst : f32 to vector<8x8x8xf32>
    %12 = arith.maximumf %10, %11 : vector<8x8x8xf32>
    %13 = arith.truncf %12 : vector<8x8x8xf32> to vector<8x8x8xbf16>
    %cst_7 = arith.constant 0.000000e+00 : bf16
    %14 = vector.broadcast %cst_7 : bf16 to vector<8x1x8xbf16>
    %15 = tpu.concatenate %14, %13, %14 in 1 : vector<8x1x8xbf16>, vector<8x8x8xbf16>, vector<8x1x8xbf16> -> vector<8x10x8xbf16>
    %cst_8 = arith.constant 0.000000e+00 : bf16
    %16 = vector.broadcast %cst_8 : bf16 to vector<1x10x8xbf16>
    %17 = tpu.concatenate %16, %15, %16 in 0 : vector<1x10x8xbf16>, vector<8x10x8xbf16>, vector<1x10x8xbf16> -> vector<10x10x8xbf16>
    %cst_9 = arith.constant 0.000000e+00 : f32
    %18 = vector.broadcast %cst_9 : f32 to vector<64x8xf32>
    %19 = vector.extract_strided_slice %17 {offsets = [0, 0, 0], sizes = [8, 8, 8], strides = [1, 1, 1]} : vector<10x10x8xbf16> to vector<8x8x8xbf16>
    %20 = vector.shape_cast %19 : vector<8x8x8xbf16> to vector<64x8xbf16>
    %c0_10 = arith.constant 0 : index
    %c0_11 = arith.constant 0 : index
    %c0_12 = arith.constant 0 : index
    %c0_13 = arith.constant 0 : index
    %21 = vector.load %arg4[%c0_10, %c0_11, %c0_12, %c0_13] : memref<3x3x8x8xbf16, #tpu.memory_space<vmem>>, vector<1x1x8x8xbf16>
    %22 = vector.shape_cast %21 : vector<1x1x8x8xbf16> to vector<8x8xbf16>
    %cst_14 = arith.constant dense<0.000000e+00> : vector<64x8xf32>
    %23 = tpu.matmul %20, %22, %cst_14 {dimension_numbers = #tpu.dot_dimension_numbers<[1], [0], [0], [1], [0, 0, 1, 1], [], []>} : vector<64x8xbf16>, vector<8x8xbf16>, vector<64x8xf32> -> vector<64x8xf32>
    %24 = arith.addf %18, %23 : vector<64x8xf32>
    %25 = vector.extract_strided_slice %17 {offsets = [0, 1, 0], sizes = [8, 8, 8], strides = [1, 1, 1]} : vector<10x10x8xbf16> to vector<8x8x8xbf16>
    %26 = vector.shape_cast %25 : vector<8x8x8xbf16> to vector<64x8xbf16>
    %c0_15 = arith.constant 0 : index
    %c1 = arith.constant 1 : index
    %c0_16 = arith.constant 0 : index
    %c0_17 = arith.constant 0 : index
    %27 = vector.load %arg4[%c0_15, %c1, %c0_16, %c0_17] : memref<3x3x8x8xbf16, #tpu.memory_space<vmem>>, vector<1x1x8x8xbf16>
    %28 = vector.shape_cast %27 : vector<1x1x8x8xbf16> to vector<8x8xbf16>
    %cst_18 = arith.constant dense<0.000000e+00> : vector<64x8xf32>
    %29 = tpu.matmul %26, %28, %cst_18 {dimension_numbers = #tpu.dot_dimension_numbers<[1], [0], [0], [1], [0, 0, 1, 1], [], []>} : vector<64x8xbf16>, vector<8x8xbf16>, vector<64x8xf32> -> vector<64x8xf32>
    %30 = arith.addf %24, %29 : vector<64x8xf32>
    %31 = vector.extract_strided_slice %17 {offsets = [0, 2, 0], sizes = [8, 8, 8], strides = [1, 1, 1]} : vector<10x10x8xbf16> to vector<8x8x8xbf16>
    %32 = vector.shape_cast %31 : vector<8x8x8xbf16> to vector<64x8xbf16>
    %c0_19 = arith.constant 0 : index
    %c2 = arith.constant 2 : index
    %c0_20 = arith.constant 0 : index
    %c0_21 = arith.constant 0 : index
    %33 = vector.load %arg4[%c0_19, %c2, %c0_20, %c0_21] : memref<3x3x8x8xbf16, #tpu.memory_space<vmem>>, vector<1x1x8x8xbf16>
    %34 = vector.shape_cast %33 : vector<1x1x8x8xbf16> to vector<8x8xbf16>
    %cst_22 = arith.constant dense<0.000000e+00> : vector<64x8xf32>
    %35 = tpu.matmul %32, %34, %cst_22 {dimension_numbers = #tpu.dot_dimension_numbers<[1], [0], [0], [1], [0, 0, 1, 1], [], []>} : vector<64x8xbf16>, vector<8x8xbf16>, vector<64x8xf32> -> vector<64x8xf32>
    %36 = arith.addf %30, %35 : vector<64x8xf32>
    %37 = vector.extract_strided_slice %17 {offsets = [1, 0, 0], sizes = [8, 8, 8], strides = [1, 1, 1]} : vector<10x10x8xbf16> to vector<8x8x8xbf16>
    %38 = vector.shape_cast %37 : vector<8x8x8xbf16> to vector<64x8xbf16>
    %c1_23 = arith.constant 1 : index
    %c0_24 = arith.constant 0 : index
    %c0_25 = arith.constant 0 : index
    %c0_26 = arith.constant 0 : index
    %39 = vector.load %arg4[%c1_23, %c0_24, %c0_25, %c0_26] : memref<3x3x8x8xbf16, #tpu.memory_space<vmem>>, vector<1x1x8x8xbf16>
    %40 = vector.shape_cast %39 : vector<1x1x8x8xbf16> to vector<8x8xbf16>
    %cst_27 = arith.constant dense<0.000000e+00> : vector<64x8xf32>
    %41 = tpu.matmul %38, %40, %cst_27 {dimension_numbers = #tpu.dot_dimension_numbers<[1], [0], [0], [1], [0, 0, 1, 1], [], []>} : vector<64x8xbf16>, vector<8x8xbf16>, vector<64x8xf32> -> vector<64x8xf32>
    %42 = arith.addf %36, %41 : vector<64x8xf32>
    %43 = vector.extract_strided_slice %17 {offsets = [1, 1, 0], sizes = [8, 8, 8], strides = [1, 1, 1]} : vector<10x10x8xbf16> to vector<8x8x8xbf16>
    %44 = vector.shape_cast %43 : vector<8x8x8xbf16> to vector<64x8xbf16>
    %c1_28 = arith.constant 1 : index
    %c1_29 = arith.constant 1 : index
    %c0_30 = arith.constant 0 : index
    %c0_31 = arith.constant 0 : index
    %45 = vector.load %arg4[%c1_28, %c1_29, %c0_30, %c0_31] : memref<3x3x8x8xbf16, #tpu.memory_space<vmem>>, vector<1x1x8x8xbf16>
    %46 = vector.shape_cast %45 : vector<1x1x8x8xbf16> to vector<8x8xbf16>
    %cst_32 = arith.constant dense<0.000000e+00> : vector<64x8xf32>
    %47 = tpu.matmul %44, %46, %cst_32 {dimension_numbers = #tpu.dot_dimension_numbers<[1], [0], [0], [1], [0, 0, 1, 1], [], []>} : vector<64x8xbf16>, vector<8x8xbf16>, vector<64x8xf32> -> vector<64x8xf32>
    %48 = arith.addf %42, %47 : vector<64x8xf32>
    %49 = vector.extract_strided_slice %17 {offsets = [1, 2, 0], sizes = [8, 8, 8], strides = [1, 1, 1]} : vector<10x10x8xbf16> to vector<8x8x8xbf16>
    %50 = vector.shape_cast %49 : vector<8x8x8xbf16> to vector<64x8xbf16>
    %c1_33 = arith.constant 1 : index
    %c2_34 = arith.constant 2 : index
    %c0_35 = arith.constant 0 : index
    %c0_36 = arith.constant 0 : index
    %51 = vector.load %arg4[%c1_33, %c2_34, %c0_35, %c0_36] : memref<3x3x8x8xbf16, #tpu.memory_space<vmem>>, vector<1x1x8x8xbf16>
    %52 = vector.shape_cast %51 : vector<1x1x8x8xbf16> to vector<8x8xbf16>
    %cst_37 = arith.constant dense<0.000000e+00> : vector<64x8xf32>
    %53 = tpu.matmul %50, %52, %cst_37 {dimension_numbers = #tpu.dot_dimension_numbers<[1], [0], [0], [1], [0, 0, 1, 1], [], []>} : vector<64x8xbf16>, vector<8x8xbf16>, vector<64x8xf32> -> vector<64x8xf32>
    %54 = arith.addf %48, %53 : vector<64x8xf32>
    %55 = vector.extract_strided_slice %17 {offsets = [2, 0, 0], sizes = [8, 8, 8], strides = [1, 1, 1]} : vector<10x10x8xbf16> to vector<8x8x8xbf16>
    %56 = vector.shape_cast %55 : vector<8x8x8xbf16> to vector<64x8xbf16>
    %c2_38 = arith.constant 2 : index
    %c0_39 = arith.constant 0 : index
    %c0_40 = arith.constant 0 : index
    %c0_41 = arith.constant 0 : index
    %57 = vector.load %arg4[%c2_38, %c0_39, %c0_40, %c0_41] : memref<3x3x8x8xbf16, #tpu.memory_space<vmem>>, vector<1x1x8x8xbf16>
    %58 = vector.shape_cast %57 : vector<1x1x8x8xbf16> to vector<8x8xbf16>
    %cst_42 = arith.constant dense<0.000000e+00> : vector<64x8xf32>
    %59 = tpu.matmul %56, %58, %cst_42 {dimension_numbers = #tpu.dot_dimension_numbers<[1], [0], [0], [1], [0, 0, 1, 1], [], []>} : vector<64x8xbf16>, vector<8x8xbf16>, vector<64x8xf32> -> vector<64x8xf32>
    %60 = arith.addf %54, %59 : vector<64x8xf32>
    %61 = vector.extract_strided_slice %17 {offsets = [2, 1, 0], sizes = [8, 8, 8], strides = [1, 1, 1]} : vector<10x10x8xbf16> to vector<8x8x8xbf16>
    %62 = vector.shape_cast %61 : vector<8x8x8xbf16> to vector<64x8xbf16>
    %c2_43 = arith.constant 2 : index
    %c1_44 = arith.constant 1 : index
    %c0_45 = arith.constant 0 : index
    %c0_46 = arith.constant 0 : index
    %63 = vector.load %arg4[%c2_43, %c1_44, %c0_45, %c0_46] : memref<3x3x8x8xbf16, #tpu.memory_space<vmem>>, vector<1x1x8x8xbf16>
    %64 = vector.shape_cast %63 : vector<1x1x8x8xbf16> to vector<8x8xbf16>
    %cst_47 = arith.constant dense<0.000000e+00> : vector<64x8xf32>
    %65 = tpu.matmul %62, %64, %cst_47 {dimension_numbers = #tpu.dot_dimension_numbers<[1], [0], [0], [1], [0, 0, 1, 1], [], []>} : vector<64x8xbf16>, vector<8x8xbf16>, vector<64x8xf32> -> vector<64x8xf32>
    %66 = arith.addf %60, %65 : vector<64x8xf32>
    %67 = vector.extract_strided_slice %17 {offsets = [2, 2, 0], sizes = [8, 8, 8], strides = [1, 1, 1]} : vector<10x10x8xbf16> to vector<8x8x8xbf16>
    %68 = vector.shape_cast %67 : vector<8x8x8xbf16> to vector<64x8xbf16>
    %c2_48 = arith.constant 2 : index
    %c2_49 = arith.constant 2 : index
    %c0_50 = arith.constant 0 : index
    %c0_51 = arith.constant 0 : index
    %69 = vector.load %arg4[%c2_48, %c2_49, %c0_50, %c0_51] : memref<3x3x8x8xbf16, #tpu.memory_space<vmem>>, vector<1x1x8x8xbf16>
    %70 = vector.shape_cast %69 : vector<1x1x8x8xbf16> to vector<8x8xbf16>
    %cst_52 = arith.constant dense<0.000000e+00> : vector<64x8xf32>
    %71 = tpu.matmul %68, %70, %cst_52 {dimension_numbers = #tpu.dot_dimension_numbers<[1], [0], [0], [1], [0, 0, 1, 1], [], []>} : vector<64x8xbf16>, vector<8x8xbf16>, vector<64x8xf32> -> vector<64x8xf32>
    %72 = arith.addf %66, %71 : vector<64x8xf32>
    %73 = vector.shape_cast %72 : vector<64x8xf32> to vector<8x8x8xf32>
    %74 = arith.truncf %73 : vector<8x8x8xf32> to vector<8x8x8xbf16>
    %c0_53 = arith.constant 0 : index
    %c0_54 = arith.constant 0 : index
    %c0_55 = arith.constant 0 : index
    %c0_56 = arith.constant 0 : index
    %75 = vector.load %arg5[%c0_53, %c0_54, %c0_55, %c0_56] : memref<1x8x8x8xbf16, #tpu.memory_space<vmem>>, vector<1x8x8x8xbf16>
    %76 = vector.shape_cast %75 : vector<1x8x8x8xbf16> to vector<8x8x8xbf16>
    %77 = vector.shape_cast %74 : vector<8x8x8xbf16> to vector<1x8x8x8xbf16>
    tpu.vector_store %arg5[%c0_53, %c0_54, %c0_55, %c0_56], %77 {strides = array<i32>} : memref<1x8x8x8xbf16, #tpu.memory_space<vmem>>, vector<1x8x8x8xbf16>,
    %cst_57 = arith.constant dense<0.000000e+00> : vector<8xf32>
    %78 = vector.multi_reduction <add>, %72, %cst_57 [0] : vector<64x8xf32> to vector<8xf32>
    %79 = vector.shape_cast %78 : vector<8xf32> to vector<1x8xf32>
    %80 = arith.mulf %72, %72 : vector<64x8xf32>
    %cst_58 = arith.constant dense<0.000000e+00> : vector<8xf32>
    %81 = vector.multi_reduction <add>, %80, %cst_58 [0] : vector<64x8xf32> to vector<8xf32>
    %82 = vector.shape_cast %81 : vector<8xf32> to vector<1x8xf32>
    %83 = tpu.concatenate %79, %82 in 0 : vector<1x8xf32>, vector<1x8xf32> -> vector<2x8xf32>
    %c0_59 = arith.constant 0 : index
    %c0_60 = arith.constant 0 : index
    %c0_61 = arith.constant 0 : index
    %84 = vector.load %arg6[%c0_59, %c0_60, %c0_61] : memref<1x2x8xf32, #tpu.memory_space<vmem>>, vector<1x2x8xf32>
    %85 = vector.shape_cast %84 : vector<1x2x8xf32> to vector<2x8xf32>
    %86 = vector.shape_cast %83 : vector<2x8xf32> to vector<1x2x8xf32>
    tpu.vector_store %arg6[%c0_59, %c0_60, %c0_61], %86 {strides = array<i32>} : memref<1x2x8xf32, #tpu.memory_space<vmem>>, vector<1x2x8xf32>,
    return
  }
  func.func @transform_0(%arg0: i32) -> (i32, i32, i32, i32) {
    %c0_i32 = arith.constant 0 : i32
    %c0_i32_0 = arith.constant 0 : i32
    %c0_i32_1 = arith.constant 0 : i32
    %c0_i32_2 = arith.constant 0 : i32
    return %arg0, %c0_i32, %c0_i32_0, %c0_i32_1 : i32, i32, i32, i32
  }
  func.func @transform_1(%arg0: i32) -> (i32, i32) {
    %c0_i32 = arith.constant 0 : i32
    %c0_i32_0 = arith.constant 0 : i32
    %c0_i32_1 = arith.constant 0 : i32
    return %c0_i32, %c0_i32_0 : i32, i32
  }
  func.func @transform_2(%arg0: i32) -> (i32, i32) {
    %c0_i32 = arith.constant 0 : i32
    %c0_i32_0 = arith.constant 0 : i32
    %c0_i32_1 = arith.constant 0 : i32
    return %c0_i32, %c0_i32_0 : i32, i32
  }
  func.func @transform_3(%arg0: i32) -> (i32, i32, i32, i32) {
    %c0_i32 = arith.constant 0 : i32
    %c0_i32_0 = arith.constant 0 : i32
    %c0_i32_1 = arith.constant 0 : i32
    %c0_i32_2 = arith.constant 0 : i32
    %c0_i32_3 = arith.constant 0 : i32
    return %c0_i32, %c0_i32_0, %c0_i32_1, %c0_i32_2 : i32, i32, i32, i32
  }
  func.func @transform_4(%arg0: i32) -> (i32, i32, i32, i32) {
    %c0_i32 = arith.constant 0 : i32
    %c0_i32_0 = arith.constant 0 : i32
    %c0_i32_1 = arith.constant 0 : i32
    %c0_i32_2 = arith.constant 0 : i32
    return %arg0, %c0_i32, %c0_i32_0, %c0_i32_1 : i32, i32, i32, i32
  }
  func.func @transform_5(%arg0: i32) -> (i32, i32, i32) {
    %c0_i32 = arith.constant 0 : i32
    %c0_i32_0 = arith.constant 0 : i32
    %c0_i32_1 = arith.constant 0 : i32
    return %arg0, %c0_i32, %c0_i32_0 : i32, i32, i32
  }
}

module attributes {stable_mosaic.version = 11 : i64} {
  func.func @_mm_stats_kernel(%arg0: i32, %arg1: memref<64x16xf32, #tpu.memory_space<vmem>>, %arg2: memref<16x32xbf16, #tpu.memory_space<vmem>>, %arg3: memref<64x32xbf16, #tpu.memory_space<vmem>>, %arg4: memref<1x2x32xf32, #tpu.memory_space<vmem>>) attributes {dimension_semantics = [#tpu.dimension_semantics<parallel>], iteration_bounds = array<i64: 2>, scalar_prefetch = 0 : i64, scratch_operands = 0 : i64, tpu.core_type = #tpu.core_type<tc>, window_params = [{transform_indices = @transform_0, window_bounds = array<i64: 64, 16>}, {pipeline_mode = #tpu.pipeline_mode<synchronous>, transform_indices = @transform_1, window_bounds = array<i64: 16, 32>}, {transform_indices = @transform_2, window_bounds = array<i64: 64, 32>}, {transform_indices = @transform_3, window_bounds = array<i64: 1, 2, 32>}]} {
    %c0 = arith.constant 0 : index
    %c0_0 = arith.constant 0 : index
    %0 = vector.load %arg1[%c0, %c0_0] : memref<64x16xf32, #tpu.memory_space<vmem>>, vector<64x16xf32>
    %1 = arith.truncf %0 : vector<64x16xf32> to vector<64x16xbf16>
    %c0_1 = arith.constant 0 : index
    %c0_2 = arith.constant 0 : index
    %2 = vector.load %arg2[%c0_1, %c0_2] : memref<16x32xbf16, #tpu.memory_space<vmem>>, vector<16x32xbf16>
    %cst = arith.constant dense<0.000000e+00> : vector<64x32xf32>
    %3 = tpu.matmul %1, %2, %cst {dimension_numbers = #tpu.dot_dimension_numbers<[1], [0], [0], [1], [0, 0, 1, 1], [], []>} : vector<64x16xbf16>, vector<16x32xbf16>, vector<64x32xf32> -> vector<64x32xf32>
    %4 = arith.truncf %3 : vector<64x32xf32> to vector<64x32xbf16>
    %c0_3 = arith.constant 0 : index
    %c0_4 = arith.constant 0 : index
    %5 = vector.load %arg3[%c0_3, %c0_4] : memref<64x32xbf16, #tpu.memory_space<vmem>>, vector<64x32xbf16>
    tpu.vector_store %arg3[%c0_3, %c0_4], %4 {strides = array<i32>} : memref<64x32xbf16, #tpu.memory_space<vmem>>, vector<64x32xbf16>,
    %cst_5 = arith.constant dense<0.000000e+00> : vector<32xf32>
    %6 = vector.multi_reduction <add>, %3, %cst_5 [0] : vector<64x32xf32> to vector<32xf32>
    %7 = vector.shape_cast %6 : vector<32xf32> to vector<1x32xf32>
    %8 = arith.mulf %3, %3 : vector<64x32xf32>
    %cst_6 = arith.constant dense<0.000000e+00> : vector<32xf32>
    %9 = vector.multi_reduction <add>, %8, %cst_6 [0] : vector<64x32xf32> to vector<32xf32>
    %10 = vector.shape_cast %9 : vector<32xf32> to vector<1x32xf32>
    %11 = tpu.concatenate %7, %10 in 0 : vector<1x32xf32>, vector<1x32xf32> -> vector<2x32xf32>
    %c0_7 = arith.constant 0 : index
    %c0_8 = arith.constant 0 : index
    %c0_9 = arith.constant 0 : index
    %12 = vector.load %arg4[%c0_7, %c0_8, %c0_9] : memref<1x2x32xf32, #tpu.memory_space<vmem>>, vector<1x2x32xf32>
    %13 = vector.shape_cast %12 : vector<1x2x32xf32> to vector<2x32xf32>
    %14 = vector.shape_cast %11 : vector<2x32xf32> to vector<1x2x32xf32>
    tpu.vector_store %arg4[%c0_7, %c0_8, %c0_9], %14 {strides = array<i32>} : memref<1x2x32xf32, #tpu.memory_space<vmem>>, vector<1x2x32xf32>,
    return
  }
  func.func @transform_0(%arg0: i32) -> (i32, i32) {
    %c0_i32 = arith.constant 0 : i32
    %c0_i32_0 = arith.constant 0 : i32
    return %arg0, %c0_i32 : i32, i32
  }
  func.func @transform_1(%arg0: i32) -> (i32, i32) {
    %c0_i32 = arith.constant 0 : i32
    %c0_i32_0 = arith.constant 0 : i32
    %c0_i32_1 = arith.constant 0 : i32
    return %c0_i32, %c0_i32_0 : i32, i32
  }
  func.func @transform_2(%arg0: i32) -> (i32, i32) {
    %c0_i32 = arith.constant 0 : i32
    %c0_i32_0 = arith.constant 0 : i32
    return %arg0, %c0_i32 : i32, i32
  }
  func.func @transform_3(%arg0: i32) -> (i32, i32, i32) {
    %c0_i32 = arith.constant 0 : i32
    %c0_i32_0 = arith.constant 0 : i32
    %c0_i32_1 = arith.constant 0 : i32
    return %arg0, %c0_i32, %c0_i32_0 : i32, i32, i32
  }
}

module attributes {stable_mosaic.version = 11 : i64} {
  func.func @_bnrelu_mm_stats_kernel(%arg0: i32, %arg1: memref<64x8xbf16, #tpu.memory_space<vmem>>, %arg2: memref<1x8xf32, #tpu.memory_space<vmem>>, %arg3: memref<1x8xf32, #tpu.memory_space<vmem>>, %arg4: memref<8x32xbf16, #tpu.memory_space<vmem>>, %arg5: memref<64x32xbf16, #tpu.memory_space<vmem>>, %arg6: memref<1x2x32xf32, #tpu.memory_space<vmem>>) attributes {dimension_semantics = [#tpu.dimension_semantics<parallel>], iteration_bounds = array<i64: 2>, scalar_prefetch = 0 : i64, scratch_operands = 0 : i64, tpu.core_type = #tpu.core_type<tc>, window_params = [{transform_indices = @transform_0, window_bounds = array<i64: 64, 8>}, {pipeline_mode = #tpu.pipeline_mode<synchronous>, transform_indices = @transform_1, window_bounds = array<i64: 1, 8>}, {pipeline_mode = #tpu.pipeline_mode<synchronous>, transform_indices = @transform_2, window_bounds = array<i64: 1, 8>}, {pipeline_mode = #tpu.pipeline_mode<synchronous>, transform_indices = @transform_3, window_bounds = array<i64: 8, 32>}, {transform_indices = @transform_4, window_bounds = array<i64: 64, 32>}, {transform_indices = @transform_5, window_bounds = array<i64: 1, 2, 32>}]} {
    %c0 = arith.constant 0 : index
    %c0_0 = arith.constant 0 : index
    %0 = vector.load %arg1[%c0, %c0_0] : memref<64x8xbf16, #tpu.memory_space<vmem>>, vector<64x8xbf16>
    %1 = arith.extf %0 : vector<64x8xbf16> to vector<64x8xf32>
    %c0_1 = arith.constant 0 : index
    %c0_2 = arith.constant 0 : index
    %2 = vector.load %arg2[%c0_1, %c0_2] : memref<1x8xf32, #tpu.memory_space<vmem>>, vector<1x8xf32>
    %3 = vector.broadcast %2 : vector<1x8xf32> to vector<64x8xf32>
    %4 = arith.mulf %1, %3 : vector<64x8xf32>
    %c0_3 = arith.constant 0 : index
    %c0_4 = arith.constant 0 : index
    %5 = vector.load %arg3[%c0_3, %c0_4] : memref<1x8xf32, #tpu.memory_space<vmem>>, vector<1x8xf32>
    %6 = vector.broadcast %5 : vector<1x8xf32> to vector<64x8xf32>
    %7 = arith.addf %4, %6 : vector<64x8xf32>
    %cst = arith.constant 0.000000e+00 : f32
    %8 = vector.broadcast %cst : f32 to vector<64x8xf32>
    %9 = arith.maximumf %7, %8 : vector<64x8xf32>
    %10 = arith.truncf %9 : vector<64x8xf32> to vector<64x8xbf16>
    %c0_5 = arith.constant 0 : index
    %c0_6 = arith.constant 0 : index
    %11 = vector.load %arg4[%c0_5, %c0_6] : memref<8x32xbf16, #tpu.memory_space<vmem>>, vector<8x32xbf16>
    %cst_7 = arith.constant dense<0.000000e+00> : vector<64x32xf32>
    %12 = tpu.matmul %10, %11, %cst_7 {dimension_numbers = #tpu.dot_dimension_numbers<[1], [0], [0], [1], [0, 0, 1, 1], [], []>} : vector<64x8xbf16>, vector<8x32xbf16>, vector<64x32xf32> -> vector<64x32xf32>
    %13 = arith.truncf %12 : vector<64x32xf32> to vector<64x32xbf16>
    %c0_8 = arith.constant 0 : index
    %c0_9 = arith.constant 0 : index
    %14 = vector.load %arg5[%c0_8, %c0_9] : memref<64x32xbf16, #tpu.memory_space<vmem>>, vector<64x32xbf16>
    tpu.vector_store %arg5[%c0_8, %c0_9], %13 {strides = array<i32>} : memref<64x32xbf16, #tpu.memory_space<vmem>>, vector<64x32xbf16>,
    %cst_10 = arith.constant dense<0.000000e+00> : vector<32xf32>
    %15 = vector.multi_reduction <add>, %12, %cst_10 [0] : vector<64x32xf32> to vector<32xf32>
    %16 = vector.shape_cast %15 : vector<32xf32> to vector<1x32xf32>
    %17 = arith.mulf %12, %12 : vector<64x32xf32>
    %cst_11 = arith.constant dense<0.000000e+00> : vector<32xf32>
    %18 = vector.multi_reduction <add>, %17, %cst_11 [0] : vector<64x32xf32> to vector<32xf32>
    %19 = vector.shape_cast %18 : vector<32xf32> to vector<1x32xf32>
    %20 = tpu.concatenate %16, %19 in 0 : vector<1x32xf32>, vector<1x32xf32> -> vector<2x32xf32>
    %c0_12 = arith.constant 0 : index
    %c0_13 = arith.constant 0 : index
    %c0_14 = arith.constant 0 : index
    %21 = vector.load %arg6[%c0_12, %c0_13, %c0_14] : memref<1x2x32xf32, #tpu.memory_space<vmem>>, vector<1x2x32xf32>
    %22 = vector.shape_cast %21 : vector<1x2x32xf32> to vector<2x32xf32>
    %23 = vector.shape_cast %20 : vector<2x32xf32> to vector<1x2x32xf32>
    tpu.vector_store %arg6[%c0_12, %c0_13, %c0_14], %23 {strides = array<i32>} : memref<1x2x32xf32, #tpu.memory_space<vmem>>, vector<1x2x32xf32>,
    return
  }
  func.func @transform_0(%arg0: i32) -> (i32, i32) {
    %c0_i32 = arith.constant 0 : i32
    %c0_i32_0 = arith.constant 0 : i32
    return %arg0, %c0_i32 : i32, i32
  }
  func.func @transform_1(%arg0: i32) -> (i32, i32) {
    %c0_i32 = arith.constant 0 : i32
    %c0_i32_0 = arith.constant 0 : i32
    %c0_i32_1 = arith.constant 0 : i32
    return %c0_i32, %c0_i32_0 : i32, i32
  }
  func.func @transform_2(%arg0: i32) -> (i32, i32) {
    %c0_i32 = arith.constant 0 : i32
    %c0_i32_0 = arith.constant 0 : i32
    %c0_i32_1 = arith.constant 0 : i32
    return %c0_i32, %c0_i32_0 : i32, i32
  }
  func.func @transform_3(%arg0: i32) -> (i32, i32) {
    %c0_i32 = arith.constant 0 : i32
    %c0_i32_0 = arith.constant 0 : i32
    %c0_i32_1 = arith.constant 0 : i32
    return %c0_i32, %c0_i32_0 : i32, i32
  }
  func.func @transform_4(%arg0: i32) -> (i32, i32) {
    %c0_i32 = arith.constant 0 : i32
    %c0_i32_0 = arith.constant 0 : i32
    return %arg0, %c0_i32 : i32, i32
  }
  func.func @transform_5(%arg0: i32) -> (i32, i32, i32) {
    %c0_i32 = arith.constant 0 : i32
    %c0_i32_0 = arith.constant 0 : i32
    %c0_i32_1 = arith.constant 0 : i32
    return %arg0, %c0_i32, %c0_i32_0 : i32, i32, i32
  }
}

module attributes {stable_mosaic.version = 11 : i64} {
  func.func @_scale_shift_add_relu_kernel(%arg0: i32, %arg1: memref<64x32xbf16, #tpu.memory_space<vmem>>, %arg2: memref<1x32xf32, #tpu.memory_space<vmem>>, %arg3: memref<1x32xf32, #tpu.memory_space<vmem>>, %arg4: memref<64x32xbf16, #tpu.memory_space<vmem>>, %arg5: memref<1x32xf32, #tpu.memory_space<vmem>>, %arg6: memref<1x32xf32, #tpu.memory_space<vmem>>, %arg7: memref<64x32xf32, #tpu.memory_space<vmem>>) attributes {dimension_semantics = [#tpu.dimension_semantics<parallel>], iteration_bounds = array<i64: 2>, scalar_prefetch = 0 : i64, scratch_operands = 0 : i64, tpu.core_type = #tpu.core_type<tc>, window_params = [{transform_indices = @transform_0, window_bounds = array<i64: 64, 32>}, {pipeline_mode = #tpu.pipeline_mode<synchronous>, transform_indices = @transform_1, window_bounds = array<i64: 1, 32>}, {pipeline_mode = #tpu.pipeline_mode<synchronous>, transform_indices = @transform_2, window_bounds = array<i64: 1, 32>}, {transform_indices = @transform_3, window_bounds = array<i64: 64, 32>}, {pipeline_mode = #tpu.pipeline_mode<synchronous>, transform_indices = @transform_4, window_bounds = array<i64: 1, 32>}, {pipeline_mode = #tpu.pipeline_mode<synchronous>, transform_indices = @transform_5, window_bounds = array<i64: 1, 32>}, {transform_indices = @transform_6, window_bounds = array<i64: 64, 32>}]} {
    %c0 = arith.constant 0 : index
    %c0_0 = arith.constant 0 : index
    %0 = vector.load %arg1[%c0, %c0_0] : memref<64x32xbf16, #tpu.memory_space<vmem>>, vector<64x32xbf16>
    %1 = arith.extf %0 : vector<64x32xbf16> to vector<64x32xf32>
    %c0_1 = arith.constant 0 : index
    %c0_2 = arith.constant 0 : index
    %2 = vector.load %arg2[%c0_1, %c0_2] : memref<1x32xf32, #tpu.memory_space<vmem>>, vector<1x32xf32>
    %3 = vector.broadcast %2 : vector<1x32xf32> to vector<64x32xf32>
    %4 = arith.mulf %1, %3 : vector<64x32xf32>
    %c0_3 = arith.constant 0 : index
    %c0_4 = arith.constant 0 : index
    %5 = vector.load %arg3[%c0_3, %c0_4] : memref<1x32xf32, #tpu.memory_space<vmem>>, vector<1x32xf32>
    %6 = vector.broadcast %5 : vector<1x32xf32> to vector<64x32xf32>
    %7 = arith.addf %4, %6 : vector<64x32xf32>
    %c0_5 = arith.constant 0 : index
    %c0_6 = arith.constant 0 : index
    %8 = vector.load %arg4[%c0_5, %c0_6] : memref<64x32xbf16, #tpu.memory_space<vmem>>, vector<64x32xbf16>
    %9 = arith.extf %8 : vector<64x32xbf16> to vector<64x32xf32>
    %c0_7 = arith.constant 0 : index
    %c0_8 = arith.constant 0 : index
    %10 = vector.load %arg5[%c0_7, %c0_8] : memref<1x32xf32, #tpu.memory_space<vmem>>, vector<1x32xf32>
    %11 = vector.broadcast %10 : vector<1x32xf32> to vector<64x32xf32>
    %12 = arith.mulf %9, %11 : vector<64x32xf32>
    %13 = arith.addf %7, %12 : vector<64x32xf32>
    %c0_9 = arith.constant 0 : index
    %c0_10 = arith.constant 0 : index
    %14 = vector.load %arg6[%c0_9, %c0_10] : memref<1x32xf32, #tpu.memory_space<vmem>>, vector<1x32xf32>
    %15 = vector.broadcast %14 : vector<1x32xf32> to vector<64x32xf32>
    %16 = arith.addf %13, %15 : vector<64x32xf32>
    %cst = arith.constant 0.000000e+00 : f32
    %17 = vector.broadcast %cst : f32 to vector<64x32xf32>
    %18 = arith.maximumf %16, %17 : vector<64x32xf32>
    %c0_11 = arith.constant 0 : index
    %c0_12 = arith.constant 0 : index
    %19 = vector.load %arg7[%c0_11, %c0_12] : memref<64x32xf32, #tpu.memory_space<vmem>>, vector<64x32xf32>
    tpu.vector_store %arg7[%c0_11, %c0_12], %18 {strides = array<i32>} : memref<64x32xf32, #tpu.memory_space<vmem>>, vector<64x32xf32>,
    return
  }
  func.func @transform_0(%arg0: i32) -> (i32, i32) {
    %c0_i32 = arith.constant 0 : i32
    %c0_i32_0 = arith.constant 0 : i32
    return %arg0, %c0_i32 : i32, i32
  }
  func.func @transform_1(%arg0: i32) -> (i32, i32) {
    %c0_i32 = arith.constant 0 : i32
    %c0_i32_0 = arith.constant 0 : i32
    %c0_i32_1 = arith.constant 0 : i32
    return %c0_i32, %c0_i32_0 : i32, i32
  }
  func.func @transform_2(%arg0: i32) -> (i32, i32) {
    %c0_i32 = arith.constant 0 : i32
    %c0_i32_0 = arith.constant 0 : i32
    %c0_i32_1 = arith.constant 0 : i32
    return %c0_i32, %c0_i32_0 : i32, i32
  }
  func.func @transform_3(%arg0: i32) -> (i32, i32) {
    %c0_i32 = arith.constant 0 : i32
    %c0_i32_0 = arith.constant 0 : i32
    return %arg0, %c0_i32 : i32, i32
  }
  func.func @transform_4(%arg0: i32) -> (i32, i32) {
    %c0_i32 = arith.constant 0 : i32
    %c0_i32_0 = arith.constant 0 : i32
    %c0_i32_1 = arith.constant 0 : i32
    return %c0_i32, %c0_i32_0 : i32, i32
  }
  func.func @transform_5(%arg0: i32) -> (i32, i32) {
    %c0_i32 = arith.constant 0 : i32
    %c0_i32_0 = arith.constant 0 : i32
    %c0_i32_1 = arith.constant 0 : i32
    return %c0_i32, %c0_i32_0 : i32, i32
  }
  func.func @transform_6(%arg0: i32) -> (i32, i32) {
    %c0_i32 = arith.constant 0 : i32
    %c0_i32_0 = arith.constant 0 : i32
    return %arg0, %c0_i32 : i32, i32
  }
}

</mosaic_0001>

<llo_original>
// kernel: bottleneck_forward.5
$region0: #{bottleneck_forward.5}
  #allocation0 [shape = 'u32[]', space=smem, size = 0x4, offset = 0x4, fixed_abs, tag = 'smem constant byte address 0x4 - core index']
  #allocation1 [shape = 'u32[144,128]{1,0:T(1,128)}', space=vmem, size = 0x12000, scoped, tag = 'internal scratch']
  %s0 = inlined_call_operand.vmem [shape: f32[128,16], index: 0, kind: input, shape index: {}]
  %s1 = inlined_call_operand.vmem [shape: bf16[16,8], index: 1, kind: input, shape index: {}]
  %s2 = inlined_call_operand.vmem [shape: bf16[128,8], index: 2, kind: output, shape index: {0}]
  %s3 = inlined_call_operand.vmem [shape: f32[2,2,8], index: 3, kind: output, shape index: {1}]
  %4 = xla_tuple %s2, %s3
  %s5 = sld [smem:[#allocation0]]
  $region49: #{bottleneck_forward.5} parent=0
    _
  %s7 = ssub.s32 1, %s5
  %s8 = scalar_select 0, %s7, %s5
  loop: start=0, step=1, limit=4
  $region2: #{bottleneck_forward.5} parent=0 // loop_pre_header
    _
  $region3: #{bottleneck_forward.5} parent=0 // loop_header
    %s10 = sphi 0, %s14
    %p11 = scmp.ge.s32.totalorder %s10, 4
    %s20 = sphi 0, %s22
    %s23 = sphi 0, %s20
    %s24 = sphi 0, %s23
    %s40 = sphi 0, %s24
    %s44 = sphi 0, %s44
    %s46 = sphi 0, %s44
    %s47 = sphi 0, %s46
    %s61 = sphi 0, %s47
    %s67 = sphi 0, %s69
    %s70 = sphi 0, %s67
    %s71 = sphi 0, %s70
    %s87 = sphi 0, %s71
    %s93 = sphi 0, %s95
    %s96 = sphi 0, %s93
    %s97 = sphi 0, %s96
    %s113 = sphi 0, %s97
  $region4: #{bottleneck_forward.5} parent=0 // loop_header_branch
    %13 = sbr.rel (%p11) target = $region8
  $region5: #{bottleneck_forward.5} parent=0 // loop_body
    %s15 = ssub.s32 %s10, 1
    %s16 = ssub.s32 %s10, 2
    %s17 = sadd.s32 %s10, 1
    %s18 = ssub.s32 %s10, %s17
    %p19 = scmp.eq.s32.totalorder %s18, 0
    %s21 = sadd.s32 %s20, 1
    %s22 = scalar_select %p19, %s20, %s21
    %p25 = pneg %p19
    %p26 = scmp.eq.s32.totalorder %s10, 1
    %p27 = por %p25, %p26
    %p28 = scmp.ne.s32.totalorder %s20, %s23
    %p29 = scmp.eq.s32.totalorder %s10, 0
    %p30 = por %p28, %p29
    %p31 = scmp.ne.s32.totalorder %s20, %s23
    %p32 = scmp.eq.s32.totalorder %s15, 1
    %p33 = por %p31, %p32
    %p34 = scmp.ne.s32.totalorder %s23, %s24
    %p35 = scmp.eq.s32.totalorder %s15, 0
    %p36 = por %p34, %p35
    %p37 = scmp.ne.s32.totalorder %s23, %s24
    %p38 = scmp.eq.s32.totalorder %s16, 1
    %p39 = por %p37, %p38
    %p41 = scmp.ne.s32.totalorder %s24, %s40
    %p42 = scmp.eq.s32.totalorder %s16, 0
    %p43 = por %p41, %p42
    %s45 = sadd.s32 %s44, 1
    %p48 = scmp.eq.s32.totalorder %s10, 1
    %p49 = scmp.ne.s32.totalorder %s44, %s46
    %p50 = scmp.eq.s32.totalorder %s10, 0
    %p51 = por %p49, %p50
    %p52 = scmp.ne.s32.totalorder %s44, %s46
    %p53 = scmp.eq.s32.totalorder %s15, 1
    %p54 = por %p52, %p53
    %p55 = scmp.ne.s32.totalorder %s46, %s47
    %p56 = scmp.eq.s32.totalorder %s15, 0
    %p57 = por %p55, %p56
    %p58 = scmp.ne.s32.totalorder %s46, %s47
    %p59 = scmp.eq.s32.totalorder %s16, 1
    %p60 = por %p58, %p59
    %p62 = scmp.ne.s32.totalorder %s47, %s61
    %p63 = scmp.eq.s32.totalorder %s16, 0
    %p64 = por %p62, %p63
    %s65 = ssub.s32 %s10, %s17
    %p66 = scmp.eq.s32.totalorder %s65, 0
    %s68 = sadd.s32 %s67, 1
    %s69 = scalar_select %p66, %s67, %s68
    %p72 = pneg %p66
    %p73 = scmp.eq.s32.totalorder %s10, 1
    %p74 = por %p72, %p73
    %p75 = scmp.ne.s32.totalorder %s67, %s70
    %p76 = scmp.eq.s32.totalorder %s10, 0
    %p77 = por %p75, %p76
    %p78 = scmp.ne.s32.totalorder %s67, %s70
    %p79 = scmp.eq.s32.totalorder %s15, 1
    %p80 = por %p78, %p79
    %p81 = scmp.ne.s32.totalorder %s70, %s71
    %p82 = scmp.eq.s32.totalorder %s15, 0
    %p83 = por %p81, %p82
    %p84 = scmp.ne.s32.totalorder %s70, %s71
    %p85 = scmp.eq.s32.totalorder %s16, 1
    %p86 = por %p84, %p85
    %p88 = scmp.ne.s32.totalorder %s71, %s87
    %p89 = scmp.eq.s32.totalorder %s16, 0
    %p90 = por %p88, %p89
    %s91 = ssub.s32 %s10, %s17
    %p92 = scmp.eq.s32.totalorder %s91, 0
    %s94 = sadd.s32 %s93, 1
    %s95 = scalar_select %p92, %s93, %s94
    %p98 = pneg %p92
    %p99 = scmp.eq.s32.totalorder %s10, 1
    %p100 = por %p98, %p99
    %p101 = scmp.ne.s32.totalorder %s93, %s96
    %p102 = scmp.eq.s32.totalorder %s10, 0
    %p103 = por %p101, %p102
    %p104 = scmp.ne.s32.totalorder %s93, %s96
    %p105 = scmp.eq.s32.totalorder %s15, 1
    %p106 = por %p104, %p105
    %p107 = scmp.ne.s32.totalorder %s96, %s97
    %p108 = scmp.eq.s32.totalorder %s15, 0
    %p109 = por %p107, %p108
    %p110 = scmp.ne.s32.totalorder %s96, %s97
    %p111 = scmp.eq.s32.totalorder %s16, 1
    %p112 = por %p110, %p111
    %p114 = scmp.ne.s32.totalorder %s97, %s113
    %p115 = scmp.eq.s32.totalorder %s16, 0
    %p116 = por %p114, %p115
    %p117 = scmp.le.s32.totalorder 1, %s10
    %p118 = scmp.lt.s32.totalorder %s10, 3
    %p119 = pnand %p117, %p118
    %p120 = pneg %p119
    // Predicated region
    $region9: #{bottleneck_forward.5} parent=5 // pred_check
      _
    $region10: #{bottleneck_forward.5} parent=5 // pred_check_branch
      %122 = sbr.rel (%p119) target = $region12
    $region11: #{bottleneck_forward.5} parent=5 // pred_region
      %s123 = ssub.s32 %s10, 1
      // Predicated region
      $region13: #{bottleneck_forward.5} parent=11 // pred_check
        %p124 = pneg %p57
      $region14: #{bottleneck_forward.5} parent=11 // pred_check_branch
        %126 = sbr.rel (%p124) target = $region16
      $region15: #{bottleneck_forward.5} parent=11 // pred_region
        _
      $region16: #{bottleneck_forward.5} parent=11 // pred_fallthru
        _
    $region12: #{bottleneck_forward.5} parent=5 // pred_fallthru
      _
    %p127 = scmp.lt.s32.totalorder %s10, 2
    // Predicated region
    $region17: #{bottleneck_forward.5} parent=5 // pred_check
      %p128 = pneg %p127
    $region18: #{bottleneck_forward.5} parent=5 // pred_check_branch
      %130 = sbr.rel (%p128) target = $region20
    $region19: #{bottleneck_forward.5} parent=5 // pred_region
      // Predicated region
      $region21: #{bottleneck_forward.5} parent=19 // pred_check
        %p131 = pneg %p30
      $region22: #{bottleneck_forward.5} parent=19 // pred_check_branch
        %133 = sbr.rel (%p131) target = $region24
      $region23: #{bottleneck_forward.5} parent=19 // pred_region
        %s134 = smul.u32 8, %s10
        %p135 = scmp.lt.s32.totalorder %s134, 15
        %s136 = scalar_select %p135, %s134, 15
        %s137 = smul.addr %s136, 8
        %s138 = scalar_lea.vmem %s0, %s137
        %s139 = smul.u32 8, %s10
      $region24: #{bottleneck_forward.5} parent=19 // pred_fallthru
        _
    $region20: #{bottleneck_forward.5} parent=5 // pred_fallthru
      _
    %p140 = scmp.le.s32.totalorder 1, %s10
    %p141 = scmp.lt.s32.totalorder %s10, 3
    %p142 = pnand %p140, %p141
    %p143 = pneg %p142
    // Predicated region
    $region25: #{bottleneck_forward.5} parent=5 // pred_check
      _
    $region26: #{bottleneck_forward.5} parent=5 // pred_check_branch
      %145 = sbr.rel (%p142) target = $region28
    $region27: #{bottleneck_forward.5} parent=5 // pred_region
      %s146 = ssub.s32 %s10, 1
      %s147 = smul.u32 8, %s15
      %p148 = scmp.lt.s32.totalorder %s147, 15
      %s149 = scalar_select %p148, %s147, 15
      %s150 = smul.addr %s149, 8
      %s151 = scalar_lea.vmem %s0, %s150
      %p152 = pneg %p36
      %p153 = pneg %p33
      %p154 = pneg %p57
      %p155 = pneg %p54
      %p156 = pneg %p83
      %p157 = pneg %p80
      %s158 = smul.u32 8, %s15
      %p159 = scmp.lt.s32.totalorder %s158, 15
      %s160 = scalar_select %p159, %s158, 15
      %s161 = smul.addr %s160, 4
      %s162 = scalar_lea.vmem %s2, %s161
      %p163 = pneg %p109
      %p164 = pneg %p106
      %p165 = scmp.lt.s32.totalorder %s15, 1
      %s166 = scalar_select %p165, %s15, 1
      %s167 = smul.addr %s166, 2
      %s168 = scalar_lea.vmem %s3, %s167
      %s169 = smul.u32 8, %s15
      %p170 = scmp.lt.s32.totalorder %s169, 15
      %s171 = scalar_select %p170, %s169, 15
      %s172 = smul.addr %s171, 8
      %s173 = scalar_lea.vmem %s0, %s172
      %s174 = smul.u32 8, %s15
      %s175 = smul.u32 8, %s15
      %p176 = scmp.lt.s32.totalorder %s175, 15
      %s177 = scalar_select %p176, %s175, 15
      %s178 = smul.addr %s177, 4
      %s179 = scalar_lea.vmem %s2, %s178
      %s180 = smul.u32 8, %s15
      %p181 = scmp.lt.s32.totalorder %s15, 1
      %s182 = scalar_select %p181, %s15, 1
      %s183 = smul.addr %s182, 2
      %s184 = scalar_lea.vmem %s3, %s183
      %v186 = vld [vmem:[%s173] sm:$0xff]
      %v187 = vld [vmem:[%s173 + $0x8] sm:$0xff]
      %v188 = vld [vmem:[%s173 + $0x10] sm:$0xff]
      %v189 = vld [vmem:[%s173 + $0x18] sm:$0xff]
      %v190 = vld [vmem:[%s173 + $0x20] sm:$0xff]
      %v191 = vld [vmem:[%s173 + $0x28] sm:$0xff]
      %v192 = vld [vmem:[%s173 + $0x30] sm:$0xff]
      %v193 = vld [vmem:[%s173 + $0x38] sm:$0xff]
      %v194 = vpack.c.bf16 %v187, %v186
      %v195 = vpack.c.bf16 %v189, %v188
      %v196 = vpack.c.bf16 %v191, %v190
      %v197 = vpack.c.bf16 %v193, %v192
      %v198 = vld [vmem:[%s1] sm:$0xf]
      %v199 = vld [vmem:[%s1 + $0x4] sm:$0xf]
      %v202 = vunpack.c.l.b16 %v198
      %v203 = vunpack.c.l.b16 %v199
      %v204 = vpack.c.b16 %v203, %v202
      %vm206 = vcmask 130048
      %v208 = vsel %vm206, %v194, 0
      %v211 = vsel %vm206, %v195, 0
      %v214 = vsel %vm206, %v196, 0
      %v217 = vsel %vm206, %v197, 0
      %219 = vmatprep.subr.bf16.mxu0 0
      %220 = vmatpush1.bf16.msra.mxu0 %v204
      %221 = vmatprep.subr.bf16.mxu0 0
      %222 = vmatpush1.bf16.msra.mxu0 0
      %223 = vmatprep.subr.bf16.mxu0 0
      %224 = vmatpush1.bf16.msra.mxu0 0
      %225 = vmatprep.subr.bf16.mxu0 0
      %226 = vmatpush1.bf16.msra.mxu0 0
      %227 = vmatprep.subr.bf16.mxu0 0
      %228 = vmatpush1.bf16.msra.mxu0 0
      %229 = vmatprep.subr.bf16.mxu0 0
      %230 = vmatpush1.bf16.msra.mxu0 0
      %231 = vmatprep.subr.bf16.mxu0 0
      %232 = vmatpush1.bf16.msra.mxu0 0
      %233 = vmatprep.subr.bf16.mxu0 0
      %234 = vmatpush1.bf16.msra.mxu0 0
      %235 = vmatprep.subr.bf16.mxu0 0
      %236 = vmatpush1.bf16.msra.mxu0 0
      %237 = vmatprep.subr.bf16.mxu0 0
      %238 = vmatpush1.bf16.msra.mxu0 0
      %239 = vmatprep.subr.bf16.mxu0 0
      %240 = vmatpush1.bf16.msra.mxu0 0
      %241 = vmatprep.subr.bf16.mxu0 0
      %242 = vmatpush1.bf16.msra.mxu0 0
      %243 = vmatprep.subr.bf16.mxu0 0
      %244 = vmatpush1.bf16.msra.mxu0 0
      %245 = vmatprep.subr.bf16.mxu0 0
      %246 = vmatpush1.bf16.msra.mxu0 0
      %247 = vmatprep.subr.bf16.mxu0 0
      %248 = vmatpush1.bf16.msra.mxu0 0
      %249 = vmatprep.subr.bf16.mxu0 0
      %250 = vmatpush1.bf16.msra.mxu0 0
      %251 = vmatprep.mubr.bf16.mxu0 0
      %252 = vmatmul.mubr.bf16.gmra.mrb[0].mxu0 %v208
      %v253 = vpop.f32.mrb[0].mxu0
      %v254 = vadd.f32 0.0, %v253
      %v255 = vpop.f32.mrb[0].mxu0
      %v256 = vpop.f32.mrb[0].mxu0
      %v257 = vadd.f32 0.0, %v256
      %v258 = vpop.f32.mrb[0].mxu0
      %259 = vmatprep.mubr.bf16.mxu0 0
      %260 = vmatmul.mubr.bf16.gmra.mrb[0].mxu0 %v211
      %v261 = vpop.f32.mrb[0].mxu0
      %v262 = vadd.f32 0.0, %v261
      %v263 = vpop.f32.mrb[0].mxu0
      %v264 = vpop.f32.mrb[0].mxu0
      %v265 = vadd.f32 0.0, %v264
      %v266 = vpop.f32.mrb[0].mxu0
      %267 = vmatprep.mubr.bf16.mxu0 0
      %268 = vmatmul.mubr.bf16.gmra.mrb[0].mxu0 %v214
      %v269 = vpop.f32.mrb[0].mxu0
      %v270 = vadd.f32 0.0, %v269
      %v271 = vpop.f32.mrb[0].mxu0
      %v272 = vpop.f32.mrb[0].mxu0
      %v273 = vadd.f32 0.0, %v272
      %v274 = vpop.f32.mrb[0].mxu0
      %275 = vmatprep.mubr.bf16.mxu0 0
      %276 = vmatmul.mubr.bf16.gmra.mrb[0].mxu0 %v217
      %v277 = vpop.f32.mrb[0].mxu0
      %v278 = vadd.f32 0.0, %v277
      %v279 = vpop.f32.mrb[0].mxu0
      %v280 = vpop.f32.mrb[0].mxu0
      %v281 = vadd.f32 0.0, %v280
      %v282 = vpop.f32.mrb[0].mxu0
      %283 = vdwg.mxu0
      %v284 = vpack.c.bf16 %v257, %v254
      %v285 = vpack.c.bf16 %v265, %v262
      %v286 = vpack.c.bf16 %v273, %v270
      %v287 = vpack.c.bf16 %v281, %v278
      %v292 = vunpack.c.l.b16 %v284
      %v293 = vunpack.c.h.b16 %v284
      %v294 = vunpack.c.l.b16 %v285
      %v295 = vunpack.c.h.b16 %v285
      %v296 = vunpack.c.l.b16 %v286
      %v297 = vunpack.c.h.b16 %v286
      %v298 = vunpack.c.l.b16 %v287
      %v299 = vunpack.c.h.b16 %v287
      %v300 = vpack.c.b16 %v292, %v292
      %v301 = vpack.c.b16 %v293, %v293
      %v302 = vpack.c.b16 %v294, %v294
      %v303 = vpack.c.b16 %v295, %v295
      %v304 = vpack.c.b16 %v296, %v296
      %v305 = vpack.c.b16 %v297, %v297
      %v306 = vpack.c.b16 %v298, %v298
      %v307 = vpack.c.b16 %v299, %v299
      %vm316 = vcmask 60416
      %317 = vst.msk [vmem:[%s179] sm:$0xf] %vm316, %v300
      %318 = vst.msk [vmem:[%s179 + $0x4] sm:$0xf] %vm316, %v301
      %319 = vst.msk [vmem:[%s179 + $0x8] sm:$0xf] %vm316, %v302
      %320 = vst.msk [vmem:[%s179 + $0xc] sm:$0xf] %vm316, %v303
      %321 = vst.msk [vmem:[%s179 + $0x10] sm:$0xf] %vm316, %v304
      %322 = vst.msk [vmem:[%s179 + $0x14] sm:$0xf] %vm316, %v305
      %323 = vst.msk [vmem:[%s179 + $0x18] sm:$0xf] %vm316, %v306
      %324 = vst.msk [vmem:[%s179 + $0x1c] sm:$0xf] %vm316, %v307
      %vm325 = vcmask 64512
      %v326 = vsel %vm325, %v254, 0.0
      %v327 = vsel %vm325, %v257, 0.0
      %v328 = vadd.f32 %v326, %v327
      %v329 = vsel %vm325, %v262, 0.0
      %v330 = vadd.f32 %v328, %v329
      %v331 = vsel %vm325, %v265, 0.0
      %v332 = vadd.f32 %v330, %v331
      %v333 = vsel %vm325, %v270, 0.0
      %v334 = vadd.f32 %v332, %v333
      %v335 = vsel %vm325, %v273, 0.0
      %v336 = vadd.f32 %v334, %v335
      %v337 = vsel %vm325, %v278, 0.0
      %v338 = vadd.f32 %v336, %v337
      %v339 = vsel %vm325, %v281, 0.0
      %v340 = vadd.f32 %v338, %v339
      %v341 = vrot.slane %v340, 4
      %v342 = vadd.f32 %v340, %v341
      %v343 = vrot.slane %v342, 2
      %v344 = vadd.f32 %v342, %v343
      %v345 = vrot.slane %v344, 1
      %v346 = vadd.f32 %v344, %v345
      %v347 = vmul.f32 %v254, %v254
      %v348 = vmul.f32 %v257, %v257
      %v349 = vmul.f32 %v262, %v262
      %v350 = vmul.f32 %v265, %v265
      %v351 = vmul.f32 %v270, %v270
      %v352 = vmul.f32 %v273, %v273
      %v353 = vmul.f32 %v278, %v278
      %v354 = vmul.f32 %v281, %v281
      %v355 = vsel %vm325, %v347, 0.0
      %v356 = vsel %vm325, %v348, 0.0
      %v357 = vadd.f32 %v355, %v356
      %v358 = vsel %vm325, %v349, 0.0
      %v359 = vadd.f32 %v357, %v358
      %v360 = vsel %vm325, %v350, 0.0
      %v361 = vadd.f32 %v359, %v360
      %v362 = vsel %vm325, %v351, 0.0
      %v363 = vadd.f32 %v361, %v362
      %v364 = vsel %vm325, %v352, 0.0
      %v365 = vadd.f32 %v363, %v364
      %v366 = vsel %vm325, %v353, 0.0
      %v367 = vadd.f32 %v365, %v366
      %v368 = vsel %vm325, %v354, 0.0
      %v369 = vadd.f32 %v367, %v368
      %v370 = vrot.slane %v369, 4
      %v371 = vadd.f32 %v369, %v370
      %v372 = vrot.slane %v371, 2
      %v373 = vadd.f32 %v371, %v372
      %v374 = vrot.slane %v373, 1
      %v375 = vadd.f32 %v373, %v374
      %vm376 = vcmask 1040384
      %v377 = vsel %vm376, %v346, %v375
      %vm378 = vcmask 58368
      %379 = vst.msk [vmem:[%s184] sm:$0x3] %vm378, %v377
      %s380 = smul.u32 8, %s15
      %p381 = scmp.lt.s32.totalorder %s380, 15
      %s382 = scalar_select %p381, %s380, 15
      %s383 = smul.addr %s382, 4
      %s384 = scalar_lea.vmem %s2, %s383
      %p385 = scmp.lt.s32.totalorder %s15, 1
      %s386 = scalar_select %p385, %s15, 1
      %s387 = smul.addr %s386, 2
      %s388 = scalar_lea.vmem %s3, %s387
      // Predicated region
      $region29: #{bottleneck_forward.5} parent=27 // pred_check
        %p389 = pneg %p80
      $region30: #{bottleneck_forward.5} parent=27 // pred_check_branch
        %391 = sbr.rel (%p389) target = $region32
      $region31: #{bottleneck_forward.5} parent=27 // pred_region
        %s392 = smul.u32 8, %s15
      $region32: #{bottleneck_forward.5} parent=27 // pred_fallthru
        _
      // Predicated region
      $region33: #{bottleneck_forward.5} parent=27 // pred_check
        %p393 = pneg %p106
      $region34: #{bottleneck_forward.5} parent=27 // pred_check_branch
        %395 = sbr.rel (%p393) target = $region36
      $region35: #{bottleneck_forward.5} parent=27 // pred_region
        _
      $region36: #{bottleneck_forward.5} parent=27 // pred_fallthru
        _
    $region28: #{bottleneck_forward.5} parent=5 // pred_fallthru
      _
    %p396 = scmp.le.s32.totalorder 2, %s10
    // Predicated region
    $region37: #{bottleneck_forward.5} parent=5 // pred_check
      %p397 = pneg %p396
    $region38: #{bottleneck_forward.5} parent=5 // pred_check_branch
      %399 = sbr.rel (%p397) target = $region40
    $region39: #{bottleneck_forward.5} parent=5 // pred_region
      %s400 = ssub.s32 %s10, 2
      // Predicated region
      $region41: #{bottleneck_forward.5} parent=39 // pred_check
        %p401 = pneg %p86
      $region42: #{bottleneck_forward.5} parent=39 // pred_check_branch
        %403 = sbr.rel (%p401) target = $region44
      $region43: #{bottleneck_forward.5} parent=39 // pred_region
        %s404 = smul.u32 8, %s16
        %p405 = scmp.lt.s32.totalorder %s404, 15
        %s406 = scalar_select %p405, %s404, 15
        %s407 = smul.addr %s406, 4
        %s408 = scalar_lea.vmem %s2, %s407
      $region44: #{bottleneck_forward.5} parent=39 // pred_fallthru
        _
      // Predicated region
      $region45: #{bottleneck_forward.5} parent=39 // pred_check
        %p409 = pneg %p112
      $region46: #{bottleneck_forward.5} parent=39 // pred_check_branch
        %411 = sbr.rel (%p409) target = $region48
      $region47: #{bottleneck_forward.5} parent=39 // pred_region
        %p412 = scmp.lt.s32.totalorder %s16, 1
        %s413 = scalar_select %p412, %s16, 1
        %s414 = smul.addr %s413, 2
        %s415 = scalar_lea.vmem %s3, %s414
      $region48: #{bottleneck_forward.5} parent=39 // pred_fallthru
        _
    $region40: #{bottleneck_forward.5} parent=5 // pred_fallthru
      _
  $region6: #{bottleneck_forward.5} parent=0 // loop_footer
    %s14 = sadd.s32 1, %s10
  $region7: #{bottleneck_forward.5} parent=0 // loop_footer_branch
    %9 = sbr.rel target = $region3
  $region8: #{bottleneck_forward.5} parent=0 // loop_exit
    _

// kernel: bottleneck_forward.8
$region0: #{bottleneck_forward.8}
  #allocation0 [shape = 'u32[]', space=smem, size = 0x4, offset = 0x4, fixed_abs, tag = 'smem constant byte address 0x4 - core index']
  #allocation1 [shape = 'u32[144,128]{1,0:T(1,128)}', space=vmem, size = 0x12000, scoped, tag = 'internal scratch']
  %s0 = inlined_call_operand.vmem [shape: f32[128,16], index: 0, kind: input, shape index: {}]
  %s1 = inlined_call_operand.vmem [shape: bf16[16,32], index: 1, kind: input, shape index: {}]
  %s2 = inlined_call_operand.vmem [shape: bf16[128,32], index: 2, kind: output, shape index: {0}]
  %s3 = inlined_call_operand.vmem [shape: f32[2,2,32], index: 3, kind: output, shape index: {1}]
  %4 = xla_tuple %s2, %s3
  %s5 = sld [smem:[#allocation0]]
  $region49: #{bottleneck_forward.8} parent=0
    _
  %s7 = ssub.s32 1, %s5
  %s8 = scalar_select 0, %s7, %s5
  loop: start=0, step=1, limit=4
  $region2: #{bottleneck_forward.8} parent=0 // loop_pre_header
    _
  $region3: #{bottleneck_forward.8} parent=0 // loop_header
    %s10 = sphi 0, %s14
    %p11 = scmp.ge.s32.totalorder %s10, 4
    %s20 = sphi 0, %s22
    %s23 = sphi 0, %s20
    %s24 = sphi 0, %s23
    %s40 = sphi 0, %s24
    %s44 = sphi 0, %s44
    %s46 = sphi 0, %s44
    %s47 = sphi 0, %s46
    %s61 = sphi 0, %s47
    %s67 = sphi 0, %s69
    %s70 = sphi 0, %s67
    %s71 = sphi 0, %s70
    %s87 = sphi 0, %s71
    %s93 = sphi 0, %s95
    %s96 = sphi 0, %s93
    %s97 = sphi 0, %s96
    %s113 = sphi 0, %s97
  $region4: #{bottleneck_forward.8} parent=0 // loop_header_branch
    %13 = sbr.rel (%p11) target = $region8
  $region5: #{bottleneck_forward.8} parent=0 // loop_body
    %s15 = ssub.s32 %s10, 1
    %s16 = ssub.s32 %s10, 2
    %s17 = sadd.s32 %s10, 1
    %s18 = ssub.s32 %s10, %s17
    %p19 = scmp.eq.s32.totalorder %s18, 0
    %s21 = sadd.s32 %s20, 1
    %s22 = scalar_select %p19, %s20, %s21
    %p25 = pneg %p19
    %p26 = scmp.eq.s32.totalorder %s10, 1
    %p27 = por %p25, %p26
    %p28 = scmp.ne.s32.totalorder %s20, %s23
    %p29 = scmp.eq.s32.totalorder %s10, 0
    %p30 = por %p28, %p29
    %p31 = scmp.ne.s32.totalorder %s20, %s23
    %p32 = scmp.eq.s32.totalorder %s15, 1
    %p33 = por %p31, %p32
    %p34 = scmp.ne.s32.totalorder %s23, %s24
    %p35 = scmp.eq.s32.totalorder %s15, 0
    %p36 = por %p34, %p35
    %p37 = scmp.ne.s32.totalorder %s23, %s24
    %p38 = scmp.eq.s32.totalorder %s16, 1
    %p39 = por %p37, %p38
    %p41 = scmp.ne.s32.totalorder %s24, %s40
    %p42 = scmp.eq.s32.totalorder %s16, 0
    %p43 = por %p41, %p42
    %s45 = sadd.s32 %s44, 1
    %p48 = scmp.eq.s32.totalorder %s10, 1
    %p49 = scmp.ne.s32.totalorder %s44, %s46
    %p50 = scmp.eq.s32.totalorder %s10, 0
    %p51 = por %p49, %p50
    %p52 = scmp.ne.s32.totalorder %s44, %s46
    %p53 = scmp.eq.s32.totalorder %s15, 1
    %p54 = por %p52, %p53
    %p55 = scmp.ne.s32.totalorder %s46, %s47
    %p56 = scmp.eq.s32.totalorder %s15, 0
    %p57 = por %p55, %p56
    %p58 = scmp.ne.s32.totalorder %s46, %s47
    %p59 = scmp.eq.s32.totalorder %s16, 1
    %p60 = por %p58, %p59
    %p62 = scmp.ne.s32.totalorder %s47, %s61
    %p63 = scmp.eq.s32.totalorder %s16, 0
    %p64 = por %p62, %p63
    %s65 = ssub.s32 %s10, %s17
    %p66 = scmp.eq.s32.totalorder %s65, 0
    %s68 = sadd.s32 %s67, 1
    %s69 = scalar_select %p66, %s67, %s68
    %p72 = pneg %p66
    %p73 = scmp.eq.s32.totalorder %s10, 1
    %p74 = por %p72, %p73
    %p75 = scmp.ne.s32.totalorder %s67, %s70
    %p76 = scmp.eq.s32.totalorder %s10, 0
    %p77 = por %p75, %p76
    %p78 = scmp.ne.s32.totalorder %s67, %s70
    %p79 = scmp.eq.s32.totalorder %s15, 1
    %p80 = por %p78, %p79
    %p81 = scmp.ne.s32.totalorder %s70, %s71
    %p82 = scmp.eq.s32.totalorder %s15, 0
    %p83 = por %p81, %p82
    %p84 = scmp.ne.s32.totalorder %s70, %s71
    %p85 = scmp.eq.s32.totalorder %s16, 1
    %p86 = por %p84, %p85
    %p88 = scmp.ne.s32.totalorder %s71, %s87
    %p89 = scmp.eq.s32.totalorder %s16, 0
    %p90 = por %p88, %p89
    %s91 = ssub.s32 %s10, %s17
    %p92 = scmp.eq.s32.totalorder %s91, 0
    %s94 = sadd.s32 %s93, 1
    %s95 = scalar_select %p92, %s93, %s94
    %p98 = pneg %p92
    %p99 = scmp.eq.s32.totalorder %s10, 1
    %p100 = por %p98, %p99
    %p101 = scmp.ne.s32.totalorder %s93, %s96
    %p102 = scmp.eq.s32.totalorder %s10, 0
    %p103 = por %p101, %p102
    %p104 = scmp.ne.s32.totalorder %s93, %s96
    %p105 = scmp.eq.s32.totalorder %s15, 1
    %p106 = por %p104, %p105
    %p107 = scmp.ne.s32.totalorder %s96, %s97
    %p108 = scmp.eq.s32.totalorder %s15, 0
    %p109 = por %p107, %p108
    %p110 = scmp.ne.s32.totalorder %s96, %s97
    %p111 = scmp.eq.s32.totalorder %s16, 1
    %p112 = por %p110, %p111
    %p114 = scmp.ne.s32.totalorder %s97, %s113
    %p115 = scmp.eq.s32.totalorder %s16, 0
    %p116 = por %p114, %p115
    %p117 = scmp.le.s32.totalorder 1, %s10
    %p118 = scmp.lt.s32.totalorder %s10, 3
    %p119 = pnand %p117, %p118
    %p120 = pneg %p119
    // Predicated region
    $region9: #{bottleneck_forward.8} parent=5 // pred_check
      _
    $region10: #{bottleneck_forward.8} parent=5 // pred_check_branch
      %122 = sbr.rel (%p119) target = $region12
    $region11: #{bottleneck_forward.8} parent=5 // pred_region
      %s123 = ssub.s32 %s10, 1
      // Predicated region
      $region13: #{bottleneck_forward.8} parent=11 // pred_check
        %p124 = pneg %p57
      $region14: #{bottleneck_forward.8} parent=11 // pred_check_branch
        %126 = sbr.rel (%p124) target = $region16
      $region15: #{bottleneck_forward.8} parent=11 // pred_region
        _
      $region16: #{bottleneck_forward.8} parent=11 // pred_fallthru
        _
    $region12: #{bottleneck_forward.8} parent=5 // pred_fallthru
      _
    %p127 = scmp.lt.s32.totalorder %s10, 2
    // Predicated region
    $region17: #{bottleneck_forward.8} parent=5 // pred_check
      %p128 = pneg %p127
    $region18: #{bottleneck_forward.8} parent=5 // pred_check_branch
      %130 = sbr.rel (%p128) target = $region20
    $region19: #{bottleneck_forward.8} parent=5 // pred_region
      // Predicated region
      $region21: #{bottleneck_forward.8} parent=19 // pred_check
        %p131 = pneg %p30
      $region22: #{bottleneck_forward.8} parent=19 // pred_check_branch
        %133 = sbr.rel (%p131) target = $region24
      $region23: #{bottleneck_forward.8} parent=19 // pred_region
        %s134 = smul.u32 8, %s10
        %p135 = scmp.lt.s32.totalorder %s134, 15
        %s136 = scalar_select %p135, %s134, 15
        %s137 = smul.addr %s136, 8
        %s138 = scalar_lea.vmem %s0, %s137
        %s139 = smul.u32 8, %s10
      $region24: #{bottleneck_forward.8} parent=19 // pred_fallthru
        _
    $region20: #{bottleneck_forward.8} parent=5 // pred_fallthru
      _
    %p140 = scmp.le.s32.totalorder 1, %s10
    %p141 = scmp.lt.s32.totalorder %s10, 3
    %p142 = pnand %p140, %p141
    %p143 = pneg %p142
    // Predicated region
    $region25: #{bottleneck_forward.8} parent=5 // pred_check
      _
    $region26: #{bottleneck_forward.8} parent=5 // pred_check_branch
      %145 = sbr.rel (%p142) target = $region28
    $region27: #{bottleneck_forward.8} parent=5 // pred_region
      %s146 = ssub.s32 %s10, 1
      %s147 = smul.u32 8, %s15
      %p148 = scmp.lt.s32.totalorder %s147, 15
      %s149 = scalar_select %p148, %s147, 15
      %s150 = smul.addr %s149, 8
      %s151 = scalar_lea.vmem %s0, %s150
      %p152 = pneg %p36
      %p153 = pneg %p33
      %p154 = pneg %p57
      %p155 = pneg %p54
      %p156 = pneg %p83
      %p157 = pneg %p80
      %s158 = smul.u32 8, %s15
      %p159 = scmp.lt.s32.totalorder %s158, 15
      %s160 = scalar_select %p159, %s158, 15
      %s161 = smul.addr %s160, 4
      %s162 = scalar_lea.vmem %s2, %s161
      %p163 = pneg %p109
      %p164 = pneg %p106
      %p165 = scmp.lt.s32.totalorder %s15, 1
      %s166 = scalar_select %p165, %s15, 1
      %s167 = smul.addr %s166, 2
      %s168 = scalar_lea.vmem %s3, %s167
      %s169 = smul.u32 8, %s15
      %p170 = scmp.lt.s32.totalorder %s169, 15
      %s171 = scalar_select %p170, %s169, 15
      %s172 = smul.addr %s171, 8
      %s173 = scalar_lea.vmem %s0, %s172
      %s174 = smul.u32 8, %s15
      %s175 = smul.u32 8, %s15
      %p176 = scmp.lt.s32.totalorder %s175, 15
      %s177 = scalar_select %p176, %s175, 15
      %s178 = smul.addr %s177, 4
      %s179 = scalar_lea.vmem %s2, %s178
      %s180 = smul.u32 8, %s15
      %p181 = scmp.lt.s32.totalorder %s15, 1
      %s182 = scalar_select %p181, %s15, 1
      %s183 = smul.addr %s182, 2
      %s184 = scalar_lea.vmem %s3, %s183
      %v186 = vld [vmem:[%s173] sm:$0xff]
      %v187 = vld [vmem:[%s173 + $0x8] sm:$0xff]
      %v188 = vld [vmem:[%s173 + $0x10] sm:$0xff]
      %v189 = vld [vmem:[%s173 + $0x18] sm:$0xff]
      %v190 = vld [vmem:[%s173 + $0x20] sm:$0xff]
      %v191 = vld [vmem:[%s173 + $0x28] sm:$0xff]
      %v192 = vld [vmem:[%s173 + $0x30] sm:$0xff]
      %v193 = vld [vmem:[%s173 + $0x38] sm:$0xff]
      %v194 = vpack.c.bf16 %v187, %v186
      %v195 = vpack.c.bf16 %v189, %v188
      %v196 = vpack.c.bf16 %v191, %v190
      %v197 = vpack.c.bf16 %v193, %v192
      %v198 = vld [vmem:[%s1] sm:$0xf]
      %v199 = vld [vmem:[%s1 + $0x4] sm:$0xf]
      %v202 = vunpack.c.l.b16 %v198
      %v203 = vunpack.c.l.b16 %v199
      %v204 = vpack.c.b16 %v203, %v202
      %vm206 = vcmask 130048
      %v208 = vsel %vm206, %v194, 0
      %v211 = vsel %vm206, %v195, 0
      %v214 = vsel %vm206, %v196, 0
      %v217 = vsel %vm206, %v197, 0
      %219 = vmatprep.subr.bf16.mxu0 0
      %220 = vmatpush1.bf16.msra.mxu0 %v204
      %221 = vmatprep.subr.bf16.mxu0 0
      %222 = vmatpush1.bf16.msra.mxu0 0
      %223 = vmatprep.subr.bf16.mxu0 0
      %224 = vmatpush1.bf16.msra.mxu0 0
      %225 = vmatprep.subr.bf16.mxu0 0
      %226 = vmatpush1.bf16.msra.mxu0 0
      %227 = vmatprep.subr.bf16.mxu0 0
      %228 = vmatpush1.bf16.msra.mxu0 0
      %229 = vmatprep.subr.bf16.mxu0 0
      %230 = vmatpush1.bf16.msra.mxu0 0
      %231 = vmatprep.subr.bf16.mxu0 0
      %232 = vmatpush1.bf16.msra.mxu0 0
      %233 = vmatprep.subr.bf16.mxu0 0
      %234 = vmatpush1.bf16.msra.mxu0 0
      %235 = vmatprep.subr.bf16.mxu0 0
      %236 = vmatpush1.bf16.msra.mxu0 0
      %237 = vmatprep.subr.bf16.mxu0 0
      %238 = vmatpush1.bf16.msra.mxu0 0
      %239 = vmatprep.subr.bf16.mxu0 0
      %240 = vmatpush1.bf16.msra.mxu0 0
      %241 = vmatprep.subr.bf16.mxu0 0
      %242 = vmatpush1.bf16.msra.mxu0 0
      %243 = vmatprep.subr.bf16.mxu0 0
      %244 = vmatpush1.bf16.msra.mxu0 0
      %245 = vmatprep.subr.bf16.mxu0 0
      %246 = vmatpush1.bf16.msra.mxu0 0
      %247 = vmatprep.subr.bf16.mxu0 0
      %248 = vmatpush1.bf16.msra.mxu0 0
      %249 = vmatprep.subr.bf16.mxu0 0
      %250 = vmatpush1.bf16.msra.mxu0 0
      %251 = vmatprep.mubr.bf16.mxu0 0
      %252 = vmatmul.mubr.bf16.gmra.mrb[0].mxu0 %v208
      %v253 = vpop.f32.mrb[0].mxu0
      %v254 = vadd.f32 0.0, %v253
      %v255 = vpop.f32.mrb[0].mxu0
      %v256 = vpop.f32.mrb[0].mxu0
      %v257 = vadd.f32 0.0, %v256
      %v258 = vpop.f32.mrb[0].mxu0
      %259 = vmatprep.mubr.bf16.mxu0 0
      %260 = vmatmul.mubr.bf16.gmra.mrb[0].mxu0 %v211
      %v261 = vpop.f32.mrb[0].mxu0
      %v262 = vadd.f32 0.0, %v261
      %v263 = vpop.f32.mrb[0].mxu0
      %v264 = vpop.f32.mrb[0].mxu0
      %v265 = vadd.f32 0.0, %v264
      %v266 = vpop.f32.mrb[0].mxu0
      %267 = vmatprep.mubr.bf16.mxu0 0
      %268 = vmatmul.mubr.bf16.gmra.mrb[0].mxu0 %v214
      %v269 = vpop.f32.mrb[0].mxu0
      %v270 = vadd.f32 0.0, %v269
      %v271 = vpop.f32.mrb[0].mxu0
      %v272 = vpop.f32.mrb[0].mxu0
      %v273 = vadd.f32 0.0, %v272
      %v274 = vpop.f32.mrb[0].mxu0
      %275 = vmatprep.mubr.bf16.mxu0 0
      %276 = vmatmul.mubr.bf16.gmra.mrb[0].mxu0 %v217
      %v277 = vpop.f32.mrb[0].mxu0
      %v278 = vadd.f32 0.0, %v277
      %v279 = vpop.f32.mrb[0].mxu0
      %v280 = vpop.f32.mrb[0].mxu0
      %v281 = vadd.f32 0.0, %v280
      %v282 = vpop.f32.mrb[0].mxu0
      %283 = vdwg.mxu0
      %v284 = vpack.c.bf16 %v257, %v254
      %v285 = vpack.c.bf16 %v265, %v262
      %v286 = vpack.c.bf16 %v273, %v270
      %v287 = vpack.c.bf16 %v281, %v278
      %v292 = vunpack.c.l.b16 %v284
      %v293 = vunpack.c.h.b16 %v284
      %v294 = vunpack.c.l.b16 %v285
      %v295 = vunpack.c.h.b16 %v285
      %v296 = vunpack.c.l.b16 %v286
      %v297 = vunpack.c.h.b16 %v286
      %v298 = vunpack.c.l.b16 %v287
      %v299 = vunpack.c.h.b16 %v287
      %v300 = vpack.c.b16 %v292, %v292
      %v301 = vpack.c.b16 %v293, %v293
      %v302 = vpack.c.b16 %v294, %v294
      %v303 = vpack.c.b16 %v295, %v295
      %v304 = vpack.c.b16 %v296, %v296
      %v305 = vpack.c.b16 %v297, %v297
      %v306 = vpack.c.b16 %v298, %v298
      %v307 = vpack.c.b16 %v299, %v299
      %vm316 = vcmask 257024
      %317 = vst.msk [vmem:[%s179] sm:$0xf] %vm316, %v300
      %318 = vst.msk [vmem:[%s179 + $0x4] sm:$0xf] %vm316, %v301
      %319 = vst.msk [vmem:[%s179 + $0x8] sm:$0xf] %vm316, %v302
      %320 = vst.msk [vmem:[%s179 + $0xc] sm:$0xf] %vm316, %v303
      %321 = vst.msk [vmem:[%s179 + $0x10] sm:$0xf] %vm316, %v304
      %322 = vst.msk [vmem:[%s179 + $0x14] sm:$0xf] %vm316, %v305
      %323 = vst.msk [vmem:[%s179 + $0x18] sm:$0xf] %vm316, %v306
      %324 = vst.msk [vmem:[%s179 + $0x1c] sm:$0xf] %vm316, %v307
      %vm325 = vcmask 261120
      %v326 = vsel %vm325, %v254, 0.0
      %v327 = vsel %vm325, %v257, 0.0
      %v328 = vadd.f32 %v326, %v327
      %v329 = vsel %vm325, %v262, 0.0
      %v330 = vadd.f32 %v328, %v329
      %v331 = vsel %vm325, %v265, 0.0
      %v332 = vadd.f32 %v330, %v331
      %v333 = vsel %vm325, %v270, 0.0
      %v334 = vadd.f32 %v332, %v333
      %v335 = vsel %vm325, %v273, 0.0
      %v336 = vadd.f32 %v334, %v335
      %v337 = vsel %vm325, %v278, 0.0
      %v338 = vadd.f32 %v336, %v337
      %v339 = vsel %vm325, %v281, 0.0
      %v340 = vadd.f32 %v338, %v339
      %v341 = vrot.slane %v340, 4
      %v342 = vadd.f32 %v340, %v341
      %v343 = vrot.slane %v342, 2
      %v344 = vadd.f32 %v342, %v343
      %v345 = vrot.slane %v344, 1
      %v346 = vadd.f32 %v344, %v345
      %v347 = vmul.f32 %v254, %v254
      %v348 = vmul.f32 %v257, %v257
      %v349 = vmul.f32 %v262, %v262
      %v350 = vmul.f32 %v265, %v265
      %v351 = vmul.f32 %v270, %v270
      %v352 = vmul.f32 %v273, %v273
      %v353 = vmul.f32 %v278, %v278
      %v354 = vmul.f32 %v281, %v281
      %v355 = vsel %vm325, %v347, 0.0
      %v356 = vsel %vm325, %v348, 0.0
      %v357 = vadd.f32 %v355, %v356
      %v358 = vsel %vm325, %v349, 0.0
      %v359 = vadd.f32 %v357, %v358
      %v360 = vsel %vm325, %v350, 0.0
      %v361 = vadd.f32 %v359, %v360
      %v362 = vsel %vm325, %v351, 0.0
      %v363 = vadd.f32 %v361, %v362
      %v364 = vsel %vm325, %v352, 0.0
      %v365 = vadd.f32 %v363, %v364
      %v366 = vsel %vm325, %v353, 0.0
      %v367 = vadd.f32 %v365, %v366
      %v368 = vsel %vm325, %v354, 0.0
      %v369 = vadd.f32 %v367, %v368
      %v370 = vrot.slane %v369, 4
      %v371 = vadd.f32 %v369, %v370
      %v372 = vrot.slane %v371, 2
      %v373 = vadd.f32 %v371, %v372
      %v374 = vrot.slane %v373, 1
      %v375 = vadd.f32 %v373, %v374
      %vm376 = vcmask 1040384
      %v377 = vsel %vm376, %v346, %v375
      %vm378 = vcmask 254976
      %379 = vst.msk [vmem:[%s184] sm:$0x3] %vm378, %v377
      %s380 = smul.u32 8, %s15
      %p381 = scmp.lt.s32.totalorder %s380, 15
      %s382 = scalar_select %p381, %s380, 15
      %s383 = smul.addr %s382, 4
      %s384 = scalar_lea.vmem %s2, %s383
      %p385 = scmp.lt.s32.totalorder %s15, 1
      %s386 = scalar_select %p385, %s15, 1
      %s387 = smul.addr %s386, 2
      %s388 = scalar_lea.vmem %s3, %s387
      // Predicated region
      $region29: #{bottleneck_forward.8} parent=27 // pred_check
        %p389 = pneg %p80
      $region30: #{bottleneck_forward.8} parent=27 // pred_check_branch
        %391 = sbr.rel (%p389) target = $region32
      $region31: #{bottleneck_forward.8} parent=27 // pred_region
        %s392 = smul.u32 8, %s15
      $region32: #{bottleneck_forward.8} parent=27 // pred_fallthru
        _
      // Predicated region
      $region33: #{bottleneck_forward.8} parent=27 // pred_check
        %p393 = pneg %p106
      $region34: #{bottleneck_forward.8} parent=27 // pred_check_branch
        %395 = sbr.rel (%p393) target = $region36
      $region35: #{bottleneck_forward.8} parent=27 // pred_region
        _
      $region36: #{bottleneck_forward.8} parent=27 // pred_fallthru
        _
    $region28: #{bottleneck_forward.8} parent=5 // pred_fallthru
      _
    %p396 = scmp.le.s32.totalorder 2, %s10
    // Predicated region
    $region37: #{bottleneck_forward.8} parent=5 // pred_check
      %p397 = pneg %p396
    $region38: #{bottleneck_forward.8} parent=5 // pred_check_branch
      %399 = sbr.rel (%p397) target = $region40
    $region39: #{bottleneck_forward.8} parent=5 // pred_region
      %s400 = ssub.s32 %s10, 2
      // Predicated region
      $region41: #{bottleneck_forward.8} parent=39 // pred_check
        %p401 = pneg %p86
      $region42: #{bottleneck_forward.8} parent=39 // pred_check_branch
        %403 = sbr.rel (%p401) target = $region44
      $region43: #{bottleneck_forward.8} parent=39 // pred_region
        %s404 = smul.u32 8, %s16
        %p405 = scmp.lt.s32.totalorder %s404, 15
        %s406 = scalar_select %p405, %s404, 15
        %s407 = smul.addr %s406, 4
        %s408 = scalar_lea.vmem %s2, %s407
      $region44: #{bottleneck_forward.8} parent=39 // pred_fallthru
        _
      // Predicated region
      $region45: #{bottleneck_forward.8} parent=39 // pred_check
        %p409 = pneg %p112
      $region46: #{bottleneck_forward.8} parent=39 // pred_check_branch
        %411 = sbr.rel (%p409) target = $region48
      $region47: #{bottleneck_forward.8} parent=39 // pred_region
        %p412 = scmp.lt.s32.totalorder %s16, 1
        %s413 = scalar_select %p412, %s16, 1
        %s414 = smul.addr %s413, 2
        %s415 = scalar_lea.vmem %s3, %s414
      $region48: #{bottleneck_forward.8} parent=39 // pred_fallthru
        _
    $region40: #{bottleneck_forward.8} parent=5 // pred_fallthru
      _
  $region6: #{bottleneck_forward.8} parent=0 // loop_footer
    %s14 = sadd.s32 1, %s10
  $region7: #{bottleneck_forward.8} parent=0 // loop_footer_branch
    %9 = sbr.rel target = $region3
  $region8: #{bottleneck_forward.8} parent=0 // loop_exit
    _

// kernel: bottleneck_forward.7
$region0: #{bottleneck_forward.7}
  #allocation0 [shape = 'u32[]', space=smem, size = 0x4, offset = 0x4, fixed_abs, tag = 'smem constant byte address 0x4 - core index']
  #allocation1 [shape = 'u32[144,128]{1,0:T(1,128)}', space=vmem, size = 0x12000, scoped, tag = 'internal scratch']
  %s0 = inlined_call_operand.vmem [shape: bf16[128,8], index: 0, kind: input, shape index: {}]
  %s1 = inlined_call_operand.vmem [shape: f32[1,8], index: 1, kind: input, shape index: {}]
  %s2 = inlined_call_operand.vmem [shape: f32[1,8], index: 2, kind: input, shape index: {}]
  %s3 = inlined_call_operand.vmem [shape: bf16[8,32], index: 3, kind: input, shape index: {}]
  %s4 = inlined_call_operand.vmem [shape: bf16[128,32], index: 4, kind: output, shape index: {0}]
  %s5 = inlined_call_operand.vmem [shape: f32[2,2,32], index: 5, kind: output, shape index: {1}]
  %6 = xla_tuple %s4, %s5
  %s7 = sld [smem:[#allocation0]]
  $region57: #{bottleneck_forward.7} parent=0
    _
  %s9 = ssub.s32 1, %s7
  %s10 = scalar_select 0, %s9, %s7
  loop: start=0, step=1, limit=4
  $region2: #{bottleneck_forward.7} parent=0 // loop_pre_header
    _
  $region3: #{bottleneck_forward.7} parent=0 // loop_header
    %s12 = sphi 0, %s16
    %p13 = scmp.ge.s32.totalorder %s12, 4
    %s22 = sphi 0, %s24
    %s25 = sphi 0, %s22
    %s26 = sphi 0, %s25
    %s42 = sphi 0, %s26
    %s46 = sphi 0, %s46
    %s48 = sphi 0, %s46
    %s49 = sphi 0, %s48
    %s63 = sphi 0, %s49
    %s67 = sphi 0, %s67
    %s69 = sphi 0, %s67
    %s70 = sphi 0, %s69
    %s84 = sphi 0, %s70
    %s88 = sphi 0, %s88
    %s90 = sphi 0, %s88
    %s91 = sphi 0, %s90
    %s105 = sphi 0, %s91
    %s111 = sphi 0, %s113
    %s114 = sphi 0, %s111
    %s115 = sphi 0, %s114
    %s131 = sphi 0, %s115
    %s137 = sphi 0, %s139
    %s140 = sphi 0, %s137
    %s141 = sphi 0, %s140
    %s157 = sphi 0, %s141
  $region4: #{bottleneck_forward.7} parent=0 // loop_header_branch
    %15 = sbr.rel (%p13) target = $region8
  $region5: #{bottleneck_forward.7} parent=0 // loop_body
    %s17 = ssub.s32 %s12, 1
    %s18 = ssub.s32 %s12, 2
    %s19 = sadd.s32 %s12, 1
    %s20 = ssub.s32 %s12, %s19
    %p21 = scmp.eq.s32.totalorder %s20, 0
    %s23 = sadd.s32 %s22, 1
    %s24 = scalar_select %p21, %s22, %s23
    %p27 = pneg %p21
    %p28 = scmp.eq.s32.totalorder %s12, 1
    %p29 = por %p27, %p28
    %p30 = scmp.ne.s32.totalorder %s22, %s25
    %p31 = scmp.eq.s32.totalorder %s12, 0
    %p32 = por %p30, %p31
    %p33 = scmp.ne.s32.totalorder %s22, %s25
    %p34 = scmp.eq.s32.totalorder %s17, 1
    %p35 = por %p33, %p34
    %p36 = scmp.ne.s32.totalorder %s25, %s26
    %p37 = scmp.eq.s32.totalorder %s17, 0
    %p38 = por %p36, %p37
    %p39 = scmp.ne.s32.totalorder %s25, %s26
    %p40 = scmp.eq.s32.totalorder %s18, 1
    %p41 = por %p39, %p40
    %p43 = scmp.ne.s32.totalorder %s26, %s42
    %p44 = scmp.eq.s32.totalorder %s18, 0
    %p45 = por %p43, %p44
    %s47 = sadd.s32 %s46, 1
    %p50 = scmp.eq.s32.totalorder %s12, 1
    %p51 = scmp.ne.s32.totalorder %s46, %s48
    %p52 = scmp.eq.s32.totalorder %s12, 0
    %p53 = por %p51, %p52
    %p54 = scmp.ne.s32.totalorder %s46, %s48
    %p55 = scmp.eq.s32.totalorder %s17, 1
    %p56 = por %p54, %p55
    %p57 = scmp.ne.s32.totalorder %s48, %s49
    %p58 = scmp.eq.s32.totalorder %s17, 0
    %p59 = por %p57, %p58
    %p60 = scmp.ne.s32.totalorder %s48, %s49
    %p61 = scmp.eq.s32.totalorder %s18, 1
    %p62 = por %p60, %p61
    %p64 = scmp.ne.s32.totalorder %s49, %s63
    %p65 = scmp.eq.s32.totalorder %s18, 0
    %p66 = por %p64, %p65
    %s68 = sadd.s32 %s67, 1
    %p71 = scmp.eq.s32.totalorder %s12, 1
    %p72 = scmp.ne.s32.totalorder %s67, %s69
    %p73 = scmp.eq.s32.totalorder %s12, 0
    %p74 = por %p72, %p73
    %p75 = scmp.ne.s32.totalorder %s67, %s69
    %p76 = scmp.eq.s32.totalorder %s17, 1
    %p77 = por %p75, %p76
    %p78 = scmp.ne.s32.totalorder %s69, %s70
    %p79 = scmp.eq.s32.totalorder %s17, 0
    %p80 = por %p78, %p79
    %p81 = scmp.ne.s32.totalorder %s69, %s70
    %p82 = scmp.eq.s32.totalorder %s18, 1
    %p83 = por %p81, %p82
    %p85 = scmp.ne.s32.totalorder %s70, %s84
    %p86 = scmp.eq.s32.totalorder %s18, 0
    %p87 = por %p85, %p86
    %s89 = sadd.s32 %s88, 1
    %p92 = scmp.eq.s32.totalorder %s12, 1
    %p93 = scmp.ne.s32.totalorder %s88, %s90
    %p94 = scmp.eq.s32.totalorder %s12, 0
    %p95 = por %p93, %p94
    %p96 = scmp.ne.s32.totalorder %s88, %s90
    %p97 = scmp.eq.s32.totalorder %s17, 1
    %p98 = por %p96, %p97
    %p99 = scmp.ne.s32.totalorder %s90, %s91
    %p100 = scmp.eq.s32.totalorder %s17, 0
    %p101 = por %p99, %p100
    %p102 = scmp.ne.s32.totalorder %s90, %s91
    %p103 = scmp.eq.s32.totalorder %s18, 1
    %p104 = por %p102, %p103
    %p106 = scmp.ne.s32.totalorder %s91, %s105
    %p107 = scmp.eq.s32.totalorder %s18, 0
    %p108 = por %p106, %p107
    %s109 = ssub.s32 %s12, %s19
    %p110 = scmp.eq.s32.totalorder %s109, 0
    %s112 = sadd.s32 %s111, 1
    %s113 = scalar_select %p110, %s111, %s112
    %p116 = pneg %p110
    %p117 = scmp.eq.s32.totalorder %s12, 1
    %p118 = por %p116, %p117
    %p119 = scmp.ne.s32.totalorder %s111, %s114
    %p120 = scmp.eq.s32.totalorder %s12, 0
    %p121 = por %p119, %p120
    %p122 = scmp.ne.s32.totalorder %s111, %s114
    %p123 = scmp.eq.s32.totalorder %s17, 1
    %p124 = por %p122, %p123
    %p125 = scmp.ne.s32.totalorder %s114, %s115
    %p126 = scmp.eq.s32.totalorder %s17, 0
    %p127 = por %p125, %p126
    %p128 = scmp.ne.s32.totalorder %s114, %s115
    %p129 = scmp.eq.s32.totalorder %s18, 1
    %p130 = por %p128, %p129
    %p132 = scmp.ne.s32.totalorder %s115, %s131
    %p133 = scmp.eq.s32.totalorder %s18, 0
    %p134 = por %p132, %p133
    %s135 = ssub.s32 %s12, %s19
    %p136 = scmp.eq.s32.totalorder %s135, 0
    %s138 = sadd.s32 %s137, 1
    %s139 = scalar_select %p136, %s137, %s138
    %p142 = pneg %p136
    %p143 = scmp.eq.s32.totalorder %s12, 1
    %p144 = por %p142, %p143
    %p145 = scmp.ne.s32.totalorder %s137, %s140
    %p146 = scmp.eq.s32.totalorder %s12, 0
    %p147 = por %p145, %p146
    %p148 = scmp.ne.s32.totalorder %s137, %s140
    %p149 = scmp.eq.s32.totalorder %s17, 1
    %p150 = por %p148, %p149
    %p151 = scmp.ne.s32.totalorder %s140, %s141
    %p152 = scmp.eq.s32.totalorder %s17, 0
    %p153 = por %p151, %p152
    %p154 = scmp.ne.s32.totalorder %s140, %s141
    %p155 = scmp.eq.s32.totalorder %s18, 1
    %p156 = por %p154, %p155
    %p158 = scmp.ne.s32.totalorder %s141, %s157
    %p159 = scmp.eq.s32.totalorder %s18, 0
    %p160 = por %p158, %p159
    %p161 = scmp.le.s32.totalorder 1, %s12
    %p162 = scmp.lt.s32.totalorder %s12, 3
    %p163 = pnand %p161, %p162
    %p164 = pneg %p163
    // Predicated region
    $region9: #{bottleneck_forward.7} parent=5 // pred_check
      _
    $region10: #{bottleneck_forward.7} parent=5 // pred_check_branch
      %166 = sbr.rel (%p163) target = $region12
    $region11: #{bottleneck_forward.7} parent=5 // pred_region
      %s167 = ssub.s32 %s12, 1
      // Predicated region
      $region13: #{bottleneck_forward.7} parent=11 // pred_check
        %p168 = pneg %p59
      $region14: #{bottleneck_forward.7} parent=11 // pred_check_branch
        %170 = sbr.rel (%p168) target = $region16
      $region15: #{bottleneck_forward.7} parent=11 // pred_region
        _
      $region16: #{bottleneck_forward.7} parent=11 // pred_fallthru
        _
      // Predicated region
      $region17: #{bottleneck_forward.7} parent=11 // pred_check
        %p171 = pneg %p80
      $region18: #{bottleneck_forward.7} parent=11 // pred_check_branch
        %173 = sbr.rel (%p171) target = $region20
      $region19: #{bottleneck_forward.7} parent=11 // pred_region
        _
      $region20: #{bottleneck_forward.7} parent=11 // pred_fallthru
        _
      // Predicated region
      $region21: #{bottleneck_forward.7} parent=11 // pred_check
        %p174 = pneg %p101
      $region22: #{bottleneck_forward.7} parent=11 // pred_check_branch
        %176 = sbr.rel (%p174) target = $region24
      $region23: #{bottleneck_forward.7} parent=11 // pred_region
        _
      $region24: #{bottleneck_forward.7} parent=11 // pred_fallthru
        _
    $region12: #{bottleneck_forward.7} parent=5 // pred_fallthru
      _
    %p177 = scmp.lt.s32.totalorder %s12, 2
    // Predicated region
    $region25: #{bottleneck_forward.7} parent=5 // pred_check
      %p178 = pneg %p177
    $region26: #{bottleneck_forward.7} parent=5 // pred_check_branch
      %180 = sbr.rel (%p178) target = $region28
    $region27: #{bottleneck_forward.7} parent=5 // pred_region
      // Predicated region
      $region29: #{bottleneck_forward.7} parent=27 // pred_check
        %p181 = pneg %p32
      $region30: #{bottleneck_forward.7} parent=27 // pred_check_branch
        %183 = sbr.rel (%p181) target = $region32
      $region31: #{bottleneck_forward.7} parent=27 // pred_region
        %s184 = smul.u32 8, %s12
        %p185 = scmp.lt.s32.totalorder %s184, 15
        %s186 = scalar_select %p185, %s184, 15
        %s187 = smul.addr %s186, 4
        %s188 = scalar_lea.vmem %s0, %s187
        %s189 = smul.u32 8, %s12
      $region32: #{bottleneck_forward.7} parent=27 // pred_fallthru
        _
    $region28: #{bottleneck_forward.7} parent=5 // pred_fallthru
      _
    %p190 = scmp.le.s32.totalorder 1, %s12
    %p191 = scmp.lt.s32.totalorder %s12, 3
    %p192 = pnand %p190, %p191
    %p193 = pneg %p192
    // Predicated region
    $region33: #{bottleneck_forward.7} parent=5 // pred_check
      _
    $region34: #{bottleneck_forward.7} parent=5 // pred_check_branch
      %195 = sbr.rel (%p192) target = $region36
    $region35: #{bottleneck_forward.7} parent=5 // pred_region
      %s196 = ssub.s32 %s12, 1
      %s197 = smul.u32 8, %s17
      %p198 = scmp.lt.s32.totalorder %s197, 15
      %s199 = scalar_select %p198, %s197, 15
      %s200 = smul.addr %s199, 4
      %s201 = scalar_lea.vmem %s0, %s200
      %p202 = pneg %p38
      %p203 = pneg %p35
      %p204 = pneg %p59
      %p205 = pneg %p56
      %p206 = pneg %p80
      %p207 = pneg %p77
      %p208 = pneg %p101
      %p209 = pneg %p98
      %p210 = pneg %p127
      %p211 = pneg %p124
      %s212 = smul.u32 8, %s17
      %p213 = scmp.lt.s32.totalorder %s212, 15
      %s214 = scalar_select %p213, %s212, 15
      %s215 = smul.addr %s214, 4
      %s216 = scalar_lea.vmem %s4, %s215
      %p217 = pneg %p153
      %p218 = pneg %p150
      %p219 = scmp.lt.s32.totalorder %s17, 1
      %s220 = scalar_select %p219, %s17, 1
      %s221 = smul.addr %s220, 2
      %s222 = scalar_lea.vmem %s5, %s221
      %s223 = smul.u32 8, %s17
      %p224 = scmp.lt.s32.totalorder %s223, 15
      %s225 = scalar_select %p224, %s223, 15
      %s226 = smul.addr %s225, 4
      %s227 = scalar_lea.vmem %s0, %s226
      %s228 = smul.u32 8, %s17
      %s229 = smul.u32 8, %s17
      %p230 = scmp.lt.s32.totalorder %s229, 15
      %s231 = scalar_select %p230, %s229, 15
      %s232 = smul.addr %s231, 4
      %s233 = scalar_lea.vmem %s4, %s232
      %s234 = smul.u32 8, %s17
      %p235 = scmp.lt.s32.totalorder %s17, 1
      %s236 = scalar_select %p235, %s17, 1
      %s237 = smul.addr %s236, 2
      %s238 = scalar_lea.vmem %s5, %s237
      %v240 = vld [vmem:[%s227] sm:$0xf]
      %v241 = vld [vmem:[%s227 + $0x4] sm:$0xf]
      %v242 = vld [vmem:[%s227 + $0x8] sm:$0xf]
      %v243 = vld [vmem:[%s227 + $0xc] sm:$0xf]
      %v244 = vld [vmem:[%s227 + $0x10] sm:$0xf]
      %v245 = vld [vmem:[%s227 + $0x14] sm:$0xf]
      %v246 = vld [vmem:[%s227 + $0x18] sm:$0xf]
      %v247 = vld [vmem:[%s227 + $0x1c] sm:$0xf]
      %v248 = vunpack.c.l.bf16 %v240
      %v249 = vunpack.c.l.bf16 %v241
      %v250 = vunpack.c.l.bf16 %v242
      %v251 = vunpack.c.l.bf16 %v243
      %v252 = vunpack.c.l.bf16 %v244
      %v253 = vunpack.c.l.bf16 %v245
      %v254 = vunpack.c.l.bf16 %v246
      %v255 = vunpack.c.l.bf16 %v247
      %v256 = vld [vmem:[%s1] sm:$0x1]
      %v258 = vlaneseq
      %v259 = vshrl.u32 %v258, 7
      %v260 = vsub.s32 0, %v259
      %v261 = vrot.slane %v256, %v260
      %v263 = vmul.f32 %v248, %v261
      %v264 = vmul.f32 %v249, %v261
      %v265 = vmul.f32 %v250, %v261
      %v266 = vmul.f32 %v251, %v261
      %v267 = vmul.f32 %v252, %v261
      %v268 = vmul.f32 %v253, %v261
      %v269 = vmul.f32 %v254, %v261
      %v270 = vmul.f32 %v255, %v261
      %v271 = vld [vmem:[%s2] sm:$0x1]
      %v273 = vlaneseq
      %v274 = vshrl.u32 %v273, 7
      %v275 = vsub.s32 0, %v274
      %v276 = vrot.slane %v271, %v275
      %v278 = vadd.f32 %v263, %v276
      %v279 = vadd.f32 %v264, %v276
      %v280 = vadd.f32 %v265, %v276
      %v281 = vadd.f32 %v266, %v276
      %v282 = vadd.f32 %v267, %v276
      %v283 = vadd.f32 %v268, %v276
      %v284 = vadd.f32 %v269, %v276
      %v285 = vadd.f32 %v270, %v276
      %v286 = vmax.f32 %v278, 0.0
      %v287 = vmax.f32 %v279, 0.0
      %v288 = vmax.f32 %v280, 0.0
      %v289 = vmax.f32 %v281, 0.0
      %v290 = vmax.f32 %v282, 0.0
      %v291 = vmax.f32 %v283, 0.0
      %v292 = vmax.f32 %v284, 0.0
      %v293 = vmax.f32 %v285, 0.0
      %v294 = vpack.c.bf16 %v287, %v286
      %v295 = vpack.c.bf16 %v289, %v288
      %v296 = vpack.c.bf16 %v291, %v290
      %v297 = vpack.c.bf16 %v293, %v292
      %v298 = vld [vmem:[%s3] sm:$0xf]
      %vm299 = vcmask 64512
      %v301 = vsel %vm299, %v294, 0
      %v304 = vsel %vm299, %v295, 0
      %v307 = vsel %vm299, %v296, 0
      %v310 = vsel %vm299, %v297, 0
      %vm312 = vcmask 1043456
      %v314 = vsel %vm312, %v298, 0
      %316 = vmatprep.subr.bf16.mxu0 0
      %317 = vmatpush1.bf16.msra.mxu0 %v314
      %318 = vmatprep.subr.bf16.mxu0 0
      %319 = vmatpush1.bf16.msra.mxu0 0
      %320 = vmatprep.subr.bf16.mxu0 0
      %321 = vmatpush1.bf16.msra.mxu0 0
      %322 = vmatprep.subr.bf16.mxu0 0
      %323 = vmatpush1.bf16.msra.mxu0 0
      %324 = vmatprep.subr.bf16.mxu0 0
      %325 = vmatpush1.bf16.msra.mxu0 0
      %326 = vmatprep.subr.bf16.mxu0 0
      %327 = vmatpush1.bf16.msra.mxu0 0
      %328 = vmatprep.subr.bf16.mxu0 0
      %329 = vmatpush1.bf16.msra.mxu0 0
      %330 = vmatprep.subr.bf16.mxu0 0
      %331 = vmatpush1.bf16.msra.mxu0 0
      %332 = vmatprep.subr.bf16.mxu0 0
      %333 = vmatpush1.bf16.msra.mxu0 0
      %334 = vmatprep.subr.bf16.mxu0 0
      %335 = vmatpush1.bf16.msra.mxu0 0
      %336 = vmatprep.subr.bf16.mxu0 0
      %337 = vmatpush1.bf16.msra.mxu0 0
      %338 = vmatprep.subr.bf16.mxu0 0
      %339 = vmatpush1.bf16.msra.mxu0 0
      %340 = vmatprep.subr.bf16.mxu0 0
      %341 = vmatpush1.bf16.msra.mxu0 0
      %342 = vmatprep.subr.bf16.mxu0 0
      %343 = vmatpush1.bf16.msra.mxu0 0
      %344 = vmatprep.subr.bf16.mxu0 0
      %345 = vmatpush1.bf16.msra.mxu0 0
      %346 = vmatprep.subr.bf16.mxu0 0
      %347 = vmatpush1.bf16.msra.mxu0 0
      %348 = vmatprep.mubr.bf16.mxu0 0
      %349 = vmatmul.mubr.bf16.gmra.mrb[0].mxu0 %v301
      %v350 = vpop.f32.mrb[0].mxu0
      %v351 = vadd.f32 0.0, %v350
      %v352 = vpop.f32.mrb[0].mxu0
      %v353 = vpop.f32.mrb[0].mxu0
      %v354 = vadd.f32 0.0, %v353
      %v355 = vpop.f32.mrb[0].mxu0
      %356 = vmatprep.mubr.bf16.mxu0 0
      %357 = vmatmul.mubr.bf16.gmra.mrb[0].mxu0 %v304
      %v358 = vpop.f32.mrb[0].mxu0
      %v359 = vadd.f32 0.0, %v358
      %v360 = vpop.f32.mrb[0].mxu0
      %v361 = vpop.f32.mrb[0].mxu0
      %v362 = vadd.f32 0.0, %v361
      %v363 = vpop.f32.mrb[0].mxu0
      %364 = vmatprep.mubr.bf16.mxu0 0
      %365 = vmatmul.mubr.bf16.gmra.mrb[0].mxu0 %v307
      %v366 = vpop.f32.mrb[0].mxu0
      %v367 = vadd.f32 0.0, %v366
      %v368 = vpop.f32.mrb[0].mxu0
      %v369 = vpop.f32.mrb[0].mxu0
      %v370 = vadd.f32 0.0, %v369
      %v371 = vpop.f32.mrb[0].mxu0
      %372 = vmatprep.mubr.bf16.mxu0 0
      %373 = vmatmul.mubr.bf16.gmra.mrb[0].mxu0 %v310
      %v374 = vpop.f32.mrb[0].mxu0
      %v375 = vadd.f32 0.0, %v374
      %v376 = vpop.f32.mrb[0].mxu0
      %v377 = vpop.f32.mrb[0].mxu0
      %v378 = vadd.f32 0.0, %v377
      %v379 = vpop.f32.mrb[0].mxu0
      %380 = vdwg.mxu0
      %v381 = vpack.c.bf16 %v354, %v351
      %v382 = vpack.c.bf16 %v362, %v359
      %v383 = vpack.c.bf16 %v370, %v367
      %v384 = vpack.c.bf16 %v378, %v375
      %v389 = vunpack.c.l.b16 %v381
      %v390 = vunpack.c.h.b16 %v381
      %v391 = vunpack.c.l.b16 %v382
      %v392 = vunpack.c.h.b16 %v382
      %v393 = vunpack.c.l.b16 %v383
      %v394 = vunpack.c.h.b16 %v383
      %v395 = vunpack.c.l.b16 %v384
      %v396 = vunpack.c.h.b16 %v384
      %v397 = vpack.c.b16 %v389, %v389
      %v398 = vpack.c.b16 %v390, %v390
      %v399 = vpack.c.b16 %v391, %v391
      %v400 = vpack.c.b16 %v392, %v392
      %v401 = vpack.c.b16 %v393, %v393
      %v402 = vpack.c.b16 %v394, %v394
      %v403 = vpack.c.b16 %v395, %v395
      %v404 = vpack.c.b16 %v396, %v396
      %vm413 = vcmask 257024
      %414 = vst.msk [vmem:[%s233] sm:$0xf] %vm413, %v397
      %415 = vst.msk [vmem:[%s233 + $0x4] sm:$0xf] %vm413, %v398
      %416 = vst.msk [vmem:[%s233 + $0x8] sm:$0xf] %vm413, %v399
      %417 = vst.msk [vmem:[%s233 + $0xc] sm:$0xf] %vm413, %v400
      %418 = vst.msk [vmem:[%s233 + $0x10] sm:$0xf] %vm413, %v401
      %419 = vst.msk [vmem:[%s233 + $0x14] sm:$0xf] %vm413, %v402
      %420 = vst.msk [vmem:[%s233 + $0x18] sm:$0xf] %vm413, %v403
      %421 = vst.msk [vmem:[%s233 + $0x1c] sm:$0xf] %vm413, %v404
      %vm422 = vcmask 261120
      %v423 = vsel %vm422, %v351, 0.0
      %v424 = vsel %vm422, %v354, 0.0
      %v425 = vadd.f32 %v423, %v424
      %v426 = vsel %vm422, %v359, 0.0
      %v427 = vadd.f32 %v425, %v426
      %v428 = vsel %vm422, %v362, 0.0
      %v429 = vadd.f32 %v427, %v428
      %v430 = vsel %vm422, %v367, 0.0
      %v431 = vadd.f32 %v429, %v430
      %v432 = vsel %vm422, %v370, 0.0
      %v433 = vadd.f32 %v431, %v432
      %v434 = vsel %vm422, %v375, 0.0
      %v435 = vadd.f32 %v433, %v434
      %v436 = vsel %vm422, %v378, 0.0
      %v437 = vadd.f32 %v435, %v436
      %v438 = vrot.slane %v437, 4
      %v439 = vadd.f32 %v437, %v438
      %v440 = vrot.slane %v439, 2
      %v441 = vadd.f32 %v439, %v440
      %v442 = vrot.slane %v441, 1
      %v443 = vadd.f32 %v441, %v442
      %v444 = vmul.f32 %v351, %v351
      %v445 = vmul.f32 %v354, %v354
      %v446 = vmul.f32 %v359, %v359
      %v447 = vmul.f32 %v362, %v362
      %v448 = vmul.f32 %v367, %v367
      %v449 = vmul.f32 %v370, %v370
      %v450 = vmul.f32 %v375, %v375
      %v451 = vmul.f32 %v378, %v378
      %v452 = vsel %vm422, %v444, 0.0
      %v453 = vsel %vm422, %v445, 0.0
      %v454 = vadd.f32 %v452, %v453
      %v455 = vsel %vm422, %v446, 0.0
      %v456 = vadd.f32 %v454, %v455
      %v457 = vsel %vm422, %v447, 0.0
      %v458 = vadd.f32 %v456, %v457
      %v459 = vsel %vm422, %v448, 0.0
      %v460 = vadd.f32 %v458, %v459
      %v461 = vsel %vm422, %v449, 0.0
      %v462 = vadd.f32 %v460, %v461
      %v463 = vsel %vm422, %v450, 0.0
      %v464 = vadd.f32 %v462, %v463
      %v465 = vsel %vm422, %v451, 0.0
      %v466 = vadd.f32 %v464, %v465
      %v467 = vrot.slane %v466, 4
      %v468 = vadd.f32 %v466, %v467
      %v469 = vrot.slane %v468, 2
      %v470 = vadd.f32 %v468, %v469
      %v471 = vrot.slane %v470, 1
      %v472 = vadd.f32 %v470, %v471
      %vm473 = vcmask 1040384
      %v474 = vsel %vm473, %v443, %v472
      %vm475 = vcmask 254976
      %476 = vst.msk [vmem:[%s238] sm:$0x3] %vm475, %v474
      %s477 = smul.u32 8, %s17
      %p478 = scmp.lt.s32.totalorder %s477, 15
      %s479 = scalar_select %p478, %s477, 15
      %s480 = smul.addr %s479, 4
      %s481 = scalar_lea.vmem %s4, %s480
      %p482 = scmp.lt.s32.totalorder %s17, 1
      %s483 = scalar_select %p482, %s17, 1
      %s484 = smul.addr %s483, 2
      %s485 = scalar_lea.vmem %s5, %s484
      // Predicated region
      $region37: #{bottleneck_forward.7} parent=35 // pred_check
        %p486 = pneg %p124
      $region38: #{bottleneck_forward.7} parent=35 // pred_check_branch
        %488 = sbr.rel (%p486) target = $region40
      $region39: #{bottleneck_forward.7} parent=35 // pred_region
        %s489 = smul.u32 8, %s17
      $region40: #{bottleneck_forward.7} parent=35 // pred_fallthru
        _
      // Predicated region
      $region41: #{bottleneck_forward.7} parent=35 // pred_check
        %p490 = pneg %p150
      $region42: #{bottleneck_forward.7} parent=35 // pred_check_branch
        %492 = sbr.rel (%p490) target = $region44
      $region43: #{bottleneck_forward.7} parent=35 // pred_region
        _
      $region44: #{bottleneck_forward.7} parent=35 // pred_fallthru
        _
    $region36: #{bottleneck_forward.7} parent=5 // pred_fallthru
      _
    %p493 = scmp.le.s32.totalorder 2, %s12
    // Predicated region
    $region45: #{bottleneck_forward.7} parent=5 // pred_check
      %p494 = pneg %p493
    $region46: #{bottleneck_forward.7} parent=5 // pred_check_branch
      %496 = sbr.rel (%p494) target = $region48
    $region47: #{bottleneck_forward.7} parent=5 // pred_region
      %s497 = ssub.s32 %s12, 2
      // Predicated region
      $region49: #{bottleneck_forward.7} parent=47 // pred_check
        %p498 = pneg %p130
      $region50: #{bottleneck_forward.7} parent=47 // pred_check_branch
        %500 = sbr.rel (%p498) target = $region52
      $region51: #{bottleneck_forward.7} parent=47 // pred_region
        %s501 = smul.u32 8, %s18
        %p502 = scmp.lt.s32.totalorder %s501, 15
        %s503 = scalar_select %p502, %s501, 15
        %s504 = smul.addr %s503, 4
        %s505 = scalar_lea.vmem %s4, %s504
      $region52: #{bottleneck_forward.7} parent=47 // pred_fallthru
        _
      // Predicated region
      $region53: #{bottleneck_forward.7} parent=47 // pred_check
        %p506 = pneg %p156
      $region54: #{bottleneck_forward.7} parent=47 // pred_check_branch
        %508 = sbr.rel (%p506) target = $region56
      $region55: #{bottleneck_forward.7} parent=47 // pred_region
        %p509 = scmp.lt.s32.totalorder %s18, 1
        %s510 = scalar_select %p509, %s18, 1
        %s511 = smul.addr %s510, 2
        %s512 = scalar_lea.vmem %s5, %s511
      $region56: #{bottleneck_forward.7} parent=47 // pred_fallthru
        _
    $region48: #{bottleneck_forward.7} parent=5 // pred_fallthru
      _
  $region6: #{bottleneck_forward.7} parent=0 // loop_footer
    %s16 = sadd.s32 1, %s12
  $region7: #{bottleneck_forward.7} parent=0 // loop_footer_branch
    %11 = sbr.rel target = $region3
  $region8: #{bottleneck_forward.7} parent=0 // loop_exit
    _

// kernel: bottleneck_forward.6
$region0: #{bottleneck_forward.6}
  #allocation0 [shape = 'u32[]', space=smem, size = 0x4, offset = 0x4, fixed_abs, tag = 'smem constant byte address 0x4 - core index']
  #allocation1 [shape = 'u32[144,128]{1,0:T(1,128)}', space=vmem, size = 0x12000, scoped, tag = 'internal scratch']
  %s0 = inlined_call_operand.vmem [shape: bf16[2,8,8,8], index: 0, kind: input, shape index: {}]
  %s1 = inlined_call_operand.vmem [shape: f32[1,8], index: 1, kind: input, shape index: {}]
  %s2 = inlined_call_operand.vmem [shape: f32[1,8], index: 2, kind: input, shape index: {}]
  %s3 = inlined_call_operand.vmem [shape: bf16[3,3,8,8], index: 3, kind: input, shape index: {}]
  %s4 = inlined_call_operand.vmem [shape: bf16[2,8,8,8], index: 4, kind: output, shape index: {0}]
  %s5 = inlined_call_operand.vmem [shape: f32[2,2,8], index: 5, kind: output, shape index: {1}]
  %6 = xla_tuple %s4, %s5
  %s7 = sld [smem:[#allocation0]]
  $region57: #{bottleneck_forward.6} parent=0
    _
  %s9 = ssub.s32 1, %s7
  %s10 = scalar_select 0, %s9, %s7
  loop: start=0, step=1, limit=4
  $region2: #{bottleneck_forward.6} parent=0 // loop_pre_header
    _
  $region3: #{bottleneck_forward.6} parent=0 // loop_header
    %s12 = sphi 0, %s16
    %p13 = scmp.ge.s32.totalorder %s12, 4
    %s22 = sphi 0, %s24
    %s25 = sphi 0, %s22
    %s26 = sphi 0, %s25
    %s42 = sphi 0, %s26
    %s46 = sphi 0, %s46
    %s48 = sphi 0, %s46
    %s49 = sphi 0, %s48
    %s63 = sphi 0, %s49
    %s67 = sphi 0, %s67
    %s69 = sphi 0, %s67
    %s70 = sphi 0, %s69
    %s84 = sphi 0, %s70
    %s88 = sphi 0, %s88
    %s90 = sphi 0, %s88
    %s91 = sphi 0, %s90
    %s105 = sphi 0, %s91
    %s111 = sphi 0, %s113
    %s114 = sphi 0, %s111
    %s115 = sphi 0, %s114
    %s131 = sphi 0, %s115
    %s137 = sphi 0, %s139
    %s140 = sphi 0, %s137
    %s141 = sphi 0, %s140
    %s157 = sphi 0, %s141
  $region4: #{bottleneck_forward.6} parent=0 // loop_header_branch
    %15 = sbr.rel (%p13) target = $region8
  $region5: #{bottleneck_forward.6} parent=0 // loop_body
    %s17 = ssub.s32 %s12, 1
    %s18 = ssub.s32 %s12, 2
    %s19 = sadd.s32 %s12, 1
    %s20 = ssub.s32 %s12, %s19
    %p21 = scmp.eq.s32.totalorder %s20, 0
    %s23 = sadd.s32 %s22, 1
    %s24 = scalar_select %p21, %s22, %s23
    %p27 = pneg %p21
    %p28 = scmp.eq.s32.totalorder %s12, 1
    %p29 = por %p27, %p28
    %p30 = scmp.ne.s32.totalorder %s22, %s25
    %p31 = scmp.eq.s32.totalorder %s12, 0
    %p32 = por %p30, %p31
    %p33 = scmp.ne.s32.totalorder %s22, %s25
    %p34 = scmp.eq.s32.totalorder %s17, 1
    %p35 = por %p33, %p34
    %p36 = scmp.ne.s32.totalorder %s25, %s26
    %p37 = scmp.eq.s32.totalorder %s17, 0
    %p38 = por %p36, %p37
    %p39 = scmp.ne.s32.totalorder %s25, %s26
    %p40 = scmp.eq.s32.totalorder %s18, 1
    %p41 = por %p39, %p40
    %p43 = scmp.ne.s32.totalorder %s26, %s42
    %p44 = scmp.eq.s32.totalorder %s18, 0
    %p45 = por %p43, %p44
    %s47 = sadd.s32 %s46, 1
    %p50 = scmp.eq.s32.totalorder %s12, 1
    %p51 = scmp.ne.s32.totalorder %s46, %s48
    %p52 = scmp.eq.s32.totalorder %s12, 0
    %p53 = por %p51, %p52
    %p54 = scmp.ne.s32.totalorder %s46, %s48
    %p55 = scmp.eq.s32.totalorder %s17, 1
    %p56 = por %p54, %p55
    %p57 = scmp.ne.s32.totalorder %s48, %s49
    %p58 = scmp.eq.s32.totalorder %s17, 0
    %p59 = por %p57, %p58
    %p60 = scmp.ne.s32.totalorder %s48, %s49
    %p61 = scmp.eq.s32.totalorder %s18, 1
    %p62 = por %p60, %p61
    %p64 = scmp.ne.s32.totalorder %s49, %s63
    %p65 = scmp.eq.s32.totalorder %s18, 0
    %p66 = por %p64, %p65
    %s68 = sadd.s32 %s67, 1
    %p71 = scmp.eq.s32.totalorder %s12, 1
    %p72 = scmp.ne.s32.totalorder %s67, %s69
    %p73 = scmp.eq.s32.totalorder %s12, 0
    %p74 = por %p72, %p73
    %p75 = scmp.ne.s32.totalorder %s67, %s69
    %p76 = scmp.eq.s32.totalorder %s17, 1
    %p77 = por %p75, %p76
    %p78 = scmp.ne.s32.totalorder %s69, %s70
    %p79 = scmp.eq.s32.totalorder %s17, 0
    %p80 = por %p78, %p79
    %p81 = scmp.ne.s32.totalorder %s69, %s70
    %p82 = scmp.eq.s32.totalorder %s18, 1
    %p83 = por %p81, %p82
    %p85 = scmp.ne.s32.totalorder %s70, %s84
    %p86 = scmp.eq.s32.totalorder %s18, 0
    %p87 = por %p85, %p86
    %s89 = sadd.s32 %s88, 1
    %p92 = scmp.eq.s32.totalorder %s12, 1
    %p93 = scmp.ne.s32.totalorder %s88, %s90
    %p94 = scmp.eq.s32.totalorder %s12, 0
    %p95 = por %p93, %p94
    %p96 = scmp.ne.s32.totalorder %s88, %s90
    %p97 = scmp.eq.s32.totalorder %s17, 1
    %p98 = por %p96, %p97
    %p99 = scmp.ne.s32.totalorder %s90, %s91
    %p100 = scmp.eq.s32.totalorder %s17, 0
    %p101 = por %p99, %p100
    %p102 = scmp.ne.s32.totalorder %s90, %s91
    %p103 = scmp.eq.s32.totalorder %s18, 1
    %p104 = por %p102, %p103
    %p106 = scmp.ne.s32.totalorder %s91, %s105
    %p107 = scmp.eq.s32.totalorder %s18, 0
    %p108 = por %p106, %p107
    %s109 = ssub.s32 %s12, %s19
    %p110 = scmp.eq.s32.totalorder %s109, 0
    %s112 = sadd.s32 %s111, 1
    %s113 = scalar_select %p110, %s111, %s112
    %p116 = pneg %p110
    %p117 = scmp.eq.s32.totalorder %s12, 1
    %p118 = por %p116, %p117
    %p119 = scmp.ne.s32.totalorder %s111, %s114
    %p120 = scmp.eq.s32.totalorder %s12, 0
    %p121 = por %p119, %p120
    %p122 = scmp.ne.s32.totalorder %s111, %s114
    %p123 = scmp.eq.s32.totalorder %s17, 1
    %p124 = por %p122, %p123
    %p125 = scmp.ne.s32.totalorder %s114, %s115
    %p126 = scmp.eq.s32.totalorder %s17, 0
    %p127 = por %p125, %p126
    %p128 = scmp.ne.s32.totalorder %s114, %s115
    %p129 = scmp.eq.s32.totalorder %s18, 1
    %p130 = por %p128, %p129
    %p132 = scmp.ne.s32.totalorder %s115, %s131
    %p133 = scmp.eq.s32.totalorder %s18, 0
    %p134 = por %p132, %p133
    %s135 = ssub.s32 %s12, %s19
    %p136 = scmp.eq.s32.totalorder %s135, 0
    %s138 = sadd.s32 %s137, 1
    %s139 = scalar_select %p136, %s137, %s138
    %p142 = pneg %p136
    %p143 = scmp.eq.s32.totalorder %s12, 1
    %p144 = por %p142, %p143
    %p145 = scmp.ne.s32.totalorder %s137, %s140
    %p146 = scmp.eq.s32.totalorder %s12, 0
    %p147 = por %p145, %p146
    %p148 = scmp.ne.s32.totalorder %s137, %s140
    %p149 = scmp.eq.s32.totalorder %s17, 1
    %p150 = por %p148, %p149
    %p151 = scmp.ne.s32.totalorder %s140, %s141
    %p152 = scmp.eq.s32.totalorder %s17, 0
    %p153 = por %p151, %p152
    %p154 = scmp.ne.s32.totalorder %s140, %s141
    %p155 = scmp.eq.s32.totalorder %s18, 1
    %p156 = por %p154, %p155
    %p158 = scmp.ne.s32.totalorder %s141, %s157
    %p159 = scmp.eq.s32.totalorder %s18, 0
    %p160 = por %p158, %p159
    %p161 = scmp.le.s32.totalorder 1, %s12
    %p162 = scmp.lt.s32.totalorder %s12, 3
    %p163 = pnand %p161, %p162
    %p164 = pneg %p163
    // Predicated region
    $region9: #{bottleneck_forward.6} parent=5 // pred_check
      _
    $region10: #{bottleneck_forward.6} parent=5 // pred_check_branch
      %166 = sbr.rel (%p163) target = $region12
    $region11: #{bottleneck_forward.6} parent=5 // pred_region
      %s167 = ssub.s32 %s12, 1
      // Predicated region
      $region13: #{bottleneck_forward.6} parent=11 // pred_check
        %p168 = pneg %p59
      $region14: #{bottleneck_forward.6} parent=11 // pred_check_branch
        %170 = sbr.rel (%p168) target = $region16
      $region15: #{bottleneck_forward.6} parent=11 // pred_region
        _
      $region16: #{bottleneck_forward.6} parent=11 // pred_fallthru
        _
      // Predicated region
      $region17: #{bottleneck_forward.6} parent=11 // pred_check
        %p171 = pneg %p80
      $region18: #{bottleneck_forward.6} parent=11 // pred_check_branch
        %173 = sbr.rel (%p171) target = $region20
      $region19: #{bottleneck_forward.6} parent=11 // pred_region
        _
      $region20: #{bottleneck_forward.6} parent=11 // pred_fallthru
        _
      // Predicated region
      $region21: #{bottleneck_forward.6} parent=11 // pred_check
        %p174 = pneg %p101
      $region22: #{bottleneck_forward.6} parent=11 // pred_check_branch
        %176 = sbr.rel (%p174) target = $region24
      $region23: #{bottleneck_forward.6} parent=11 // pred_region
        _
      $region24: #{bottleneck_forward.6} parent=11 // pred_fallthru
        _
    $region12: #{bottleneck_forward.6} parent=5 // pred_fallthru
      _
    %p177 = scmp.lt.s32.totalorder %s12, 2
    // Predicated region
    $region25: #{bottleneck_forward.6} parent=5 // pred_check
      %p178 = pneg %p177
    $region26: #{bottleneck_forward.6} parent=5 // pred_check_branch
      %180 = sbr.rel (%p178) target = $region28
    $region27: #{bottleneck_forward.6} parent=5 // pred_region
      // Predicated region
      $region29: #{bottleneck_forward.6} parent=27 // pred_check
        %p181 = pneg %p32
      $region30: #{bottleneck_forward.6} parent=27 // pred_check_branch
        %183 = sbr.rel (%p181) target = $region32
      $region31: #{bottleneck_forward.6} parent=27 // pred_region
        %p184 = scmp.lt.s32.totalorder %s12, 1
        %s185 = scalar_select %p184, %s12, 1
        %s186 = smul.addr %s185, 8
        %s187 = smul.addr %s186, 4
        %s188 = scalar_lea.vmem %s0, %s187
      $region32: #{bottleneck_forward.6} parent=27 // pred_fallthru
        _
    $region28: #{bottleneck_forward.6} parent=5 // pred_fallthru
      _
    %p189 = scmp.le.s32.totalorder 1, %s12
    %p190 = scmp.lt.s32.totalorder %s12, 3
    %p191 = pnand %p189, %p190
    %p192 = pneg %p191
    // Predicated region
    $region33: #{bottleneck_forward.6} parent=5 // pred_check
      _
    $region34: #{bottleneck_forward.6} parent=5 // pred_check_branch
      %194 = sbr.rel (%p191) target = $region36
    $region35: #{bottleneck_forward.6} parent=5 // pred_region
      %s195 = ssub.s32 %s12, 1
      %p196 = scmp.lt.s32.totalorder %s17, 1
      %s197 = scalar_select %p196, %s17, 1
      %s198 = smul.addr %s197, 8
      %s199 = smul.addr %s198, 4
      %s200 = scalar_lea.vmem %s0, %s199
      %p201 = pneg %p38
      %p202 = pneg %p35
      %p203 = pneg %p59
      %p204 = pneg %p56
      %p205 = pneg %p80
      %p206 = pneg %p77
      %p207 = pneg %p101
      %p208 = pneg %p98
      %p209 = pneg %p127
      %p210 = pneg %p124
      %p211 = scmp.lt.s32.totalorder %s17, 1
      %s212 = scalar_select %p211, %s17, 1
      %s213 = smul.addr %s212, 8
      %s214 = smul.addr %s213, 4
      %s215 = scalar_lea.vmem %s4, %s214
      %p216 = pneg %p153
      %p217 = pneg %p150
      %p218 = scmp.lt.s32.totalorder %s17, 1
      %s219 = scalar_select %p218, %s17, 1
      %s220 = smul.addr %s219, 2
      %s221 = scalar_lea.vmem %s5, %s220
      %p222 = scmp.lt.s32.totalorder %s17, 1
      %s223 = scalar_select %p222, %s17, 1
      %s224 = smul.addr %s223, 8
      %s225 = smul.addr %s224, 4
      %s226 = scalar_lea.vmem %s0, %s225
      %p227 = scmp.lt.s32.totalorder %s17, 1
      %s228 = scalar_select %p227, %s17, 1
      %s229 = smul.addr %s228, 8
      %s230 = smul.addr %s229, 4
      %s231 = scalar_lea.vmem %s4, %s230
      %p232 = scmp.lt.s32.totalorder %s17, 1
      %s233 = scalar_select %p232, %s17, 1
      %s234 = smul.addr %s233, 2
      %s235 = scalar_lea.vmem %s5, %s234
      %v237 = vld [vmem:[%s1] sm:$0x1]
      %v238 = vld [vmem:[%s2] sm:$0x1]
      %v239 = vld [vmem:[%s226] sm:$0xf]
      %v240 = vld [vmem:[%s226 + $0x4] sm:$0xf]
      %v241 = vld [vmem:[%s226 + $0x8] sm:$0xf]
      %v242 = vld [vmem:[%s226 + $0xc] sm:$0xf]
      %v243 = vld [vmem:[%s226 + $0x10] sm:$0xf]
      %v244 = vld [vmem:[%s226 + $0x14] sm:$0xf]
      %v245 = vld [vmem:[%s226 + $0x18] sm:$0xf]
      %v246 = vld [vmem:[%s226 + $0x1c] sm:$0xf]
      %v247 = vunpack.c.l.bf16 %v239
      %v248 = vunpack.c.l.bf16 %v240
      %v249 = vunpack.c.l.bf16 %v241
      %v250 = vunpack.c.l.bf16 %v242
      %v251 = vunpack.c.l.bf16 %v243
      %v252 = vunpack.c.l.bf16 %v244
      %v253 = vunpack.c.l.bf16 %v245
      %v254 = vunpack.c.l.bf16 %v246
      %v256 = vlaneseq
      %v257 = vshrl.u32 %v256, 7
      %v258 = vsub.s32 0, %v257
      %v259 = vrot.slane %v237, %v258
      %v261 = vmul.f32 %v247, %v259
      %v262 = vmul.f32 %v248, %v259
      %v263 = vmul.f32 %v249, %v259
      %v264 = vmul.f32 %v250, %v259
      %v265 = vmul.f32 %v251, %v259
      %v266 = vmul.f32 %v252, %v259
      %v267 = vmul.f32 %v253, %v259
      %v268 = vmul.f32 %v254, %v259
      %v270 = vlaneseq
      %v271 = vshrl.u32 %v270, 7
      %v272 = vsub.s32 0, %v271
      %v273 = vrot.slane %v238, %v272
      %v275 = vadd.f32 %v261, %v273
      %v276 = vadd.f32 %v262, %v273
      %v277 = vadd.f32 %v263, %v273
      %v278 = vadd.f32 %v264, %v273
      %v279 = vadd.f32 %v265, %v273
      %v280 = vadd.f32 %v266, %v273
      %v281 = vadd.f32 %v267, %v273
      %v282 = vadd.f32 %v268, %v273
      %v283 = vmax.f32 %v275, 0.0
      %v284 = vmax.f32 %v276, 0.0
      %v285 = vmax.f32 %v277, 0.0
      %v286 = vmax.f32 %v278, 0.0
      %v287 = vmax.f32 %v279, 0.0
      %v288 = vmax.f32 %v280, 0.0
      %v289 = vmax.f32 %v281, 0.0
      %v290 = vmax.f32 %v282, 0.0
      %v291 = vpack.c.bf16 %v283, %v283
      %v292 = vpack.c.bf16 %v284, %v284
      %v293 = vpack.c.bf16 %v285, %v285
      %v294 = vpack.c.bf16 %v286, %v286
      %v295 = vpack.c.bf16 %v287, %v287
      %v296 = vpack.c.bf16 %v288, %v288
      %v297 = vpack.c.bf16 %v289, %v289
      %v298 = vpack.c.bf16 %v290, %v290
      %v300 = vshrl.u32 %v291, 16
      %v302 = vrot.slane %v300, 7
      %v303 = vshll.u32 %v291, 16
      %v305 = vor.u32 %v302, %v303
      %v307 = vshrl.u32 %v292, 16
      %v309 = vrot.slane %v307, 7
      %v310 = vshll.u32 %v292, 16
      %v312 = vor.u32 %v309, %v310
      %v314 = vshrl.u32 %v293, 16
      %v316 = vrot.slane %v314, 7
      %v317 = vshll.u32 %v293, 16
      %v319 = vor.u32 %v316, %v317
      %v321 = vshrl.u32 %v294, 16
      %v323 = vrot.slane %v321, 7
      %v324 = vshll.u32 %v294, 16
      %v326 = vor.u32 %v323, %v324
      %v328 = vshrl.u32 %v295, 16
      %v330 = vrot.slane %v328, 7
      %v331 = vshll.u32 %v295, 16
      %v333 = vor.u32 %v330, %v331
      %v335 = vshrl.u32 %v296, 16
      %v337 = vrot.slane %v335, 7
      %v338 = vshll.u32 %v296, 16
      %v340 = vor.u32 %v337, %v338
      %v342 = vshrl.u32 %v297, 16
      %v344 = vrot.slane %v342, 7
      %v345 = vshll.u32 %v297, 16
      %v347 = vor.u32 %v344, %v345
      %v349 = vshrl.u32 %v298, 16
      %v351 = vrot.slane %v349, 7
      %v352 = vshll.u32 %v298, 16
      %v354 = vor.u32 %v351, %v352
      %vm363 = vcmask 1040384
      %vm364 = vsmask.f32 256
      %vm365 = vmand %vm363, %vm364
      %v366 = vsel %vm365, 0, %v305
      %v367 = vsel %vm365, 0, %v312
      %v368 = vsel %vm365, 0, %v319
      %v369 = vsel %vm365, 0, %v326
      %v370 = vsel %vm365, 0, %v333
      %v371 = vsel %vm365, 0, %v340
      %v372 = vsel %vm365, 0, %v347
      %v373 = vsel %vm365, 0, %v354
      %vm374 = vcmask 1044480
      %vm375 = vsmask.f32 4352
      %vm376 = vmand %vm374, %vm375
      %v377 = vsel %vm376, %v366, 0
      %v378 = vsel %vm376, %v367, 0
      %v379 = vsel %vm376, %v368, 0
      %v380 = vsel %vm376, %v369, 0
      %v381 = vsel %vm376, %v370, 0
      %v382 = vsel %vm376, %v371, 0
      %v383 = vsel %vm376, %v372, 0
      %v384 = vsel %vm376, %v373, 0
      %v385 = vld [vmem:[%s3] sm:$0xf]
      %v394 = vunpack.c.l.b16 0
      %v395 = vunpack.c.h.b16 0
      %v396 = vunpack.c.l.b16 %v377
      %v397 = vunpack.c.h.b16 %v377
      %v398 = vunpack.c.l.b16 %v378
      %v399 = vunpack.c.h.b16 %v378
      %v400 = vunpack.c.l.b16 %v379
      %v401 = vunpack.c.h.b16 %v379
      %v402 = vunpack.c.l.b16 %v380
      %v403 = vunpack.c.h.b16 %v380
      %v404 = vunpack.c.l.b16 %v381
      %v405 = vunpack.c.h.b16 %v381
      %v406 = vunpack.c.l.b16 %v382
      %v407 = vunpack.c.h.b16 %v382
      %v408 = vunpack.c.l.b16 %v383
      %v409 = vunpack.c.h.b16 %v383
      %v410 = vpack.c.b16 %v394, %v394
      %v411 = vpack.c.b16 %v395, %v395
      %v412 = vpack.c.b16 %v396, %v396
      %v413 = vpack.c.b16 %v397, %v397
      %v414 = vpack.c.b16 %v398, %v398
      %v415 = vpack.c.b16 %v399, %v399
      %v416 = vpack.c.b16 %v400, %v400
      %v417 = vpack.c.b16 %v401, %v401
      %v418 = vpack.c.b16 %v402, %v402
      %v419 = vpack.c.b16 %v403, %v403
      %v420 = vpack.c.b16 %v404, %v404
      %v421 = vpack.c.b16 %v405, %v405
      %v422 = vpack.c.b16 %v406, %v406
      %v423 = vpack.c.b16 %v407, %v407
      %v424 = vpack.c.b16 %v408, %v408
      %v425 = vpack.c.b16 %v409, %v409
      %vm426 = vsmask.f32 3328
      %vm427 = vsmask.f32 7440
      %vm428 = vmor %vm426, %vm427
      %v430 = vshrl.u32 %v410, 16
      %v432 = vrot.slane %v430, 4
      %v433 = vshll.u32 %v410, 16
      %v435 = vrot.slane %v433, 5
      %v436 = vor.u32 %v432, %v435
      %v437 = vrot.slane %v436, 4
      %v439 = vshll.u32 %v411, 16
      %v441 = vrot.slane %v439, 5
      %v442 = vsel %vm428, %v437, %v441
      %v444 = vshrl.u32 %v412, 16
      %v446 = vrot.slane %v444, 4
      %v447 = vshll.u32 %v412, 16
      %v449 = vrot.slane %v447, 5
      %v450 = vor.u32 %v446, %v449
      %v451 = vrot.slane %v450, 4
      %v453 = vshll.u32 %v413, 16
      %v455 = vrot.slane %v453, 5
      %v456 = vsel %vm428, %v451, %v455
      %v458 = vshrl.u32 %v414, 16
      %v460 = vrot.slane %v458, 4
      %v461 = vshll.u32 %v414, 16
      %v463 = vrot.slane %v461, 5
      %v464 = vor.u32 %v460, %v463
      %v465 = vrot.slane %v464, 4
      %v467 = vshll.u32 %v415, 16
      %v469 = vrot.slane %v467, 5
      %v470 = vsel %vm428, %v465, %v469
      %v472 = vshrl.u32 %v416, 16
      %v474 = vrot.slane %v472, 4
      %v475 = vshll.u32 %v416, 16
      %v477 = vrot.slane %v475, 5
      %v478 = vor.u32 %v474, %v477
      %v479 = vrot.slane %v478, 4
      %v481 = vshll.u32 %v417, 16
      %v483 = vrot.slane %v481, 5
      %v484 = vsel %vm428, %v479, %v483
      %v486 = vshrl.u32 %v418, 16
      %v488 = vrot.slane %v486, 4
      %v489 = vshll.u32 %v418, 16
      %v491 = vrot.slane %v489, 5
      %v492 = vor.u32 %v488, %v491
      %v493 = vrot.slane %v492, 4
      %v495 = vshll.u32 %v419, 16
      %v497 = vrot.slane %v495, 5
      %v498 = vsel %vm428, %v493, %v497
      %v500 = vshrl.u32 %v420, 16
      %v502 = vrot.slane %v500, 4
      %v503 = vshll.u32 %v420, 16
      %v505 = vrot.slane %v503, 5
      %v506 = vor.u32 %v502, %v505
      %v507 = vrot.slane %v506, 4
      %v509 = vshll.u32 %v421, 16
      %v511 = vrot.slane %v509, 5
      %v512 = vsel %vm428, %v507, %v511
      %v514 = vshrl.u32 %v422, 16
      %v516 = vrot.slane %v514, 4
      %v517 = vshll.u32 %v422, 16
      %v519 = vrot.slane %v517, 5
      %v520 = vor.u32 %v516, %v519
      %v521 = vrot.slane %v520, 4
      %v523 = vshll.u32 %v423, 16
      %v525 = vrot.slane %v523, 5
      %v526 = vsel %vm428, %v521, %v525
      %v528 = vshrl.u32 %v424, 16
      %v530 = vrot.slane %v528, 4
      %v531 = vshll.u32 %v424, 16
      %v533 = vrot.slane %v531, 5
      %v534 = vor.u32 %v530, %v533
      %v535 = vrot.slane %v534, 4
      %v537 = vshll.u32 %v425, 16
      %v539 = vrot.slane %v537, 5
      %v540 = vsel %vm428, %v535, %v539
      %s541 = scalar_lea.vmem %s3, 4
      %v542 = vld [vmem:[%s541] sm:$0xf]
      %v543 = vunpack.c.l.b16 %v442
      %v544 = vunpack.c.l.b16 %v456
      %v545 = vunpack.c.l.b16 %v470
      %v546 = vunpack.c.l.b16 %v484
      %v547 = vunpack.c.l.b16 %v498
      %v548 = vunpack.c.l.b16 %v512
      %v549 = vunpack.c.l.b16 %v526
      %v550 = vunpack.c.l.b16 %v540
      %v551 = vpack.c.b16 %v544, %v543
      %v552 = vpack.c.b16 %v546, %v545
      %v553 = vpack.c.b16 %v548, %v547
      %v554 = vpack.c.b16 %v550, %v549
      %vm555 = vcmask 64512
      %v557 = vsel %vm555, %v551, 0
      %v560 = vsel %vm555, %v552, 0
      %v563 = vsel %vm555, %v553, 0
      %v566 = vsel %vm555, %v554, 0
      %vm568 = vcmask 1043456
      %v570 = vsel %vm568, %v542, 0
      %572 = vmatprep.subr.bf16.mxu0 0
      %573 = vmatpush1.bf16.msra.mxu0 %v570
      %574 = vmatprep.subr.bf16.mxu0 0
      %575 = vmatpush1.bf16.msra.mxu0 0
      %576 = vmatprep.subr.bf16.mxu0 0
      %577 = vmatpush1.bf16.msra.mxu0 0
      %578 = vmatprep.subr.bf16.mxu0 0
      %579 = vmatpush1.bf16.msra.mxu0 0
      %580 = vmatprep.subr.bf16.mxu0 0
      %581 = vmatpush1.bf16.msra.mxu0 0
      %582 = vmatprep.subr.bf16.mxu0 0
      %583 = vmatpush1.bf16.msra.mxu0 0
      %584 = vmatprep.subr.bf16.mxu0 0
      %585 = vmatpush1.bf16.msra.mxu0 0
      %586 = vmatprep.subr.bf16.mxu0 0
      %587 = vmatpush1.bf16.msra.mxu0 0
      %588 = vmatprep.subr.bf16.mxu0 0
      %589 = vmatpush1.bf16.msra.mxu0 0
      %590 = vmatprep.subr.bf16.mxu0 0
      %591 = vmatpush1.bf16.msra.mxu0 0
      %592 = vmatprep.subr.bf16.mxu0 0
      %593 = vmatpush1.bf16.msra.mxu0 0
      %594 = vmatprep.subr.bf16.mxu0 0
      %595 = vmatpush1.bf16.msra.mxu0 0
      %596 = vmatprep.subr.bf16.mxu0 0
      %597 = vmatpush1.bf16.msra.mxu0 0
      %598 = vmatprep.subr.bf16.mxu0 0
      %599 = vmatpush1.bf16.msra.mxu0 0
      %600 = vmatprep.subr.bf16.mxu0 0
      %601 = vmatpush1.bf16.msra.mxu0 0
      %602 = vmatprep.subr.bf16.mxu0 0
      %603 = vmatpush1.bf16.msra.mxu0 0
      %604 = vmatprep.mubr.bf16.mxu0 0
      %605 = vmatmul.mubr.bf16.gmra.mrb[0].mxu0 %v557
      %v606 = vpop.f32.mrb[0].mxu0
      %v607 = vadd.f32 0.0, %v606
      %v608 = vpop.f32.mrb[0].mxu0
      %v609 = vpop.f32.mrb[0].mxu0
      %v610 = vadd.f32 0.0, %v609
      %v611 = vpop.f32.mrb[0].mxu0
      %612 = vmatprep.mubr.bf16.mxu0 0
      %613 = vmatmul.mubr.bf16.gmra.mrb[0].mxu0 %v560
      %v614 = vpop.f32.mrb[0].mxu0
      %v615 = vadd.f32 0.0, %v614
      %v616 = vpop.f32.mrb[0].mxu0
      %v617 = vpop.f32.mrb[0].mxu0
      %v618 = vadd.f32 0.0, %v617
      %v619 = vpop.f32.mrb[0].mxu0
      %620 = vmatprep.mubr.bf16.mxu0 0
      %621 = vmatmul.mubr.bf16.gmra.mrb[0].mxu0 %v563
      %v622 = vpop.f32.mrb[0].mxu0
      %v623 = vadd.f32 0.0, %v622
      %v624 = vpop.f32.mrb[0].mxu0
      %v625 = vpop.f32.mrb[0].mxu0
      %v626 = vadd.f32 0.0, %v625
      %v627 = vpop.f32.mrb[0].mxu0
      %628 = vmatprep.mubr.bf16.mxu0 0
      %629 = vmatmul.mubr.bf16.gmra.mrb[0].mxu0 %v566
      %v630 = vpop.f32.mrb[0].mxu0
      %v631 = vadd.f32 0.0, %v630
      %v632 = vpop.f32.mrb[0].mxu0
      %v633 = vpop.f32.mrb[0].mxu0
      %v634 = vadd.f32 0.0, %v633
      %v635 = vpop.f32.mrb[0].mxu0
      %636 = vdwg.mxu0
      %v637 = vpack.c.b16 %v396, %v394
      %v638 = vpack.c.b16 %v400, %v398
      %v639 = vpack.c.b16 %v404, %v402
      %v640 = vpack.c.b16 %v408, %v406
      %v642 = vsel %vm555, %v637, 0
      %v645 = vsel %vm555, %v638, 0
      %v648 = vsel %vm555, %v639, 0
      %v651 = vsel %vm555, %v640, 0
      %v654 = vsel %vm568, %v385, 0
      %656 = vmatprep.subr.bf16.mxu0 0
      %657 = vmatpush1.bf16.msra.mxu0 %v654
      %658 = vmatprep.subr.bf16.mxu0 0
      %659 = vmatpush1.bf16.msra.mxu0 0
      %660 = vmatprep.subr.bf16.mxu0 0
      %661 = vmatpush1.bf16.msra.mxu0 0
      %662 = vmatprep.subr.bf16.mxu0 0
      %663 = vmatpush1.bf16.msra.mxu0 0
      %664 = vmatprep.subr.bf16.mxu0 0
      %665 = vmatpush1.bf16.msra.mxu0 0
      %666 = vmatprep.subr.bf16.mxu0 0
      %667 = vmatpush1.bf16.msra.mxu0 0
      %668 = vmatprep.subr.bf16.mxu0 0
      %669 = vmatpush1.bf16.msra.mxu0 0
      %670 = vmatprep.subr.bf16.mxu0 0
      %671 = vmatpush1.bf16.msra.mxu0 0
      %672 = vmatprep.subr.bf16.mxu0 0
      %673 = vmatpush1.bf16.msra.mxu0 0
      %674 = vmatprep.subr.bf16.mxu0 0
      %675 = vmatpush1.bf16.msra.mxu0 0
      %676 = vmatprep.subr.bf16.mxu0 0
      %677 = vmatpush1.bf16.msra.mxu0 0
      %678 = vmatprep.subr.bf16.mxu0 0
      %679 = vmatpush1.bf16.msra.mxu0 0
      %680 = vmatprep.subr.bf16.mxu0 0
      %681 = vmatpush1.bf16.msra.mxu0 0
      %682 = vmatprep.subr.bf16.mxu0 0
      %683 = vmatpush1.bf16.msra.mxu0 0
      %684 = vmatprep.subr.bf16.mxu0 0
      %685 = vmatpush1.bf16.msra.mxu0 0
      %686 = vmatprep.subr.bf16.mxu0 0
      %687 = vmatpush1.bf16.msra.mxu0 0
      %688 = vmatprep.mubr.bf16.mxu0 0
      %689 = vmatmul.mubr.bf16.gmra.mrb[0].mxu0 %v642
      %v690 = vpop.f32.mrb[0].mxu0
      %v691 = vadd.f32 %v607, %v690
      %v692 = vpop.f32.mrb[0].mxu0
      %v693 = vpop.f32.mrb[0].mxu0
      %v694 = vadd.f32 %v610, %v693
      %v695 = vpop.f32.mrb[0].mxu0
      %696 = vmatprep.mubr.bf16.mxu0 0
      %697 = vmatmul.mubr.bf16.gmra.mrb[0].mxu0 %v645
      %v698 = vpop.f32.mrb[0].mxu0
      %v699 = vadd.f32 %v615, %v698
      %v700 = vpop.f32.mrb[0].mxu0
      %v701 = vpop.f32.mrb[0].mxu0
      %v702 = vadd.f32 %v618, %v701
      %v703 = vpop.f32.mrb[0].mxu0
      %704 = vmatprep.mubr.bf16.mxu0 0
      %705 = vmatmul.mubr.bf16.gmra.mrb[0].mxu0 %v648
      %v706 = vpop.f32.mrb[0].mxu0
      %v707 = vadd.f32 %v623, %v706
      %v708 = vpop.f32.mrb[0].mxu0
      %v709 = vpop.f32.mrb[0].mxu0
      %v710 = vadd.f32 %v626, %v709
      %v711 = vpop.f32.mrb[0].mxu0
      %712 = vmatprep.mubr.bf16.mxu0 0
      %713 = vmatmul.mubr.bf16.gmra.mrb[0].mxu0 %v651
      %v714 = vpop.f32.mrb[0].mxu0
      %v715 = vadd.f32 %v631, %v714
      %v716 = vpop.f32.mrb[0].mxu0
      %v717 = vpop.f32.mrb[0].mxu0
      %v718 = vadd.f32 %v634, %v717
      %v719 = vpop.f32.mrb[0].mxu0
      %720 = vdwg.mxu0
      %vm721 = vcmask 1042432
      %vm722 = vcmask 1046532
      %vm723 = vmor %vm721, %vm722
      %v724 = vrot.slane %v410, 5
      %v725 = vrot.slane %v724, 4
      %v726 = vrot.slane %v411, 5
      %v727 = vsel %vm723, %v725, %v726
      %v728 = vrot.slane %v412, 5
      %v729 = vrot.slane %v728, 4
      %v730 = vrot.slane %v413, 5
      %v731 = vsel %vm723, %v729, %v730
      %v732 = vrot.slane %v414, 5
      %v733 = vrot.slane %v732, 4
      %v734 = vrot.slane %v415, 5
      %v735 = vsel %vm723, %v733, %v734
      %v736 = vrot.slane %v416, 5
      %v737 = vrot.slane %v736, 4
      %v738 = vrot.slane %v417, 5
      %v739 = vsel %vm723, %v737, %v738
      %v740 = vrot.slane %v418, 5
      %v741 = vrot.slane %v740, 4
      %v742 = vrot.slane %v419, 5
      %v743 = vsel %vm723, %v741, %v742
      %v744 = vrot.slane %v420, 5
      %v745 = vrot.slane %v744, 4
      %v746 = vrot.slane %v421, 5
      %v747 = vsel %vm723, %v745, %v746
      %v748 = vrot.slane %v422, 5
      %v749 = vrot.slane %v748, 4
      %v750 = vrot.slane %v423, 5
      %v751 = vsel %vm723, %v749, %v750
      %v752 = vrot.slane %v424, 5
      %v753 = vrot.slane %v752, 4
      %v754 = vrot.slane %v425, 5
      %v755 = vsel %vm723, %v753, %v754
      %s756 = scalar_lea.vmem %s3, 8
      %v757 = vld [vmem:[%s756] sm:$0xf]
      %v758 = vunpack.c.l.b16 %v727
      %v759 = vunpack.c.l.b16 %v731
      %v760 = vunpack.c.l.b16 %v735
      %v761 = vunpack.c.l.b16 %v739
      %v762 = vunpack.c.l.b16 %v743
      %v763 = vunpack.c.l.b16 %v747
      %v764 = vunpack.c.l.b16 %v751
      %v765 = vunpack.c.l.b16 %v755
      %v766 = vpack.c.b16 %v759, %v758
      %v767 = vpack.c.b16 %v761, %v760
      %v768 = vpack.c.b16 %v763, %v762
      %v769 = vpack.c.b16 %v765, %v764
      %v771 = vsel %vm555, %v766, 0
      %v774 = vsel %vm555, %v767, 0
      %v777 = vsel %vm555, %v768, 0
      %v780 = vsel %vm555, %v769, 0
      %v783 = vsel %vm568, %v757, 0
      %785 = vmatprep.subr.bf16.mxu0 0
      %786 = vmatpush1.bf16.msra.mxu0 %v783
      %787 = vmatprep.subr.bf16.mxu0 0
      %788 = vmatpush1.bf16.msra.mxu0 0
      %789 = vmatprep.subr.bf16.mxu0 0
      %790 = vmatpush1.bf16.msra.mxu0 0
      %791 = vmatprep.subr.bf16.mxu0 0
      %792 = vmatpush1.bf16.msra.mxu0 0
      %793 = vmatprep.subr.bf16.mxu0 0
      %794 = vmatpush1.bf16.msra.mxu0 0
      %795 = vmatprep.subr.bf16.mxu0 0
      %796 = vmatpush1.bf16.msra.mxu0 0
      %797 = vmatprep.subr.bf16.mxu0 0
      %798 = vmatpush1.bf16.msra.mxu0 0
      %799 = vmatprep.subr.bf16.mxu0 0
      %800 = vmatpush1.bf16.msra.mxu0 0
      %801 = vmatprep.subr.bf16.mxu0 0
      %802 = vmatpush1.bf16.msra.mxu0 0
      %803 = vmatprep.subr.bf16.mxu0 0
      %804 = vmatpush1.bf16.msra.mxu0 0
      %805 = vmatprep.subr.bf16.mxu0 0
      %806 = vmatpush1.bf16.msra.mxu0 0
      %807 = vmatprep.subr.bf16.mxu0 0
      %808 = vmatpush1.bf16.msra.mxu0 0
      %809 = vmatprep.subr.bf16.mxu0 0
      %810 = vmatpush1.bf16.msra.mxu0 0
      %811 = vmatprep.subr.bf16.mxu0 0
      %812 = vmatpush1.bf16.msra.mxu0 0
      %813 = vmatprep.subr.bf16.mxu0 0
      %814 = vmatpush1.bf16.msra.mxu0 0
      %815 = vmatprep.subr.bf16.mxu0 0
      %816 = vmatpush1.bf16.msra.mxu0 0
      %817 = vmatprep.mubr.bf16.mxu0 0
      %818 = vmatmul.mubr.bf16.gmra.mrb[0].mxu0 %v771
      %v819 = vpop.f32.mrb[0].mxu0
      %v820 = vadd.f32 0.0, %v819
      %v821 = vpop.f32.mrb[0].mxu0
      %v822 = vpop.f32.mrb[0].mxu0
      %v823 = vadd.f32 0.0, %v822
      %v824 = vpop.f32.mrb[0].mxu0
      %825 = vmatprep.mubr.bf16.mxu0 0
      %826 = vmatmul.mubr.bf16.gmra.mrb[0].mxu0 %v774
      %v827 = vpop.f32.mrb[0].mxu0
      %v828 = vadd.f32 0.0, %v827
      %v829 = vpop.f32.mrb[0].mxu0
      %v830 = vpop.f32.mrb[0].mxu0
      %v831 = vadd.f32 0.0, %v830
      %v832 = vpop.f32.mrb[0].mxu0
      %833 = vmatprep.mubr.bf16.mxu0 0
      %834 = vmatmul.mubr.bf16.gmra.mrb[0].mxu0 %v777
      %v835 = vpop.f32.mrb[0].mxu0
      %v836 = vadd.f32 0.0, %v835
      %v837 = vpop.f32.mrb[0].mxu0
      %v838 = vpop.f32.mrb[0].mxu0
      %v839 = vadd.f32 0.0, %v838
      %v840 = vpop.f32.mrb[0].mxu0
      %841 = vmatprep.mubr.bf16.mxu0 0
      %842 = vmatmul.mubr.bf16.gmra.mrb[0].mxu0 %v780
      %v843 = vpop.f32.mrb[0].mxu0
      %v844 = vadd.f32 0.0, %v843
      %v845 = vpop.f32.mrb[0].mxu0
      %v846 = vpop.f32.mrb[0].mxu0
      %v847 = vadd.f32 0.0, %v846
      %v848 = vpop.f32.mrb[0].mxu0
      %849 = vdwg.mxu0
      %v850 = vadd.f32 %v691, %v820
      %v851 = vadd.f32 %v694, %v823
      %v852 = vadd.f32 %v699, %v828
      %v853 = vadd.f32 %v702, %v831
      %v854 = vadd.f32 %v707, %v836
      %v855 = vadd.f32 %v710, %v839
      %v856 = vadd.f32 %v715, %v844
      %v857 = vadd.f32 %v718, %v847
      %s858 = scalar_lea.vmem %s3, 12
      %v859 = vld [vmem:[%s858] sm:$0xf]
      %v861 = vunpack.c.l.b16 %v384
      %v862 = vpack.c.b16 %v398, %v396
      %v863 = vpack.c.b16 %v402, %v400
      %v864 = vpack.c.b16 %v406, %v404
      %v865 = vpack.c.b16 %v861, %v408
      %v867 = vsel %vm555, %v862, 0
      %v870 = vsel %vm555, %v863, 0
      %v873 = vsel %vm555, %v864, 0
      %v876 = vsel %vm555, %v865, 0
      %v879 = vsel %vm568, %v859, 0
      %881 = vmatprep.subr.bf16.mxu0 0
      %882 = vmatpush1.bf16.msra.mxu0 %v879
      %883 = vmatprep.subr.bf16.mxu0 0
      %884 = vmatpush1.bf16.msra.mxu0 0
      %885 = vmatprep.subr.bf16.mxu0 0
      %886 = vmatpush1.bf16.msra.mxu0 0
      %887 = vmatprep.subr.bf16.mxu0 0
      %888 = vmatpush1.bf16.msra.mxu0 0
      %889 = vmatprep.subr.bf16.mxu0 0
      %890 = vmatpush1.bf16.msra.mxu0 0
      %891 = vmatprep.subr.bf16.mxu0 0
      %892 = vmatpush1.bf16.msra.mxu0 0
      %893 = vmatprep.subr.bf16.mxu0 0
      %894 = vmatpush1.bf16.msra.mxu0 0
      %895 = vmatprep.subr.bf16.mxu0 0
      %896 = vmatpush1.bf16.msra.mxu0 0
      %897 = vmatprep.subr.bf16.mxu0 0
      %898 = vmatpush1.bf16.msra.mxu0 0
      %899 = vmatprep.subr.bf16.mxu0 0
      %900 = vmatpush1.bf16.msra.mxu0 0
      %901 = vmatprep.subr.bf16.mxu0 0
      %902 = vmatpush1.bf16.msra.mxu0 0
      %903 = vmatprep.subr.bf16.mxu0 0
      %904 = vmatpush1.bf16.msra.mxu0 0
      %905 = vmatprep.subr.bf16.mxu0 0
      %906 = vmatpush1.bf16.msra.mxu0 0
      %907 = vmatprep.subr.bf16.mxu0 0
      %908 = vmatpush1.bf16.msra.mxu0 0
      %909 = vmatprep.subr.bf16.mxu0 0
      %910 = vmatpush1.bf16.msra.mxu0 0
      %911 = vmatprep.subr.bf16.mxu0 0
      %912 = vmatpush1.bf16.msra.mxu0 0
      %913 = vmatprep.mubr.bf16.mxu0 0
      %914 = vmatmul.mubr.bf16.gmra.mrb[0].mxu0 %v867
      %v915 = vpop.f32.mrb[0].mxu0
      %v916 = vadd.f32 0.0, %v915
      %v917 = vpop.f32.mrb[0].mxu0
      %v918 = vpop.f32.mrb[0].mxu0
      %v919 = vadd.f32 0.0, %v918
      %v920 = vpop.f32.mrb[0].mxu0
      %921 = vmatprep.mubr.bf16.mxu0 0
      %922 = vmatmul.mubr.bf16.gmra.mrb[0].mxu0 %v870
      %v923 = vpop.f32.mrb[0].mxu0
      %v924 = vadd.f32 0.0, %v923
      %v925 = vpop.f32.mrb[0].mxu0
      %v926 = vpop.f32.mrb[0].mxu0
      %v927 = vadd.f32 0.0, %v926
      %v928 = vpop.f32.mrb[0].mxu0
      %929 = vmatprep.mubr.bf16.mxu0 0
      %930 = vmatmul.mubr.bf16.gmra.mrb[0].mxu0 %v873
      %v931 = vpop.f32.mrb[0].mxu0
      %v932 = vadd.f32 0.0, %v931
      %v933 = vpop.f32.mrb[0].mxu0
      %v934 = vpop.f32.mrb[0].mxu0
      %v935 = vadd.f32 0.0, %v934
      %v936 = vpop.f32.mrb[0].mxu0
      %937 = vmatprep.mubr.bf16.mxu0 0
      %938 = vmatmul.mubr.bf16.gmra.mrb[0].mxu0 %v876
      %v939 = vpop.f32.mrb[0].mxu0
      %v940 = vadd.f32 0.0, %v939
      %v941 = vpop.f32.mrb[0].mxu0
      %v942 = vpop.f32.mrb[0].mxu0
      %v943 = vadd.f32 0.0, %v942
      %v944 = vpop.f32.mrb[0].mxu0
      %945 = vdwg.mxu0
      %v946 = vadd.f32 %v850, %v916
      %v947 = vadd.f32 %v851, %v919
      %v948 = vadd.f32 %v852, %v924
      %v949 = vadd.f32 %v853, %v927
      %v950 = vadd.f32 %v854, %v932
      %v951 = vadd.f32 %v855, %v935
      %v952 = vadd.f32 %v856, %v940
      %v953 = vadd.f32 %v857, %v943
      %v954 = vunpack.c.h.b16 %v384
      %v955 = vpack.c.b16 %v861, %v861
      %v956 = vpack.c.b16 %v954, %v954
      %v958 = vshrl.u32 %v955, 16
      %v960 = vrot.slane %v958, 4
      %v961 = vshll.u32 %v955, 16
      %v963 = vrot.slane %v961, 5
      %v964 = vor.u32 %v960, %v963
      %v965 = vrot.slane %v964, 4
      %v967 = vshll.u32 %v956, 16
      %v969 = vrot.slane %v967, 5
      %v970 = vsel %vm428, %v965, %v969
      %s971 = scalar_lea.vmem %s3, 16
      %v972 = vld [vmem:[%s971] sm:$0xf]
      %v973 = vunpack.c.l.b16 %v970
      %v974 = vpack.c.b16 %v545, %v544
      %v975 = vpack.c.b16 %v547, %v546
      %v976 = vpack.c.b16 %v549, %v548
      %v977 = vpack.c.b16 %v973, %v550
      %v979 = vsel %vm555, %v974, 0
      %v982 = vsel %vm555, %v975, 0
      %v985 = vsel %vm555, %v976, 0
      %v988 = vsel %vm555, %v977, 0
      %v991 = vsel %vm568, %v972, 0
      %993 = vmatprep.subr.bf16.mxu0 0
      %994 = vmatpush1.bf16.msra.mxu0 %v991
      %995 = vmatprep.subr.bf16.mxu0 0
      %996 = vmatpush1.bf16.msra.mxu0 0
      %997 = vmatprep.subr.bf16.mxu0 0
      %998 = vmatpush1.bf16.msra.mxu0 0
      %999 = vmatprep.subr.bf16.mxu0 0
      %1000 = vmatpush1.bf16.msra.mxu0 0
      %1001 = vmatprep.subr.bf16.mxu0 0
      %1002 = vmatpush1.bf16.msra.mxu0 0
      %1003 = vmatprep.subr.bf16.mxu0 0
      %1004 = vmatpush1.bf16.msra.mxu0 0
      %1005 = vmatprep.subr.bf16.mxu0 0
      %1006 = vmatpush1.bf16.msra.mxu0 0
      %1007 = vmatprep.subr.bf16.mxu0 0
      %1008 = vmatpush1.bf16.msra.mxu0 0
      %1009 = vmatprep.subr.bf16.mxu0 0
      %1010 = vmatpush1.bf16.msra.mxu0 0
      %1011 = vmatprep.subr.bf16.mxu0 0
      %1012 = vmatpush1.bf16.msra.mxu0 0
      %1013 = vmatprep.subr.bf16.mxu0 0
      %1014 = vmatpush1.bf16.msra.mxu0 0
      %1015 = vmatprep.subr.bf16.mxu0 0
      %1016 = vmatpush1.bf16.msra.mxu0 0
      %1017 = vmatprep.subr.bf16.mxu0 0
      %1018 = vmatpush1.bf16.msra.mxu0 0
      %1019 = vmatprep.subr.bf16.mxu0 0
      %1020 = vmatpush1.bf16.msra.mxu0 0
      %1021 = vmatprep.subr.bf16.mxu0 0
      %1022 = vmatpush1.bf16.msra.mxu0 0
      %1023 = vmatprep.subr.bf16.mxu0 0
      %1024 = vmatpush1.bf16.msra.mxu0 0
      %1025 = vmatprep.mubr.bf16.mxu0 0
      %1026 = vmatmul.mubr.bf16.gmra.mrb[0].mxu0 %v979
      %v1027 = vpop.f32.mrb[0].mxu0
      %v1028 = vadd.f32 0.0, %v1027
      %v1029 = vpop.f32.mrb[0].mxu0
      %v1030 = vpop.f32.mrb[0].mxu0
      %v1031 = vadd.f32 0.0, %v1030
      %v1032 = vpop.f32.mrb[0].mxu0
      %1033 = vmatprep.mubr.bf16.mxu0 0
      %1034 = vmatmul.mubr.bf16.gmra.mrb[0].mxu0 %v982
      %v1035 = vpop.f32.mrb[0].mxu0
      %v1036 = vadd.f32 0.0, %v1035
      %v1037 = vpop.f32.mrb[0].mxu0
      %v1038 = vpop.f32.mrb[0].mxu0
      %v1039 = vadd.f32 0.0, %v1038
      %v1040 = vpop.f32.mrb[0].mxu0
      %1041 = vmatprep.mubr.bf16.mxu0 0
      %1042 = vmatmul.mubr.bf16.gmra.mrb[0].mxu0 %v985
      %v1043 = vpop.f32.mrb[0].mxu0
      %v1044 = vadd.f32 0.0, %v1043
      %v1045 = vpop.f32.mrb[0].mxu0
      %v1046 = vpop.f32.mrb[0].mxu0
      %v1047 = vadd.f32 0.0, %v1046
      %v1048 = vpop.f32.mrb[0].mxu0
      %1049 = vmatprep.mubr.bf16.mxu0 0
      %1050 = vmatmul.mubr.bf16.gmra.mrb[0].mxu0 %v988
      %v1051 = vpop.f32.mrb[0].mxu0
      %v1052 = vadd.f32 0.0, %v1051
      %v1053 = vpop.f32.mrb[0].mxu0
      %v1054 = vpop.f32.mrb[0].mxu0
      %v1055 = vadd.f32 0.0, %v1054
      %v1056 = vpop.f32.mrb[0].mxu0
      %1057 = vdwg.mxu0
      %v1058 = vadd.f32 %v946, %v1028
      %v1059 = vadd.f32 %v947, %v1031
      %v1060 = vadd.f32 %v948, %v1036
      %v1061 = vadd.f32 %v949, %v1039
      %v1062 = vadd.f32 %v950, %v1044
      %v1063 = vadd.f32 %v951, %v1047
      %v1064 = vadd.f32 %v952, %v1052
      %v1065 = vadd.f32 %v953, %v1055
      %v1066 = vrot.slane %v955, 5
      %v1067 = vrot.slane %v1066, 4
      %v1068 = vrot.slane %v956, 5
      %v1069 = vsel %vm723, %v1067, %v1068
      %s1070 = scalar_lea.vmem %s3, 20
      %v1071 = vld [vmem:[%s1070] sm:$0xf]
      %v1072 = vunpack.c.l.b16 %v1069
      %v1073 = vpack.c.b16 %v760, %v759
      %v1074 = vpack.c.b16 %v762, %v761
      %v1075 = vpack.c.b16 %v764, %v763
      %v1076 = vpack.c.b16 %v1072, %v765
      %v1078 = vsel %vm555, %v1073, 0
      %v1081 = vsel %vm555, %v1074, 0
      %v1084 = vsel %vm555, %v1075, 0
      %v1087 = vsel %vm555, %v1076, 0
      %v1090 = vsel %vm568, %v1071, 0
      %1092 = vmatprep.subr.bf16.mxu0 0
      %1093 = vmatpush1.bf16.msra.mxu0 %v1090
      %1094 = vmatprep.subr.bf16.mxu0 0
      %1095 = vmatpush1.bf16.msra.mxu0 0
      %1096 = vmatprep.subr.bf16.mxu0 0
      %1097 = vmatpush1.bf16.msra.mxu0 0
      %1098 = vmatprep.subr.bf16.mxu0 0
      %1099 = vmatpush1.bf16.msra.mxu0 0
      %1100 = vmatprep.subr.bf16.mxu0 0
      %1101 = vmatpush1.bf16.msra.mxu0 0
      %1102 = vmatprep.subr.bf16.mxu0 0
      %1103 = vmatpush1.bf16.msra.mxu0 0
      %1104 = vmatprep.subr.bf16.mxu0 0
      %1105 = vmatpush1.bf16.msra.mxu0 0
      %1106 = vmatprep.subr.bf16.mxu0 0
      %1107 = vmatpush1.bf16.msra.mxu0 0
      %1108 = vmatprep.subr.bf16.mxu0 0
      %1109 = vmatpush1.bf16.msra.mxu0 0
      %1110 = vmatprep.subr.bf16.mxu0 0
      %1111 = vmatpush1.bf16.msra.mxu0 0
      %1112 = vmatprep.subr.bf16.mxu0 0
      %1113 = vmatpush1.bf16.msra.mxu0 0
      %1114 = vmatprep.subr.bf16.mxu0 0
      %1115 = vmatpush1.bf16.msra.mxu0 0
      %1116 = vmatprep.subr.bf16.mxu0 0
      %1117 = vmatpush1.bf16.msra.mxu0 0
      %1118 = vmatprep.subr.bf16.mxu0 0
      %1119 = vmatpush1.bf16.msra.mxu0 0
      %1120 = vmatprep.subr.bf16.mxu0 0
      %1121 = vmatpush1.bf16.msra.mxu0 0
      %1122 = vmatprep.subr.bf16.mxu0 0
      %1123 = vmatpush1.bf16.msra.mxu0 0
      %1124 = vmatprep.mubr.bf16.mxu0 0
      %1125 = vmatmul.mubr.bf16.gmra.mrb[0].mxu0 %v1078
      %v1126 = vpop.f32.mrb[0].mxu0
      %v1127 = vadd.f32 0.0, %v1126
      %v1128 = vpop.f32.mrb[0].mxu0
      %v1129 = vpop.f32.mrb[0].mxu0
      %v1130 = vadd.f32 0.0, %v1129
      %v1131 = vpop.f32.mrb[0].mxu0
      %1132 = vmatprep.mubr.bf16.mxu0 0
      %1133 = vmatmul.mubr.bf16.gmra.mrb[0].mxu0 %v1081
      %v1134 = vpop.f32.mrb[0].mxu0
      %v1135 = vadd.f32 0.0, %v1134
      %v1136 = vpop.f32.mrb[0].mxu0
      %v1137 = vpop.f32.mrb[0].mxu0
      %v1138 = vadd.f32 0.0, %v1137
      %v1139 = vpop.f32.mrb[0].mxu0
      %1140 = vmatprep.mubr.bf16.mxu0 0
      %1141 = vmatmul.mubr.bf16.gmra.mrb[0].mxu0 %v1084
      %v1142 = vpop.f32.mrb[0].mxu0
      %v1143 = vadd.f32 0.0, %v1142
      %v1144 = vpop.f32.mrb[0].mxu0
      %v1145 = vpop.f32.mrb[0].mxu0
      %v1146 = vadd.f32 0.0, %v1145
      %v1147 = vpop.f32.mrb[0].mxu0
      %1148 = vmatprep.mubr.bf16.mxu0 0
      %1149 = vmatmul.mubr.bf16.gmra.mrb[0].mxu0 %v1087
      %v1150 = vpop.f32.mrb[0].mxu0
      %v1151 = vadd.f32 0.0, %v1150
      %v1152 = vpop.f32.mrb[0].mxu0
      %v1153 = vpop.f32.mrb[0].mxu0
      %v1154 = vadd.f32 0.0, %v1153
      %v1155 = vpop.f32.mrb[0].mxu0
      %1156 = vdwg.mxu0
      %v1157 = vadd.f32 %v1058, %v1127
      %v1158 = vadd.f32 %v1059, %v1130
      %v1159 = vadd.f32 %v1060, %v1135
      %v1160 = vadd.f32 %v1061, %v1138
      %v1161 = vadd.f32 %v1062, %v1143
      %v1162 = vadd.f32 %v1063, %v1146
      %v1163 = vadd.f32 %v1064, %v1151
      %v1164 = vadd.f32 %v1065, %v1154
      %s1165 = scalar_lea.vmem %s3, 24
      %v1166 = vld [vmem:[%s1165] sm:$0xf]
      %v1167 = vpack.c.b16 %v394, %v861
      %v1169 = vsel %vm555, %v1167, 0
      %v1172 = vsel %vm568, %v1166, 0
      %1174 = vmatprep.subr.bf16.mxu0 0
      %1175 = vmatpush1.bf16.msra.mxu0 %v1172
      %1176 = vmatprep.subr.bf16.mxu0 0
      %1177 = vmatpush1.bf16.msra.mxu0 0
      %1178 = vmatprep.subr.bf16.mxu0 0
      %1179 = vmatpush1.bf16.msra.mxu0 0
      %1180 = vmatprep.subr.bf16.mxu0 0
      %1181 = vmatpush1.bf16.msra.mxu0 0
      %1182 = vmatprep.subr.bf16.mxu0 0
      %1183 = vmatpush1.bf16.msra.mxu0 0
      %1184 = vmatprep.subr.bf16.mxu0 0
      %1185 = vmatpush1.bf16.msra.mxu0 0
      %1186 = vmatprep.subr.bf16.mxu0 0
      %1187 = vmatpush1.bf16.msra.mxu0 0
      %1188 = vmatprep.subr.bf16.mxu0 0
      %1189 = vmatpush1.bf16.msra.mxu0 0
      %1190 = vmatprep.subr.bf16.mxu0 0
      %1191 = vmatpush1.bf16.msra.mxu0 0
      %1192 = vmatprep.subr.bf16.mxu0 0
      %1193 = vmatpush1.bf16.msra.mxu0 0
      %1194 = vmatprep.subr.bf16.mxu0 0
      %1195 = vmatpush1.bf16.msra.mxu0 0
      %1196 = vmatprep.subr.bf16.mxu0 0
      %1197 = vmatpush1.bf16.msra.mxu0 0
      %1198 = vmatprep.subr.bf16.mxu0 0
      %1199 = vmatpush1.bf16.msra.mxu0 0
      %1200 = vmatprep.subr.bf16.mxu0 0
      %1201 = vmatpush1.bf16.msra.mxu0 0
      %1202 = vmatprep.subr.bf16.mxu0 0
      %1203 = vmatpush1.bf16.msra.mxu0 0
      %1204 = vmatprep.subr.bf16.mxu0 0
      %1205 = vmatpush1.bf16.msra.mxu0 0
      %1206 = vmatprep.mubr.bf16.mxu0 0
      %1207 = vmatmul.mubr.bf16.gmra.mrb[0].mxu0 %v645
      %v1208 = vpop.f32.mrb[0].mxu0
      %v1209 = vadd.f32 0.0, %v1208
      %v1210 = vpop.f32.mrb[0].mxu0
      %v1211 = vpop.f32.mrb[0].mxu0
      %v1212 = vadd.f32 0.0, %v1211
      %v1213 = vpop.f32.mrb[0].mxu0
      %1214 = vmatprep.mubr.bf16.mxu0 0
      %1215 = vmatmul.mubr.bf16.gmra.mrb[0].mxu0 %v648
      %v1216 = vpop.f32.mrb[0].mxu0
      %v1217 = vadd.f32 0.0, %v1216
      %v1218 = vpop.f32.mrb[0].mxu0
      %v1219 = vpop.f32.mrb[0].mxu0
      %v1220 = vadd.f32 0.0, %v1219
      %v1221 = vpop.f32.mrb[0].mxu0
      %1222 = vmatprep.mubr.bf16.mxu0 0
      %1223 = vmatmul.mubr.bf16.gmra.mrb[0].mxu0 %v651
      %v1224 = vpop.f32.mrb[0].mxu0
      %v1225 = vadd.f32 0.0, %v1224
      %v1226 = vpop.f32.mrb[0].mxu0
      %v1227 = vpop.f32.mrb[0].mxu0
      %v1228 = vadd.f32 0.0, %v1227
      %v1229 = vpop.f32.mrb[0].mxu0
      %1230 = vmatprep.mubr.bf16.mxu0 0
      %1231 = vmatmul.mubr.bf16.gmra.mrb[0].mxu0 %v1169
      %v1232 = vpop.f32.mrb[0].mxu0
      %v1233 = vadd.f32 0.0, %v1232
      %v1234 = vpop.f32.mrb[0].mxu0
      %v1235 = vpop.f32.mrb[0].mxu0
      %v1236 = vadd.f32 0.0, %v1235
      %v1237 = vpop.f32.mrb[0].mxu0
      %1238 = vdwg.mxu0
      %v1239 = vadd.f32 %v1157, %v1209
      %v1240 = vadd.f32 %v1158, %v1212
      %v1241 = vadd.f32 %v1159, %v1217
      %v1242 = vadd.f32 %v1160, %v1220
      %v1243 = vadd.f32 %v1161, %v1225
      %v1244 = vadd.f32 %v1162, %v1228
      %v1245 = vadd.f32 %v1163, %v1233
      %v1246 = vadd.f32 %v1164, %v1236
      %s1247 = scalar_lea.vmem %s3, 28
      %v1248 = vld [vmem:[%s1247] sm:$0xf]
      %v1249 = vpack.c.b16 %v543, %v973
      %v1251 = vsel %vm555, %v1249, 0
      %v1254 = vsel %vm568, %v1248, 0
      %1256 = vmatprep.subr.bf16.mxu0 0
      %1257 = vmatpush1.bf16.msra.mxu0 %v1254
      %1258 = vmatprep.subr.bf16.mxu0 0
      %1259 = vmatpush1.bf16.msra.mxu0 0
      %1260 = vmatprep.subr.bf16.mxu0 0
      %1261 = vmatpush1.bf16.msra.mxu0 0
      %1262 = vmatprep.subr.bf16.mxu0 0
      %1263 = vmatpush1.bf16.msra.mxu0 0
      %1264 = vmatprep.subr.bf16.mxu0 0
      %1265 = vmatpush1.bf16.msra.mxu0 0
      %1266 = vmatprep.subr.bf16.mxu0 0
      %1267 = vmatpush1.bf16.msra.mxu0 0
      %1268 = vmatprep.subr.bf16.mxu0 0
      %1269 = vmatpush1.bf16.msra.mxu0 0
      %1270 = vmatprep.subr.bf16.mxu0 0
      %1271 = vmatpush1.bf16.msra.mxu0 0
      %1272 = vmatprep.subr.bf16.mxu0 0
      %1273 = vmatpush1.bf16.msra.mxu0 0
      %1274 = vmatprep.subr.bf16.mxu0 0
      %1275 = vmatpush1.bf16.msra.mxu0 0
      %1276 = vmatprep.subr.bf16.mxu0 0
      %1277 = vmatpush1.bf16.msra.mxu0 0
      %1278 = vmatprep.subr.bf16.mxu0 0
      %1279 = vmatpush1.bf16.msra.mxu0 0
      %1280 = vmatprep.subr.bf16.mxu0 0
      %1281 = vmatpush1.bf16.msra.mxu0 0
      %1282 = vmatprep.subr.bf16.mxu0 0
      %1283 = vmatpush1.bf16.msra.mxu0 0
      %1284 = vmatprep.subr.bf16.mxu0 0
      %1285 = vmatpush1.bf16.msra.mxu0 0
      %1286 = vmatprep.subr.bf16.mxu0 0
      %1287 = vmatpush1.bf16.msra.mxu0 0
      %1288 = vmatprep.mubr.bf16.mxu0 0
      %1289 = vmatmul.mubr.bf16.gmra.mrb[0].mxu0 %v560
      %v1290 = vpop.f32.mrb[0].mxu0
      %v1291 = vadd.f32 0.0, %v1290
      %v1292 = vpop.f32.mrb[0].mxu0
      %v1293 = vpop.f32.mrb[0].mxu0
      %v1294 = vadd.f32 0.0, %v1293
      %v1295 = vpop.f32.mrb[0].mxu0
      %1296 = vmatprep.mubr.bf16.mxu0 0
      %1297 = vmatmul.mubr.bf16.gmra.mrb[0].mxu0 %v563
      %v1298 = vpop.f32.mrb[0].mxu0
      %v1299 = vadd.f32 0.0, %v1298
      %v1300 = vpop.f32.mrb[0].mxu0
      %v1301 = vpop.f32.mrb[0].mxu0
      %v1302 = vadd.f32 0.0, %v1301
      %v1303 = vpop.f32.mrb[0].mxu0
      %1304 = vmatprep.mubr.bf16.mxu0 0
      %1305 = vmatmul.mubr.bf16.gmra.mrb[0].mxu0 %v566
      %v1306 = vpop.f32.mrb[0].mxu0
      %v1307 = vadd.f32 0.0, %v1306
      %v1308 = vpop.f32.mrb[0].mxu0
      %v1309 = vpop.f32.mrb[0].mxu0
      %v1310 = vadd.f32 0.0, %v1309
      %v1311 = vpop.f32.mrb[0].mxu0
      %1312 = vmatprep.mubr.bf16.mxu0 0
      %1313 = vmatmul.mubr.bf16.gmra.mrb[0].mxu0 %v1251
      %v1314 = vpop.f32.mrb[0].mxu0
      %v1315 = vadd.f32 0.0, %v1314
      %v1316 = vpop.f32.mrb[0].mxu0
      %v1317 = vpop.f32.mrb[0].mxu0
      %v1318 = vadd.f32 0.0, %v1317
      %v1319 = vpop.f32.mrb[0].mxu0
      %1320 = vdwg.mxu0
      %v1321 = vadd.f32 %v1239, %v1291
      %v1322 = vadd.f32 %v1240, %v1294
      %v1323 = vadd.f32 %v1241, %v1299
      %v1324 = vadd.f32 %v1242, %v1302
      %v1325 = vadd.f32 %v1243, %v1307
      %v1326 = vadd.f32 %v1244, %v1310
      %v1327 = vadd.f32 %v1245, %v1315
      %v1328 = vadd.f32 %v1246, %v1318
      %s1329 = scalar_lea.vmem %s3, 32
      %v1330 = vld [vmem:[%s1329] sm:$0xf]
      %v1331 = vpack.c.b16 %v758, %v1072
      %v1333 = vsel %vm555, %v1331, 0
      %v1336 = vsel %vm568, %v1330, 0
      %1338 = vmatprep.subr.bf16.mxu0 0
      %1339 = vmatpush1.bf16.msra.mxu0 %v1336
      %1340 = vmatprep.subr.bf16.mxu0 0
      %1341 = vmatpush1.bf16.msra.mxu0 0
      %1342 = vmatprep.subr.bf16.mxu0 0
      %1343 = vmatpush1.bf16.msra.mxu0 0
      %1344 = vmatprep.subr.bf16.mxu0 0
      %1345 = vmatpush1.bf16.msra.mxu0 0
      %1346 = vmatprep.subr.bf16.mxu0 0
      %1347 = vmatpush1.bf16.msra.mxu0 0
      %1348 = vmatprep.subr.bf16.mxu0 0
      %1349 = vmatpush1.bf16.msra.mxu0 0
      %1350 = vmatprep.subr.bf16.mxu0 0
      %1351 = vmatpush1.bf16.msra.mxu0 0
      %1352 = vmatprep.subr.bf16.mxu0 0
      %1353 = vmatpush1.bf16.msra.mxu0 0
      %1354 = vmatprep.subr.bf16.mxu0 0
      %1355 = vmatpush1.bf16.msra.mxu0 0
      %1356 = vmatprep.subr.bf16.mxu0 0
      %1357 = vmatpush1.bf16.msra.mxu0 0
      %1358 = vmatprep.subr.bf16.mxu0 0
      %1359 = vmatpush1.bf16.msra.mxu0 0
      %1360 = vmatprep.subr.bf16.mxu0 0
      %1361 = vmatpush1.bf16.msra.mxu0 0
      %1362 = vmatprep.subr.bf16.mxu0 0
      %1363 = vmatpush1.bf16.msra.mxu0 0
      %1364 = vmatprep.subr.bf16.mxu0 0
      %1365 = vmatpush1.bf16.msra.mxu0 0
      %1366 = vmatprep.subr.bf16.mxu0 0
      %1367 = vmatpush1.bf16.msra.mxu0 0
      %1368 = vmatprep.subr.bf16.mxu0 0
      %1369 = vmatpush1.bf16.msra.mxu0 0
      %1370 = vmatprep.mubr.bf16.mxu0 0
      %1371 = vmatmul.mubr.bf16.gmra.mrb[0].mxu0 %v774
      %v1372 = vpop.f32.mrb[0].mxu0
      %v1373 = vadd.f32 0.0, %v1372
      %v1374 = vpop.f32.mrb[0].mxu0
      %v1375 = vpop.f32.mrb[0].mxu0
      %v1376 = vadd.f32 0.0, %v1375
      %v1377 = vpop.f32.mrb[0].mxu0
      %1378 = vmatprep.mubr.bf16.mxu0 0
      %1379 = vmatmul.mubr.bf16.gmra.mrb[0].mxu0 %v777
      %v1380 = vpop.f32.mrb[0].mxu0
      %v1381 = vadd.f32 0.0, %v1380
      %v1382 = vpop.f32.mrb[0].mxu0
      %v1383 = vpop.f32.mrb[0].mxu0
      %v1384 = vadd.f32 0.0, %v1383
      %v1385 = vpop.f32.mrb[0].mxu0
      %1386 = vmatprep.mubr.bf16.mxu0 0
      %1387 = vmatmul.mubr.bf16.gmra.mrb[0].mxu0 %v780
      %v1388 = vpop.f32.mrb[0].mxu0
      %v1389 = vadd.f32 0.0, %v1388
      %v1390 = vpop.f32.mrb[0].mxu0
      %v1391 = vpop.f32.mrb[0].mxu0
      %v1392 = vadd.f32 0.0, %v1391
      %v1393 = vpop.f32.mrb[0].mxu0
      %1394 = vmatprep.mubr.bf16.mxu0 0
      %1395 = vmatmul.mubr.bf16.gmra.mrb[0].mxu0 %v1333
      %v1396 = vpop.f32.mrb[0].mxu0
      %v1397 = vadd.f32 0.0, %v1396
      %v1398 = vpop.f32.mrb[0].mxu0
      %v1399 = vpop.f32.mrb[0].mxu0
      %v1400 = vadd.f32 0.0, %v1399
      %v1401 = vpop.f32.mrb[0].mxu0
      %1402 = vdwg.mxu0
      %v1403 = vadd.f32 %v1321, %v1373
      %v1404 = vadd.f32 %v1322, %v1376
      %v1405 = vadd.f32 %v1323, %v1381
      %v1406 = vadd.f32 %v1324, %v1384
      %v1407 = vadd.f32 %v1325, %v1389
      %v1408 = vadd.f32 %v1326, %v1392
      %v1409 = vadd.f32 %v1327, %v1397
      %v1410 = vadd.f32 %v1328, %v1400
      %v1411 = vpack.c.bf16 %v1403, %v1403
      %v1412 = vpack.c.bf16 %v1404, %v1404
      %v1413 = vpack.c.bf16 %v1405, %v1405
      %v1414 = vpack.c.bf16 %v1406, %v1406
      %v1415 = vpack.c.bf16 %v1407, %v1407
      %v1416 = vpack.c.bf16 %v1408, %v1408
      %v1417 = vpack.c.bf16 %v1409, %v1409
      %v1418 = vpack.c.bf16 %v1410, %v1410
      %vm1419 = vcmask 60416
      %1420 = vst.msk [vmem:[%s231] sm:$0xf] %vm1419, %v1411
      %1421 = vst.msk [vmem:[%s231 + $0x4] sm:$0xf] %vm1419, %v1412
      %1422 = vst.msk [vmem:[%s231 + $0x8] sm:$0xf] %vm1419, %v1413
      %1423 = vst.msk [vmem:[%s231 + $0xc] sm:$0xf] %vm1419, %v1414
      %1424 = vst.msk [vmem:[%s231 + $0x10] sm:$0xf] %vm1419, %v1415
      %1425 = vst.msk [vmem:[%s231 + $0x14] sm:$0xf] %vm1419, %v1416
      %1426 = vst.msk [vmem:[%s231 + $0x18] sm:$0xf] %vm1419, %v1417
      %1427 = vst.msk [vmem:[%s231 + $0x1c] sm:$0xf] %vm1419, %v1418
      %v1428 = vsel %vm555, %v1403, 0.0
      %v1429 = vsel %vm555, %v1404, 0.0
      %v1430 = vadd.f32 %v1428, %v1429
      %v1431 = vsel %vm555, %v1405, 0.0
      %v1432 = vadd.f32 %v1430, %v1431
      %v1433 = vsel %vm555, %v1406, 0.0
      %v1434 = vadd.f32 %v1432, %v1433
      %v1435 = vsel %vm555, %v1407, 0.0
      %v1436 = vadd.f32 %v1434, %v1435
      %v1437 = vsel %vm555, %v1408, 0.0
      %v1438 = vadd.f32 %v1436, %v1437
      %v1439 = vsel %vm555, %v1409, 0.0
      %v1440 = vadd.f32 %v1438, %v1439
      %v1441 = vsel %vm555, %v1410, 0.0
      %v1442 = vadd.f32 %v1440, %v1441
      %v1443 = vrot.slane %v1442, 4
      %v1444 = vadd.f32 %v1442, %v1443
      %v1445 = vrot.slane %v1444, 2
      %v1446 = vadd.f32 %v1444, %v1445
      %v1447 = vrot.slane %v1446, 1
      %v1448 = vadd.f32 %v1446, %v1447
      %v1449 = vmul.f32 %v1403, %v1403
      %v1450 = vmul.f32 %v1404, %v1404
      %v1451 = vmul.f32 %v1405, %v1405
      %v1452 = vmul.f32 %v1406, %v1406
      %v1453 = vmul.f32 %v1407, %v1407
      %v1454 = vmul.f32 %v1408, %v1408
      %v1455 = vmul.f32 %v1409, %v1409
      %v1456 = vmul.f32 %v1410, %v1410
      %v1457 = vsel %vm555, %v1449, 0.0
      %v1458 = vsel %vm555, %v1450, 0.0
      %v1459 = vadd.f32 %v1457, %v1458
      %v1460 = vsel %vm555, %v1451, 0.0
      %v1461 = vadd.f32 %v1459, %v1460
      %v1462 = vsel %vm555, %v1452, 0.0
      %v1463 = vadd.f32 %v1461, %v1462
      %v1464 = vsel %vm555, %v1453, 0.0
      %v1465 = vadd.f32 %v1463, %v1464
      %v1466 = vsel %vm555, %v1454, 0.0
      %v1467 = vadd.f32 %v1465, %v1466
      %v1468 = vsel %vm555, %v1455, 0.0
      %v1469 = vadd.f32 %v1467, %v1468
      %v1470 = vsel %vm555, %v1456, 0.0
      %v1471 = vadd.f32 %v1469, %v1470
      %v1472 = vrot.slane %v1471, 4
      %v1473 = vadd.f32 %v1471, %v1472
      %v1474 = vrot.slane %v1473, 2
      %v1475 = vadd.f32 %v1473, %v1474
      %v1476 = vrot.slane %v1475, 1
      %v1477 = vadd.f32 %v1475, %v1476
      %vm1478 = vcmask 1040384
      %v1479 = vsel %vm1478, %v1448, %v1477
      %vm1480 = vcmask 58368
      %1481 = vst.msk [vmem:[%s235] sm:$0x3] %vm1480, %v1479
      %p1482 = scmp.lt.s32.totalorder %s17, 1
      %s1483 = scalar_select %p1482, %s17, 1
      %s1484 = smul.addr %s1483, 8
      %s1485 = smul.addr %s1484, 4
      %s1486 = scalar_lea.vmem %s4, %s1485
      %p1487 = scmp.lt.s32.totalorder %s17, 1
      %s1488 = scalar_select %p1487, %s17, 1
      %s1489 = smul.addr %s1488, 2
      %s1490 = scalar_lea.vmem %s5, %s1489
      // Predicated region
      $region37: #{bottleneck_forward.6} parent=35 // pred_check
        %p1491 = pneg %p124
      $region38: #{bottleneck_forward.6} parent=35 // pred_check_branch
        %1493 = sbr.rel (%p1491) target = $region40
      $region39: #{bottleneck_forward.6} parent=35 // pred_region
        _
      $region40: #{bottleneck_forward.6} parent=35 // pred_fallthru
        _
      // Predicated region
      $region41: #{bottleneck_forward.6} parent=35 // pred_check
        %p1494 = pneg %p150
      $region42: #{bottleneck_forward.6} parent=35 // pred_check_branch
        %1496 = sbr.rel (%p1494) target = $region44
      $region43: #{bottleneck_forward.6} parent=35 // pred_region
        _
      $region44: #{bottleneck_forward.6} parent=35 // pred_fallthru
        _
    $region36: #{bottleneck_forward.6} parent=5 // pred_fallthru
      _
    %p1497 = scmp.le.s32.totalorder 2, %s12
    // Predicated region
    $region45: #{bottleneck_forward.6} parent=5 // pred_check
      %p1498 = pneg %p1497
    $region46: #{bottleneck_forward.6} parent=5 // pred_check_branch
      %1500 = sbr.rel (%p1498) target = $region48
    $region47: #{bottleneck_forward.6} parent=5 // pred_region
      %s1501 = ssub.s32 %s12, 2
      // Predicated region
      $region49: #{bottleneck_forward.6} parent=47 // pred_check
        %p1502 = pneg %p130
      $region50: #{bottleneck_forward.6} parent=47 // pred_check_branch
        %1504 = sbr.rel (%p1502) target = $region52
      $region51: #{bottleneck_forward.6} parent=47 // pred_region
        %p1505 = scmp.lt.s32.totalorder %s18, 1
        %s1506 = scalar_select %p1505, %s18, 1
        %s1507 = smul.addr %s1506, 8
        %s1508 = smul.addr %s1507, 4
        %s1509 = scalar_lea.vmem %s4, %s1508
      $region52: #{bottleneck_forward.6} parent=47 // pred_fallthru
        _
      // Predicated region
      $region53: #{bottleneck_forward.6} parent=47 // pred_check
        %p1510 = pneg %p156
      $region54: #{bottleneck_forward.6} parent=47 // pred_check_branch
        %1512 = sbr.rel (%p1510) target = $region56
      $region55: #{bottleneck_forward.6} parent=47 // pred_region
        %p1513 = scmp.lt.s32.totalorder %s18, 1
        %s1514 = scalar_select %p1513, %s18, 1
        %s1515 = smul.addr %s1514, 2
        %s1516 = scalar_lea.vmem %s5, %s1515
      $region56: #{bottleneck_forward.6} parent=47 // pred_fallthru
        _
    $region48: #{bottleneck_forward.6} parent=5 // pred_fallthru
      _
  $region6: #{bottleneck_forward.6} parent=0 // loop_footer
    %s16 = sadd.s32 1, %s12
  $region7: #{bottleneck_forward.6} parent=0 // loop_footer_branch
    %11 = sbr.rel target = $region3
  $region8: #{bottleneck_forward.6} parent=0 // loop_exit
    _

// kernel: bottleneck_forward.9
$region0: #{bottleneck_forward.9}
  #allocation0 [shape = 'u32[]', space=smem, size = 0x4, offset = 0x4, fixed_abs, tag = 'smem constant byte address 0x4 - core index']
  #allocation1 [shape = 'u32[144,128]{1,0:T(1,128)}', space=vmem, size = 0x12000, scoped, tag = 'internal scratch']
  %s0 = inlined_call_operand.vmem [shape: bf16[128,32], index: 0, kind: input, shape index: {}]
  %s1 = inlined_call_operand.vmem [shape: f32[1,32], index: 1, kind: input, shape index: {}]
  %s2 = inlined_call_operand.vmem [shape: f32[1,32], index: 2, kind: input, shape index: {}]
  %s3 = inlined_call_operand.vmem [shape: bf16[128,32], index: 3, kind: input, shape index: {}]
  %s4 = inlined_call_operand.vmem [shape: f32[1,32], index: 4, kind: input, shape index: {}]
  %s5 = inlined_call_operand.vmem [shape: f32[1,32], index: 5, kind: input, shape index: {}]
  %s6 = inlined_call_operand.hbm [shape: f32[128,32], index: 6, kind: output, shape index: {}]
  %s7 = sld [smem:[#allocation0]]
  $region57: #{bottleneck_forward.9} parent=0
    _
  %s9 = ssub.s32 1, %s7
  %s10 = scalar_select 0, %s9, %s7
  $region1: #{bottleneck_forward.9} parent=0
    #allocation2 [shape = 'u8[65536]{0}', space=vmem, size = 0x10000, scoped, tag = 'output window, operand 0']
    #allocation3 [shape = 's32[2]{0}', space=sflag, size = 0x8, scoped, tag = 'scoped memory for bottleneck_forward.9']
    %11 = vsyncpa [#allocation3], 0
    %s12 = scalar_lea.sflag [#allocation3], 1
    %13 = vsyncpa %s12, 0
    loop: start=0, step=1, limit=4
    $region2: #{bottleneck_forward.9} parent=1 // loop_pre_header
      _
    $region3: #{bottleneck_forward.9} parent=1 // loop_header
      %s15 = sphi 0, %s19
      %p16 = scmp.ge.s32.totalorder %s15, 4
      %s25 = sphi 0, %s27
      %s28 = sphi 0, %s25
      %s29 = sphi 0, %s28
      %s45 = sphi 0, %s29
      %s49 = sphi 0, %s49
      %s51 = sphi 0, %s49
      %s52 = sphi 0, %s51
      %s66 = sphi 0, %s52
      %s70 = sphi 0, %s70
      %s72 = sphi 0, %s70
      %s73 = sphi 0, %s72
      %s87 = sphi 0, %s73
      %s93 = sphi 0, %s95
      %s96 = sphi 0, %s93
      %s97 = sphi 0, %s96
      %s113 = sphi 0, %s97
      %s117 = sphi 0, %s117
      %s119 = sphi 0, %s117
      %s120 = sphi 0, %s119
      %s134 = sphi 0, %s120
      %s138 = sphi 0, %s138
      %s140 = sphi 0, %s138
      %s141 = sphi 0, %s140
      %s155 = sphi 0, %s141
      %s161 = sphi 0, %s163
      %s164 = sphi 0, %s161
      %s165 = sphi 0, %s164
      %s181 = sphi 0, %s165
    $region4: #{bottleneck_forward.9} parent=1 // loop_header_branch
      %18 = sbr.rel (%p16) target = $region8
    $region5: #{bottleneck_forward.9} parent=1 // loop_body
      %s20 = ssub.s32 %s15, 1
      %s21 = ssub.s32 %s15, 2
      %s22 = sadd.s32 %s15, 1
      %s23 = ssub.s32 %s15, %s22
      %p24 = scmp.eq.s32.totalorder %s23, 0
      %s26 = sadd.s32 %s25, 1
      %s27 = scalar_select %p24, %s25, %s26
      %p30 = pneg %p24
      %p31 = scmp.eq.s32.totalorder %s15, 1
      %p32 = por %p30, %p31
      %p33 = scmp.ne.s32.totalorder %s25, %s28
      %p34 = scmp.eq.s32.totalorder %s15, 0
      %p35 = por %p33, %p34
      %p36 = scmp.ne.s32.totalorder %s25, %s28
      %p37 = scmp.eq.s32.totalorder %s20, 1
      %p38 = por %p36, %p37
      %p39 = scmp.ne.s32.totalorder %s28, %s29
      %p40 = scmp.eq.s32.totalorder %s20, 0
      %p41 = por %p39, %p40
      %p42 = scmp.ne.s32.totalorder %s28, %s29
      %p43 = scmp.eq.s32.totalorder %s21, 1
      %p44 = por %p42, %p43
      %p46 = scmp.ne.s32.totalorder %s29, %s45
      %p47 = scmp.eq.s32.totalorder %s21, 0
      %p48 = por %p46, %p47
      %s50 = sadd.s32 %s49, 1
      %p53 = scmp.eq.s32.totalorder %s15, 1
      %p54 = scmp.ne.s32.totalorder %s49, %s51
      %p55 = scmp.eq.s32.totalorder %s15, 0
      %p56 = por %p54, %p55
      %p57 = scmp.ne.s32.totalorder %s49, %s51
      %p58 = scmp.eq.s32.totalorder %s20, 1
      %p59 = por %p57, %p58
      %p60 = scmp.ne.s32.totalorder %s51, %s52
      %p61 = scmp.eq.s32.totalorder %s20, 0
      %p62 = por %p60, %p61
      %p63 = scmp.ne.s32.totalorder %s51, %s52
      %p64 = scmp.eq.s32.totalorder %s21, 1
      %p65 = por %p63, %p64
      %p67 = scmp.ne.s32.totalorder %s52, %s66
      %p68 = scmp.eq.s32.totalorder %s21, 0
      %p69 = por %p67, %p68
      %s71 = sadd.s32 %s70, 1
      %p74 = scmp.eq.s32.totalorder %s15, 1
      %p75 = scmp.ne.s32.totalorder %s70, %s72
      %p76 = scmp.eq.s32.totalorder %s15, 0
      %p77 = por %p75, %p76
      %p78 = scmp.ne.s32.totalorder %s70, %s72
      %p79 = scmp.eq.s32.totalorder %s20, 1
      %p80 = por %p78, %p79
      %p81 = scmp.ne.s32.totalorder %s72, %s73
      %p82 = scmp.eq.s32.totalorder %s20, 0
      %p83 = por %p81, %p82
      %p84 = scmp.ne.s32.totalorder %s72, %s73
      %p85 = scmp.eq.s32.totalorder %s21, 1
      %p86 = por %p84, %p85
      %p88 = scmp.ne.s32.totalorder %s73, %s87
      %p89 = scmp.eq.s32.totalorder %s21, 0
      %p90 = por %p88, %p89
      %s91 = ssub.s32 %s15, %s22
      %p92 = scmp.eq.s32.totalorder %s91, 0
      %s94 = sadd.s32 %s93, 1
      %s95 = scalar_select %p92, %s93, %s94
      %p98 = pneg %p92
      %p99 = scmp.eq.s32.totalorder %s15, 1
      %p100 = por %p98, %p99
      %p101 = scmp.ne.s32.totalorder %s93, %s96
      %p102 = scmp.eq.s32.totalorder %s15, 0
      %p103 = por %p101, %p102
      %p104 = scmp.ne.s32.totalorder %s93, %s96
      %p105 = scmp.eq.s32.totalorder %s20, 1
      %p106 = por %p104, %p105
      %p107 = scmp.ne.s32.totalorder %s96, %s97
      %p108 = scmp.eq.s32.totalorder %s20, 0
      %p109 = por %p107, %p108
      %p110 = scmp.ne.s32.totalorder %s96, %s97
      %p111 = scmp.eq.s32.totalorder %s21, 1
      %p112 = por %p110, %p111
      %p114 = scmp.ne.s32.totalorder %s97, %s113
      %p115 = scmp.eq.s32.totalorder %s21, 0
      %p116 = por %p114, %p115
      %s118 = sadd.s32 %s117, 1
      %p121 = scmp.eq.s32.totalorder %s15, 1
      %p122 = scmp.ne.s32.totalorder %s117, %s119
      %p123 = scmp.eq.s32.totalorder %s15, 0
      %p124 = por %p122, %p123
      %p125 = scmp.ne.s32.totalorder %s117, %s119
      %p126 = scmp.eq.s32.totalorder %s20, 1
      %p127 = por %p125, %p126
      %p128 = scmp.ne.s32.totalorder %s119, %s120
      %p129 = scmp.eq.s32.totalorder %s20, 0
      %p130 = por %p128, %p129
      %p131 = scmp.ne.s32.totalorder %s119, %s120
      %p132 = scmp.eq.s32.totalorder %s21, 1
      %p133 = por %p131, %p132
      %p135 = scmp.ne.s32.totalorder %s120, %s134
      %p136 = scmp.eq.s32.totalorder %s21, 0
      %p137 = por %p135, %p136
      %s139 = sadd.s32 %s138, 1
      %p142 = scmp.eq.s32.totalorder %s15, 1
      %p143 = scmp.ne.s32.totalorder %s138, %s140
      %p144 = scmp.eq.s32.totalorder %s15, 0
      %p145 = por %p143, %p144
      %p146 = scmp.ne.s32.totalorder %s138, %s140
      %p147 = scmp.eq.s32.totalorder %s20, 1
      %p148 = por %p146, %p147
      %p149 = scmp.ne.s32.totalorder %s140, %s141
      %p150 = scmp.eq.s32.totalorder %s20, 0
      %p151 = por %p149, %p150
      %p152 = scmp.ne.s32.totalorder %s140, %s141
      %p153 = scmp.eq.s32.totalorder %s21, 1
      %p154 = por %p152, %p153
      %p156 = scmp.ne.s32.totalorder %s141, %s155
      %p157 = scmp.eq.s32.totalorder %s21, 0
      %p158 = por %p156, %p157
      %s159 = ssub.s32 %s15, %s22
      %p160 = scmp.eq.s32.totalorder %s159, 0
      %s162 = sadd.s32 %s161, 1
      %s163 = scalar_select %p160, %s161, %s162
      %p166 = pneg %p160
      %p167 = scmp.eq.s32.totalorder %s15, 1
      %p168 = por %p166, %p167
      %p169 = scmp.ne.s32.totalorder %s161, %s164
      %p170 = scmp.eq.s32.totalorder %s15, 0
      %p171 = por %p169, %p170
      %p172 = scmp.ne.s32.totalorder %s161, %s164
      %p173 = scmp.eq.s32.totalorder %s20, 1
      %p174 = por %p172, %p173
      %p175 = scmp.ne.s32.totalorder %s164, %s165
      %p176 = scmp.eq.s32.totalorder %s20, 0
      %p177 = por %p175, %p176
      %p178 = scmp.ne.s32.totalorder %s164, %s165
      %p179 = scmp.eq.s32.totalorder %s21, 1
      %p180 = por %p178, %p179
      %p182 = scmp.ne.s32.totalorder %s165, %s181
      %p183 = scmp.eq.s32.totalorder %s21, 0
      %p184 = por %p182, %p183
      %p185 = scmp.le.s32.totalorder 1, %s15
      %p186 = scmp.lt.s32.totalorder %s15, 3
      %p187 = pnand %p185, %p186
      %p188 = pneg %p187
      // Predicated region
      $region9: #{bottleneck_forward.9} parent=5 // pred_check
        _
      $region10: #{bottleneck_forward.9} parent=5 // pred_check_branch
        %190 = sbr.rel (%p187) target = $region12
      $region11: #{bottleneck_forward.9} parent=5 // pred_region
        %s191 = ssub.s32 %s15, 1
        // Predicated region
        $region13: #{bottleneck_forward.9} parent=11 // pred_check
          %p192 = pneg %p62
        $region14: #{bottleneck_forward.9} parent=11 // pred_check_branch
          %194 = sbr.rel (%p192) target = $region16
        $region15: #{bottleneck_forward.9} parent=11 // pred_region
          _
        $region16: #{bottleneck_forward.9} parent=11 // pred_fallthru
          _
        // Predicated region
        $region17: #{bottleneck_forward.9} parent=11 // pred_check
          %p195 = pneg %p83
        $region18: #{bottleneck_forward.9} parent=11 // pred_check_branch
          %197 = sbr.rel (%p195) target = $region20
        $region19: #{bottleneck_forward.9} parent=11 // pred_region
          _
        $region20: #{bottleneck_forward.9} parent=11 // pred_fallthru
          _
        // Predicated region
        $region21: #{bottleneck_forward.9} parent=11 // pred_check
          %p198 = pneg %p130
        $region22: #{bottleneck_forward.9} parent=11 // pred_check_branch
          %200 = sbr.rel (%p198) target = $region24
        $region23: #{bottleneck_forward.9} parent=11 // pred_region
          _
        $region24: #{bottleneck_forward.9} parent=11 // pred_fallthru
          _
        // Predicated region
        $region25: #{bottleneck_forward.9} parent=11 // pred_check
          %p201 = pneg %p151
        $region26: #{bottleneck_forward.9} parent=11 // pred_check_branch
          %203 = sbr.rel (%p201) target = $region28
        $region27: #{bottleneck_forward.9} parent=11 // pred_region
          _
        $region28: #{bottleneck_forward.9} parent=11 // pred_fallthru
          _
      $region12: #{bottleneck_forward.9} parent=5 // pred_fallthru
        _
      %p204 = scmp.lt.s32.totalorder %s15, 2
      // Predicated region
      $region29: #{bottleneck_forward.9} parent=5 // pred_check
        %p205 = pneg %p204
      $region30: #{bottleneck_forward.9} parent=5 // pred_check_branch
        %207 = sbr.rel (%p205) target = $region32
      $region31: #{bottleneck_forward.9} parent=5 // pred_region
        // Predicated region
        $region33: #{bottleneck_forward.9} parent=31 // pred_check
          %p208 = pneg %p35
        $region34: #{bottleneck_forward.9} parent=31 // pred_check_branch
          %210 = sbr.rel (%p208) target = $region36
        $region35: #{bottleneck_forward.9} parent=31 // pred_region
          %s211 = smul.u32 8, %s15
          %p212 = scmp.lt.s32.totalorder %s211, 15
          %s213 = scalar_select %p212, %s211, 15
          %s214 = smul.addr %s213, 4
          %s215 = scalar_lea.vmem %s0, %s214
          %s216 = smul.u32 8, %s15
        $region36: #{bottleneck_forward.9} parent=31 // pred_fallthru
          _
        // Predicated region
        $region37: #{bottleneck_forward.9} parent=31 // pred_check
          %p217 = pneg %p103
        $region38: #{bottleneck_forward.9} parent=31 // pred_check_branch
          %219 = sbr.rel (%p217) target = $region40
        $region39: #{bottleneck_forward.9} parent=31 // pred_region
          %s220 = smul.u32 8, %s15
          %p221 = scmp.lt.s32.totalorder %s220, 15
          %s222 = scalar_select %p221, %s220, 15
          %s223 = smul.addr %s222, 4
          %s224 = scalar_lea.vmem %s3, %s223
          %s225 = smul.u32 8, %s15
        $region40: #{bottleneck_forward.9} parent=31 // pred_fallthru
          _
      $region32: #{bottleneck_forward.9} parent=5 // pred_fallthru
        _
      %p226 = scmp.le.s32.totalorder 1, %s15
      %p227 = scmp.lt.s32.totalorder %s15, 3
      %p228 = pnand %p226, %p227
      %p229 = pneg %p228
      // Predicated region
      $region41: #{bottleneck_forward.9} parent=5 // pred_check
        _
      $region42: #{bottleneck_forward.9} parent=5 // pred_check_branch
        %231 = sbr.rel (%p228) target = $region44
      $region43: #{bottleneck_forward.9} parent=5 // pred_region
        %s232 = ssub.s32 %s15, 1
        %s233 = smul.u32 8, %s20
        %p234 = scmp.lt.s32.totalorder %s233, 15
        %s235 = scalar_select %p234, %s233, 15
        %s236 = smul.addr %s235, 4
        %s237 = scalar_lea.vmem %s0, %s236
        %p238 = pneg %p41
        %p239 = pneg %p38
        %p240 = pneg %p62
        %p241 = pneg %p59
        %p242 = pneg %p83
        %p243 = pneg %p80
        %s244 = smul.u32 8, %s20
        %p245 = scmp.lt.s32.totalorder %s244, 15
        %s246 = scalar_select %p245, %s244, 15
        %s247 = smul.addr %s246, 4
        %s248 = scalar_lea.vmem %s3, %s247
        %p249 = pneg %p109
        %p250 = pneg %p106
        %p251 = pneg %p130
        %p252 = pneg %p127
        %p253 = pneg %p151
        %p254 = pneg %p148
        %p255 = pneg %p177
        %p256 = pneg %p174
        %s257 = sand.u32 %s164, 1
        %s258 = scalar_lea.sflag [#allocation3], %s257
        %s259 = sand.u32 %s164, 1
        %s260 = smul.addr %s259, 64
        %s261 = scalar_lea.vmem [#allocation2], %s260
        %s262 = smul.u32 8, %s20
        %p263 = scmp.lt.s32.totalorder %s262, 15
        %s264 = scalar_select %p263, %s262, 15
        %s265 = smul.addr %s264, 4
        %s266 = scalar_lea.vmem %s0, %s265
        %s267 = smul.u32 8, %s20
        %s268 = smul.u32 8, %s20
        %p269 = scmp.lt.s32.totalorder %s268, 15
        %s270 = scalar_select %p269, %s268, 15
        %s271 = smul.addr %s270, 4
        %s272 = scalar_lea.vmem %s3, %s271
        %s273 = smul.u32 8, %s20
        %s274 = smul.u32 8, %s20
        %v275 = vld [vmem:[%s266] sm:$0xf]
        %v276 = vld [vmem:[%s266 + $0x4] sm:$0xf]
        %v277 = vld [vmem:[%s266 + $0x8] sm:$0xf]
        %v278 = vld [vmem:[%s266 + $0xc] sm:$0xf]
        %v279 = vld [vmem:[%s266 + $0x10] sm:$0xf]
        %v280 = vld [vmem:[%s266 + $0x14] sm:$0xf]
        %v281 = vld [vmem:[%s266 + $0x18] sm:$0xf]
        %v282 = vld [vmem:[%s266 + $0x1c] sm:$0xf]
        %v283 = vunpack.c.l.bf16 %v275
        %v284 = vunpack.c.l.bf16 %v276
        %v285 = vunpack.c.l.bf16 %v277
        %v286 = vunpack.c.l.bf16 %v278
        %v287 = vunpack.c.l.bf16 %v279
        %v288 = vunpack.c.l.bf16 %v280
        %v289 = vunpack.c.l.bf16 %v281
        %v290 = vunpack.c.l.bf16 %v282
        %v291 = vld [vmem:[%s1] sm:$0x1]
        %v293 = vlaneseq
        %v294 = vshrl.u32 %v293, 7
        %v295 = vsub.s32 0, %v294
        %v296 = vrot.slane %v291, %v295
        %v298 = vmul.f32 %v283, %v296
        %v299 = vmul.f32 %v284, %v296
        %v300 = vmul.f32 %v285, %v296
        %v301 = vmul.f32 %v286, %v296
        %v302 = vmul.f32 %v287, %v296
        %v303 = vmul.f32 %v288, %v296
        %v304 = vmul.f32 %v289, %v296
        %v305 = vmul.f32 %v290, %v296
        %v306 = vld [vmem:[%s2] sm:$0x1]
        %v308 = vlaneseq
        %v309 = vshrl.u32 %v308, 7
        %v310 = vsub.s32 0, %v309
        %v311 = vrot.slane %v306, %v310
        %v313 = vadd.f32 %v298, %v311
        %v314 = vadd.f32 %v299, %v311
        %v315 = vadd.f32 %v300, %v311
        %v316 = vadd.f32 %v301, %v311
        %v317 = vadd.f32 %v302, %v311
        %v318 = vadd.f32 %v303, %v311
        %v319 = vadd.f32 %v304, %v311
        %v320 = vadd.f32 %v305, %v311
        %v321 = vld [vmem:[%s272] sm:$0xf]
        %v322 = vld [vmem:[%s272 + $0x4] sm:$0xf]
        %v323 = vld [vmem:[%s272 + $0x8] sm:$0xf]
        %v324 = vld [vmem:[%s272 + $0xc] sm:$0xf]
        %v325 = vld [vmem:[%s272 + $0x10] sm:$0xf]
        %v326 = vld [vmem:[%s272 + $0x14] sm:$0xf]
        %v327 = vld [vmem:[%s272 + $0x18] sm:$0xf]
        %v328 = vld [vmem:[%s272 + $0x1c] sm:$0xf]
        %v329 = vunpack.c.l.bf16 %v321
        %v330 = vunpack.c.l.bf16 %v322
        %v331 = vunpack.c.l.bf16 %v323
        %v332 = vunpack.c.l.bf16 %v324
        %v333 = vunpack.c.l.bf16 %v325
        %v334 = vunpack.c.l.bf16 %v326
        %v335 = vunpack.c.l.bf16 %v327
        %v336 = vunpack.c.l.bf16 %v328
        %v337 = vld [vmem:[%s4] sm:$0x1]
        %v339 = vlaneseq
        %v340 = vshrl.u32 %v339, 7
        %v341 = vsub.s32 0, %v340
        %v342 = vrot.slane %v337, %v341
        %v344 = vmul.f32 %v329, %v342
        %v345 = vmul.f32 %v330, %v342
        %v346 = vmul.f32 %v331, %v342
        %v347 = vmul.f32 %v332, %v342
        %v348 = vmul.f32 %v333, %v342
        %v349 = vmul.f32 %v334, %v342
        %v350 = vmul.f32 %v335, %v342
        %v351 = vmul.f32 %v336, %v342
        %v352 = vadd.f32 %v313, %v344
        %v353 = vadd.f32 %v314, %v345
        %v354 = vadd.f32 %v315, %v346
        %v355 = vadd.f32 %v316, %v347
        %v356 = vadd.f32 %v317, %v348
        %v357 = vadd.f32 %v318, %v349
        %v358 = vadd.f32 %v319, %v350
        %v359 = vadd.f32 %v320, %v351
        %v360 = vld [vmem:[%s5] sm:$0x1]
        %v362 = vlaneseq
        %v363 = vshrl.u32 %v362, 7
        %v364 = vsub.s32 0, %v363
        %v365 = vrot.slane %v360, %v364
        %v367 = vadd.f32 %v352, %v365
        %v368 = vadd.f32 %v353, %v365
        %v369 = vadd.f32 %v354, %v365
        %v370 = vadd.f32 %v355, %v365
        %v371 = vadd.f32 %v356, %v365
        %v372 = vadd.f32 %v357, %v365
        %v373 = vadd.f32 %v358, %v365
        %v374 = vadd.f32 %v359, %v365
        %v375 = vmax.f32 %v367, 0.0
        %v376 = vmax.f32 %v368, 0.0
        %v377 = vmax.f32 %v369, 0.0
        %v378 = vmax.f32 %v370, 0.0
        %v379 = vmax.f32 %v371, 0.0
        %v380 = vmax.f32 %v372, 0.0
        %v381 = vmax.f32 %v373, 0.0
        %v382 = vmax.f32 %v374, 0.0
        %vm383 = vcmask 261120
        %384 = vst.msk [vmem:[%s261] sm:$0xff] %vm383, %v375
        %385 = vst.msk [vmem:[%s261 + $0x8] sm:$0xff] %vm383, %v376
        %386 = vst.msk [vmem:[%s261 + $0x10] sm:$0xff] %vm383, %v377
        %387 = vst.msk [vmem:[%s261 + $0x18] sm:$0xff] %vm383, %v378
        %388 = vst.msk [vmem:[%s261 + $0x20] sm:$0xff] %vm383, %v379
        %389 = vst.msk [vmem:[%s261 + $0x28] sm:$0xff] %vm383, %v380
        %390 = vst.msk [vmem:[%s261 + $0x30] sm:$0xff] %vm383, %v381
        %391 = vst.msk [vmem:[%s261 + $0x38] sm:$0xff] %vm383, %v382
        %s392 = sand.u32 %s164, 1
        %s393 = scalar_lea.sflag [#allocation3], %s392
        %s394 = sand.u32 %s164, 1
        %s395 = smul.addr %s394, 64
        %s396 = scalar_lea.vmem [#allocation2], %s395
        // Predicated region
        $region45: #{bottleneck_forward.9} parent=43 // pred_check
          %p397 = pneg %p174
        $region46: #{bottleneck_forward.9} parent=43 // pred_check_branch
          %399 = sbr.rel (%p397) target = $region48
        $region47: #{bottleneck_forward.9} parent=43 // pred_region
          %s400 = smul.u32 8, %s20
          %s402 = ssub.s32 1024, 1024
          %403 = vsyncadd %s393, %s402
          %s404 = smul.addr %s400, 128
          %s405 = scalar_lea.hbm %s6, %s404
          %s406 = sshll.u32 %s396, 4
          %s407 = int_to_ptr.vmem [resolvable:$true] %s406
          %412 = dma.vmem_to_hbm [thread:$0]  %s407, 1024, %s405, %s393, 128, 128, 8
        $region48: #{bottleneck_forward.9} parent=43 // pred_fallthru
          _
      $region44: #{bottleneck_forward.9} parent=5 // pred_fallthru
        _
      %p413 = scmp.le.s32.totalorder 2, %s15
      // Predicated region
      $region49: #{bottleneck_forward.9} parent=5 // pred_check
        %p414 = pneg %p413
      $region50: #{bottleneck_forward.9} parent=5 // pred_check_branch
        %416 = sbr.rel (%p414) target = $region52
      $region51: #{bottleneck_forward.9} parent=5 // pred_region
        %s417 = ssub.s32 %s15, 2
        // Predicated region
        $region53: #{bottleneck_forward.9} parent=51 // pred_check
          %p418 = pneg %p180
        $region54: #{bottleneck_forward.9} parent=51 // pred_check_branch
          %420 = sbr.rel (%p418) target = $region56
        $region55: #{bottleneck_forward.9} parent=51 // pred_region
          %s421 = sand.u32 %s165, 1
          %s422 = scalar_lea.sflag [#allocation3], %s421
          %s423 = sand.u32 %s165, 1
          %s424 = smul.addr %s423, 64
          %s425 = scalar_lea.vmem [#allocation2], %s424
          %426 = dma.done %s422, 1024
        $region56: #{bottleneck_forward.9} parent=51 // pred_fallthru
          _
      $region52: #{bottleneck_forward.9} parent=5 // pred_fallthru
        _
    $region6: #{bottleneck_forward.9} parent=1 // loop_footer
      %s19 = sadd.s32 1, %s15
    $region7: #{bottleneck_forward.9} parent=1 // loop_footer_branch
      %14 = sbr.rel target = $region3
    $region8: #{bottleneck_forward.9} parent=1 // loop_exit
      _
    %427 = vsyncpa [#allocation3], 1
    %s428 = scalar_lea.sflag [#allocation3], 1
    %429 = vsyncpa %s428, 1

</llo_original>
